<compile_context>
chip_gen: v5e
topology: v5e:2x2
jax: 0.10.0
libtpu: 0.0.40
codegen_flags: <defaults>
</compile_context>

<pallas_src>
import jax
import jax.numpy as jnp
import numpy as np
from jax import lax
from jax.experimental import pallas as pl
from jax.experimental.pallas import tpu as pltpu


def _vmem_bytes(shape, dtype):
    """Approximate VMEM footprint of one buffer (lane dim padded to 128, sublane dim to
    the packed-sublane multiple)."""
    itemsize = np.dtype(dtype).itemsize
    pack = max(1, 4 // itemsize)
    dims = list(shape)
    dims[-1] = -(-dims[-1] // 128) * 128
    dims[-2] = -(-dims[-2] // (8 * pack)) * (8 * pack)
    n = 1
    for d in dims:
        n *= d
    return n * itemsize


def _make_basic_block_kernel(H, W, P, compute_dtype):
    """P = flat-pixel halo rows (>= W+1, aligned) in the padded windows."""
    HW = H * W

    def kernel(x_ref, w1_ref, b1_ref, w2_ref, b2_ref, out_ref, win, mid, p1, p2):
        # x_ref : (HW, Cin)        input image, flat pixels (also the residual source)
        # w1_ref: (9*Cin, Cout)    conv1 weight, BN1 scale folded in
        # b1_ref: (1, Cout)        folded BN1 bias (f32)
        # w2_ref: (9*Cout, Cout)   conv2 weight, BN2 scale folded in
        # b2_ref: (1, Cout)        folded BN2 bias (f32)
        # out_ref:(HW, Cout)       output image, flat pixels (f32)
        # win   : (P+HW+P, Cin)    row-padded conv1 input window (scratch)
        # mid   : (P+HW+P, Cout)   row-padded conv1 output / conv2 input (scratch)
        # p1    : (HW, 9*Cin)      im2col patch for conv1 (scratch)
        # p2    : (HW, 9*Cout)     im2col patch for conv2 (scratch)
        Cin = x_ref.shape[-1]
        Cout = out_ref.shape[-1]
        cd = compute_dtype

        # ---- in-kernel zero padding: halo rows of the flat-pixel windows ----
        # Re-zeroed every grid step (cheap: 4*P rows) so correctness never depends on a
        # program_id()==0 initialization that another TensorCore would skip (megacore).
        win[0:P, :] = jnp.zeros((P, Cin), cd)
        win[P + HW:P + HW + P, :] = jnp.zeros((P, Cin), cd)
        mid[0:P, :] = jnp.zeros((P, Cout), cd)
        mid[P + HW:P + HW + P, :] = jnp.zeros((P, Cout), cd)
        # Interior of the conv1 input window = the input tile.
        win[P:P + HW, :] = x_ref[...]

        # Column-edge masks for flat-pixel tap offsets: a dx=-1 tap is invalid at w==0,
        # a dx=+1 tap at w==W-1 (those flat reads would wrap to the neighbouring row).
        col = lax.broadcasted_iota(jnp.int32, (HW, 1), 0) % W
        not_left = col != 0
        not_right = col != (W - 1)

        def build_patch(src, patch, C):
            # One full-lane-width ref slice + one full-width patch store per tap.
            t = 0
            for dy in range(3):
                for dx in range(3):
                    off = (dy - 1) * W + (dx - 1)
                    tap = src[P + off:P + off + HW, :]
                    if dx == 0:
                        tap = jnp.where(not_left, tap, jnp.zeros_like(tap))
                    elif dx == 2:
                        tap = jnp.where(not_right, tap, jnp.zeros_like(tap))
                    patch[:, t * C:(t + 1) * C] = tap
                    t += 1

        # ---- conv1 (+ folded BN1 bias) + ReLU: single im2col matmul, K = 9*Cin ----
        build_patch(win, p1, Cin)
        h1 = jnp.dot(p1[...], w1_ref[...], preferred_element_type=jnp.float32)
        mid[P:P + HW, :] = jnp.maximum(h1 + b1_ref[...], 0.0).astype(cd)

        # ---- conv2 (+ folded BN2 bias) + residual + ReLU: K = 9*Cout ----
        build_patch(mid, p2, Cout)
        h2 = jnp.dot(p2[...], w2_ref[...], preferred_element_type=jnp.float32)
        y = h2 + b2_ref[...] + x_ref[...].astype(jnp.float32)
        out_ref[...] = jnp.maximum(y, 0.0)

    return kernel


def basic_block_forward(x_nchw, params, *, eps=1e-5, compute_dtype=jnp.bfloat16):
    """x_nchw: (N, C, H, W) float32.  Returns (N, C, H, W) float32."""
    (w1, g1, be1, m1, v1, w2, g2, be2, m2, v2) = params
    N, C, H, W = map(int, x_nchw.shape)
    Cout = int(w1.shape[0])
    if Cout != C:
        raise ValueError("BasicBlock identity residual requires inplanes == planes.")
    HW = H * W
    P = -(-(W + 1) // 32) * 32           # flat-pixel halo rows (>= W+1), 32-row aligned
    f32 = jnp.float32

    # ---- fold eval-mode BatchNorm into conv weights / biases (exact) ----
    s1 = g1.astype(f32) / jnp.sqrt(v1.astype(f32) + eps)
    b1 = be1.astype(f32) - m1.astype(f32) * s1
    s2 = g2.astype(f32) / jnp.sqrt(v2.astype(f32) + eps)
    b2 = be2.astype(f32) - m2.astype(f32) * s2

    # PyTorch (Cout,Cin,kh,kw) -> (kh,kw,Cin,Cout) -> (9*Cin, Cout); BN scale folded in.
    w1f = (jnp.transpose(w1.astype(f32), (2, 3, 1, 0)) * s1).reshape(9 * C, Cout)
    w2f = (jnp.transpose(w2.astype(f32), (2, 3, 1, 0)) * s2).reshape(9 * Cout, Cout)
    w1f = w1f.astype(compute_dtype)
    w2f = w2f.astype(compute_dtype)
    b1k = b1.reshape(1, Cout)
    b2k = b2.reshape(1, Cout)

    # NHWC with flattened pixels; NO jnp.pad — zero padding is applied in-kernel.
    xf = jnp.transpose(x_nchw, (0, 2, 3, 1)).reshape(N, HW, C).astype(compute_dtype)

    # VMEM budget from the actual working set (+ headroom for f32 temporaries).
    need = (2 * _vmem_bytes((HW, C), compute_dtype)             # input block (dbl-buf)
            + 2 * _vmem_bytes((HW, Cout), f32)                  # output block (dbl-buf)
            + 2 * (_vmem_bytes((9 * C, Cout), compute_dtype)
                   + _vmem_bytes((9 * Cout, Cout), compute_dtype)
                   + 2 * _vmem_bytes((1, Cout), f32))           # weights / biases
            + _vmem_bytes((2 * P + HW, C), compute_dtype)       # win
            + _vmem_bytes((2 * P + HW, Cout), compute_dtype)    # mid
            + _vmem_bytes((HW, 9 * C), compute_dtype)           # patch1
            + _vmem_bytes((HW, 9 * Cout), compute_dtype)        # patch2
            + 6 * _vmem_bytes((HW, Cout), f32))                 # matmul / elementwise temps
    vmem_limit = int(min(max(2 * need, 32 << 20), 100 << 20))

    kernel = _make_basic_block_kernel(H, W, P, compute_dtype)

    out = pl.pallas_call(
        kernel,
        out_shape=jax.ShapeDtypeStruct((N, HW, Cout), f32),
        grid_spec=pltpu.PrefetchScalarGridSpec(
            num_scalar_prefetch=0,
            grid=(N,),
            in_specs=[
                pl.BlockSpec((None, HW, C), lambda n: (n, 0, 0)),       # image n
                # Constant index maps: weights/biases are DMA'd once for the whole grid.
                pl.BlockSpec((9 * C, Cout), lambda n: (0, 0)),          # w1 (BN folded)
                pl.BlockSpec((1, Cout), lambda n: (0, 0)),              # b1
                pl.BlockSpec((9 * Cout, Cout), lambda n: (0, 0)),       # w2 (BN folded)
                pl.BlockSpec((1, Cout), lambda n: (0, 0)),              # b2
            ],
            out_specs=pl.BlockSpec((None, HW, Cout), lambda n: (n, 0, 0)),
            scratch_shapes=[
                pltpu.VMEM((2 * P + HW, C), compute_dtype),             # padded conv1 input
                pltpu.VMEM((2 * P + HW, Cout), compute_dtype),          # padded conv1 output
                pltpu.VMEM((HW, 9 * C), compute_dtype),                 # im2col patch, conv1
                pltpu.VMEM((HW, 9 * Cout), compute_dtype),              # im2col patch, conv2
            ],
        ),
        compiler_params=pltpu.CompilerParams(
            dimension_semantics=("parallel",),     # batch axis -> megacore sharding (v7x)
            vmem_limit_bytes=vmem_limit,
        ),
    )(xf, w1f, b1k, w2f, b2k)

    return jnp.transpose(out.reshape(N, H, W, Cout), (0, 3, 1, 2))


def basic_block_reference(x_nchw, params, eps=1e-5):
    """Pure-JAX reference (NCHW), mirrors the PyTorch module in eval mode."""
    (w1, g1, be1, m1, v1, w2, g2, be2, m2, v2) = params
    dn = ('NCHW', 'OIHW', 'NCHW')

    def bn(y, g, b, m, v):
        g, b, m, v = (a.reshape(1, -1, 1, 1) for a in (g, b, m, v))
        return (y - m) / jnp.sqrt(v + eps) * g + b

    out = lax.conv_general_dilated(x_nchw, w1, (1, 1), [(1, 1), (1, 1)],
                                   dimension_numbers=dn)
    out = jnp.maximum(bn(out, g1, be1, m1, v1), 0.0)
    out = lax.conv_general_dilated(out, w2, (1, 1), [(1, 1), (1, 1)],
                                   dimension_numbers=dn)
    out = bn(out, g2, be2, m2, v2)
    return jnp.maximum(out + x_nchw, 0.0)


if __name__ == "__main__":
    N, C, H, W = 2, 8, 16, 16          # inplanes == planes, stride=1, no downsample

    key = jax.random.PRNGKey(0)
    ks = jax.random.split(key, 11)
    x = jax.random.normal(ks[0], (N, C, H, W), jnp.float32)

    w1 = jax.random.normal(ks[1], (C, C, 3, 3), jnp.float32) * 0.1
    g1 = jax.random.uniform(ks[2], (C,), jnp.float32, 0.5, 1.5)
    be1 = jax.random.normal(ks[3], (C,), jnp.float32) * 0.1
    m1 = jax.random.normal(ks[4], (C,), jnp.float32) * 0.1
    v1 = jax.random.uniform(ks[5], (C,), jnp.float32, 0.5, 1.5)

    w2 = jax.random.normal(ks[6], (C, C, 3, 3), jnp.float32) * 0.1
    g2 = jax.random.uniform(ks[7], (C,), jnp.float32, 0.5, 1.5)
    be2 = jax.random.normal(ks[8], (C,), jnp.float32) * 0.1
    m2 = jax.random.normal(ks[9], (C,), jnp.float32) * 0.1
    v2 = jax.random.uniform(ks[10], (C,), jnp.float32, 0.5, 1.5)

    params = (w1, g1, be1, m1, v1, w2, g2, be2, m2, v2)

    ref = jax.block_until_ready(basic_block_reference(x, params))

    # Tight check: all-f32 path matches the PyTorch-equivalent reference.
    out_f32 = jax.block_until_ready(
        basic_block_forward(x, params, compute_dtype=jnp.float32))
    np.testing.assert_allclose(np.asarray(out_f32), np.asarray(ref),
                               rtol=1e-4, atol=2e-4)

    # Default mixed-precision path (bf16 operands / bf16-sourced residual, f32 accum).
    out_bf16 = jax.block_until_ready(basic_block_forward(x, params))
    np.testing.assert_allclose(np.asarray(out_bf16), np.asarray(ref),
                               rtol=5e-2, atol=1e-1)

    print("KERNEL_OK")
</pallas_src>

<mosaic_0001>
module attributes {stable_mosaic.version = 11 : i64} {
  func.func @kernel(%arg0: i32, %arg1: memref<1x256x8xf32, #tpu.memory_space<vmem>>, %arg2: memref<72x8xf32, #tpu.memory_space<vmem>>, %arg3: memref<1x8xf32, #tpu.memory_space<vmem>>, %arg4: memref<72x8xf32, #tpu.memory_space<vmem>>, %arg5: memref<1x8xf32, #tpu.memory_space<vmem>>, %arg6: memref<1x256x8xf32, #tpu.memory_space<vmem>>, %arg7: memref<320x8xf32, #tpu.memory_space<vmem>>, %arg8: memref<320x8xf32, #tpu.memory_space<vmem>>, %arg9: memref<256x72xf32, #tpu.memory_space<vmem>>, %arg10: memref<256x72xf32, #tpu.memory_space<vmem>>) attributes {dimension_semantics = [#tpu.dimension_semantics<parallel>], iteration_bounds = array<i64: 2>, scalar_prefetch = 0 : i64, scratch_operands = 4 : i64, tpu.core_type = #tpu.core_type<tc>, window_params = [{transform_indices = @transform_0, window_bounds = array<i64: 1, 256, 8>}, {pipeline_mode = #tpu.pipeline_mode<synchronous>, transform_indices = @transform_1, window_bounds = array<i64: 72, 8>}, {pipeline_mode = #tpu.pipeline_mode<synchronous>, transform_indices = @transform_2, window_bounds = array<i64: 1, 8>}, {pipeline_mode = #tpu.pipeline_mode<synchronous>, transform_indices = @transform_3, window_bounds = array<i64: 72, 8>}, {pipeline_mode = #tpu.pipeline_mode<synchronous>, transform_indices = @transform_4, window_bounds = array<i64: 1, 8>}, {transform_indices = @transform_5, window_bounds = array<i64: 1, 256, 8>}]} {
    %cst = arith.constant 0.000000e+00 : f32
    %0 = vector.broadcast %cst : f32 to vector<32x8xf32>
    %c0 = arith.constant 0 : index
    %c0_0 = arith.constant 0 : index
    %1 = vector.load %arg7[%c0, %c0_0] : memref<320x8xf32, #tpu.memory_space<vmem>>, vector<32x8xf32>
    tpu.vector_store %arg7[%c0, %c0_0], %0 {strides = array<i32>} : memref<320x8xf32, #tpu.memory_space<vmem>>, vector<32x8xf32>,
    %cst_1 = arith.constant 0.000000e+00 : f32
    %2 = vector.broadcast %cst_1 : f32 to vector<32x8xf32>
    %c288 = arith.constant 288 : index
    %c0_2 = arith.constant 0 : index
    %3 = vector.load %arg7[%c288, %c0_2] : memref<320x8xf32, #tpu.memory_space<vmem>>, vector<32x8xf32>
    tpu.vector_store %arg7[%c288, %c0_2], %2 {strides = array<i32>} : memref<320x8xf32, #tpu.memory_space<vmem>>, vector<32x8xf32>,
    %cst_3 = arith.constant 0.000000e+00 : f32
    %4 = vector.broadcast %cst_3 : f32 to vector<32x8xf32>
    %c0_4 = arith.constant 0 : index
    %c0_5 = arith.constant 0 : index
    %5 = vector.load %arg8[%c0_4, %c0_5] : memref<320x8xf32, #tpu.memory_space<vmem>>, vector<32x8xf32>
    tpu.vector_store %arg8[%c0_4, %c0_5], %4 {strides = array<i32>} : memref<320x8xf32, #tpu.memory_space<vmem>>, vector<32x8xf32>,
    %cst_6 = arith.constant 0.000000e+00 : f32
    %6 = vector.broadcast %cst_6 : f32 to vector<32x8xf32>
    %c288_7 = arith.constant 288 : index
    %c0_8 = arith.constant 0 : index
    %7 = vector.load %arg8[%c288_7, %c0_8] : memref<320x8xf32, #tpu.memory_space<vmem>>, vector<32x8xf32>
    tpu.vector_store %arg8[%c288_7, %c0_8], %6 {strides = array<i32>} : memref<320x8xf32, #tpu.memory_space<vmem>>, vector<32x8xf32>,
    %c0_9 = arith.constant 0 : index
    %c0_10 = arith.constant 0 : index
    %c0_11 = arith.constant 0 : index
    %8 = vector.load %arg1[%c0_9, %c0_10, %c0_11] : memref<1x256x8xf32, #tpu.memory_space<vmem>>, vector<1x256x8xf32>
    %9 = vector.shape_cast %8 : vector<1x256x8xf32> to vector<256x8xf32>
    %c32 = arith.constant 32 : index
    %c0_12 = arith.constant 0 : index
    %10 = vector.load %arg7[%c32, %c0_12] : memref<320x8xf32, #tpu.memory_space<vmem>>, vector<256x8xf32>
    tpu.vector_store %arg7[%c32, %c0_12], %9 {strides = array<i32>} : memref<320x8xf32, #tpu.memory_space<vmem>>, vector<256x8xf32>,
    %11 = tpu.iota {dimensions = array<i32: 0>} : vector<256x1xi32>
    %c16_i32 = arith.constant 16 : i32
    %c0_i32 = arith.constant 0 : i32
    %12 = arith.cmpi eq, %c16_i32, %c0_i32 : i32
    %c1_i32 = arith.constant 1 : i32
    %13 = arith.select %12, %c1_i32, %c16_i32 : i32
    %14 = vector.broadcast %13 : i32 to vector<256x1xi32>
    %15 = arith.remsi %11, %14 : vector<256x1xi32>
    %c0_i32_13 = arith.constant 0 : i32
    %16 = vector.broadcast %c0_i32_13 : i32 to vector<256x1xi32>
    %17 = arith.cmpi ne, %15, %16 : vector<256x1xi32>
    %c0_i32_14 = arith.constant 0 : i32
    %18 = vector.broadcast %c0_i32_14 : i32 to vector<256x1xi32>
    %19 = arith.cmpi slt, %15, %18 : vector<256x1xi32>
    %c0_i32_15 = arith.constant 0 : i32
    %20 = arith.cmpi slt, %13, %c0_i32_15 : i32
    %21 = vector.broadcast %20 : i1 to vector<256x1xi1>
    %22 = vector.broadcast %21 : vector<256x1xi1> to vector<256x1xi1>
    %23 = arith.xori %19, %22 : vector<256x1xi1>
    %24 = arith.andi %23, %17 : vector<256x1xi1>
    %25 = vector.broadcast %13 : i32 to vector<256x1xi32>
    %26 = arith.addi %15, %25 : vector<256x1xi32>
    %27 = arith.select %24, %26, %15 : vector<256x1xi1>, vector<256x1xi32>
    %c0_i32_16 = arith.constant 0 : i32
    %28 = vector.broadcast %c0_i32_16 : i32 to vector<256x1xi32>
    %29 = arith.cmpi ne, %27, %28 : vector<256x1xi32>
    %c15_i32 = arith.constant 15 : i32
    %30 = vector.broadcast %c15_i32 : i32 to vector<256x1xi32>
    %31 = arith.cmpi ne, %27, %30 : vector<256x1xi32>
    %c15 = arith.constant 15 : index
    %c0_17 = arith.constant 0 : index
    %32 = vector.load %arg7[%c15, %c0_17] : memref<320x8xf32, #tpu.memory_space<vmem>>, vector<256x8xf32>
    %cst_18 = arith.constant 0.000000e+00 : f32
    %33 = vector.broadcast %cst_18 : f32 to vector<256x8xf32>
    %34 = vector.shape_cast %29 : vector<256x1xi1> to vector<256x1xi1>
    %35 = vector.broadcast %34 : vector<256x1xi1> to vector<256x8xi1>
    %36 = arith.select %35, %32, %33 : vector<256x8xi1>, vector<256x8xf32>
    %c0_19 = arith.constant 0 : index
    %c0_20 = arith.constant 0 : index
    %37 = vector.load %arg9[%c0_19, %c0_20] : memref<256x72xf32, #tpu.memory_space<vmem>>, vector<256x8xf32>
    tpu.vector_store %arg9[%c0_19, %c0_20], %36 {strides = array<i32>} : memref<256x72xf32, #tpu.memory_space<vmem>>, vector<256x8xf32>,
    %c16 = arith.constant 16 : index
    %c0_21 = arith.constant 0 : index
    %38 = vector.load %arg7[%c16, %c0_21] : memref<320x8xf32, #tpu.memory_space<vmem>>, vector<256x8xf32>
    %c0_22 = arith.constant 0 : index
    %c8 = arith.constant 8 : index
    %39 = vector.load %arg9[%c0_22, %c8] : memref<256x72xf32, #tpu.memory_space<vmem>>, vector<256x8xf32>
    tpu.vector_store %arg9[%c0_22, %c8], %38 {strides = array<i32>} : memref<256x72xf32, #tpu.memory_space<vmem>>, vector<256x8xf32>,
    %c17 = arith.constant 17 : index
    %c0_23 = arith.constant 0 : index
    %40 = vector.load %arg7[%c17, %c0_23] : memref<320x8xf32, #tpu.memory_space<vmem>>, vector<256x8xf32>
    %cst_24 = arith.constant 0.000000e+00 : f32
    %41 = vector.broadcast %cst_24 : f32 to vector<256x8xf32>
    %42 = vector.shape_cast %31 : vector<256x1xi1> to vector<256x1xi1>
    %43 = vector.broadcast %42 : vector<256x1xi1> to vector<256x8xi1>
    %44 = arith.select %43, %40, %41 : vector<256x8xi1>, vector<256x8xf32>
    %c0_25 = arith.constant 0 : index
    %c16_26 = arith.constant 16 : index
    %45 = vector.load %arg9[%c0_25, %c16_26] : memref<256x72xf32, #tpu.memory_space<vmem>>, vector<256x8xf32>
    tpu.vector_store %arg9[%c0_25, %c16_26], %44 {strides = array<i32>} : memref<256x72xf32, #tpu.memory_space<vmem>>, vector<256x8xf32>,
    %c31 = arith.constant 31 : index
    %c0_27 = arith.constant 0 : index
    %46 = vector.load %arg7[%c31, %c0_27] : memref<320x8xf32, #tpu.memory_space<vmem>>, vector<256x8xf32>
    %cst_28 = arith.constant 0.000000e+00 : f32
    %47 = vector.broadcast %cst_28 : f32 to vector<256x8xf32>
    %48 = vector.shape_cast %29 : vector<256x1xi1> to vector<256x1xi1>
    %49 = vector.broadcast %48 : vector<256x1xi1> to vector<256x8xi1>
    %50 = arith.select %49, %46, %47 : vector<256x8xi1>, vector<256x8xf32>
    %c0_29 = arith.constant 0 : index
    %c24 = arith.constant 24 : index
    %51 = vector.load %arg9[%c0_29, %c24] : memref<256x72xf32, #tpu.memory_space<vmem>>, vector<256x8xf32>
    tpu.vector_store %arg9[%c0_29, %c24], %50 {strides = array<i32>} : memref<256x72xf32, #tpu.memory_space<vmem>>, vector<256x8xf32>,
    %c32_30 = arith.constant 32 : index
    %c0_31 = arith.constant 0 : index
    %52 = vector.load %arg7[%c32_30, %c0_31] : memref<320x8xf32, #tpu.memory_space<vmem>>, vector<256x8xf32>
    %c0_32 = arith.constant 0 : index
    %c32_33 = arith.constant 32 : index
    %53 = vector.load %arg9[%c0_32, %c32_33] : memref<256x72xf32, #tpu.memory_space<vmem>>, vector<256x8xf32>
    tpu.vector_store %arg9[%c0_32, %c32_33], %52 {strides = array<i32>} : memref<256x72xf32, #tpu.memory_space<vmem>>, vector<256x8xf32>,
    %c33 = arith.constant 33 : index
    %c0_34 = arith.constant 0 : index
    %54 = vector.load %arg7[%c33, %c0_34] : memref<320x8xf32, #tpu.memory_space<vmem>>, vector<256x8xf32>
    %cst_35 = arith.constant 0.000000e+00 : f32
    %55 = vector.broadcast %cst_35 : f32 to vector<256x8xf32>
    %56 = vector.shape_cast %31 : vector<256x1xi1> to vector<256x1xi1>
    %57 = vector.broadcast %56 : vector<256x1xi1> to vector<256x8xi1>
    %58 = arith.select %57, %54, %55 : vector<256x8xi1>, vector<256x8xf32>
    %c0_36 = arith.constant 0 : index
    %c40 = arith.constant 40 : index
    %59 = vector.load %arg9[%c0_36, %c40] : memref<256x72xf32, #tpu.memory_space<vmem>>, vector<256x8xf32>
    tpu.vector_store %arg9[%c0_36, %c40], %58 {strides = array<i32>} : memref<256x72xf32, #tpu.memory_space<vmem>>, vector<256x8xf32>,
    %c47 = arith.constant 47 : index
    %c0_37 = arith.constant 0 : index
    %60 = vector.load %arg7[%c47, %c0_37] : memref<320x8xf32, #tpu.memory_space<vmem>>, vector<256x8xf32>
    %cst_38 = arith.constant 0.000000e+00 : f32
    %61 = vector.broadcast %cst_38 : f32 to vector<256x8xf32>
    %62 = vector.shape_cast %29 : vector<256x1xi1> to vector<256x1xi1>
    %63 = vector.broadcast %62 : vector<256x1xi1> to vector<256x8xi1>
    %64 = arith.select %63, %60, %61 : vector<256x8xi1>, vector<256x8xf32>
    %c0_39 = arith.constant 0 : index
    %c48 = arith.constant 48 : index
    %65 = vector.load %arg9[%c0_39, %c48] : memref<256x72xf32, #tpu.memory_space<vmem>>, vector<256x8xf32>
    tpu.vector_store %arg9[%c0_39, %c48], %64 {strides = array<i32>} : memref<256x72xf32, #tpu.memory_space<vmem>>, vector<256x8xf32>,
    %c48_40 = arith.constant 48 : index
    %c0_41 = arith.constant 0 : index
    %66 = vector.load %arg7[%c48_40, %c0_41] : memref<320x8xf32, #tpu.memory_space<vmem>>, vector<256x8xf32>
    %c0_42 = arith.constant 0 : index
    %c56 = arith.constant 56 : index
    %67 = vector.load %arg9[%c0_42, %c56] : memref<256x72xf32, #tpu.memory_space<vmem>>, vector<256x8xf32>
    tpu.vector_store %arg9[%c0_42, %c56], %66 {strides = array<i32>} : memref<256x72xf32, #tpu.memory_space<vmem>>, vector<256x8xf32>,
    %c49 = arith.constant 49 : index
    %c0_43 = arith.constant 0 : index
    %68 = vector.load %arg7[%c49, %c0_43] : memref<320x8xf32, #tpu.memory_space<vmem>>, vector<256x8xf32>
    %cst_44 = arith.constant 0.000000e+00 : f32
    %69 = vector.broadcast %cst_44 : f32 to vector<256x8xf32>
    %70 = vector.shape_cast %31 : vector<256x1xi1> to vector<256x1xi1>
    %71 = vector.broadcast %70 : vector<256x1xi1> to vector<256x8xi1>
    %72 = arith.select %71, %68, %69 : vector<256x8xi1>, vector<256x8xf32>
    %c0_45 = arith.constant 0 : index
    %c64 = arith.constant 64 : index
    %73 = vector.load %arg9[%c0_45, %c64] : memref<256x72xf32, #tpu.memory_space<vmem>>, vector<256x8xf32>
    tpu.vector_store %arg9[%c0_45, %c64], %72 {strides = array<i32>} : memref<256x72xf32, #tpu.memory_space<vmem>>, vector<256x8xf32>,
    %c0_46 = arith.constant 0 : index
    %c0_47 = arith.constant 0 : index
    %74 = vector.load %arg9[%c0_46, %c0_47] : memref<256x72xf32, #tpu.memory_space<vmem>>, vector<256x72xf32>
    %c0_48 = arith.constant 0 : index
    %c0_49 = arith.constant 0 : index
    %75 = vector.load %arg2[%c0_48, %c0_49] : memref<72x8xf32, #tpu.memory_space<vmem>>, vector<72x8xf32>
    %cst_50 = arith.constant dense<0.000000e+00> : vector<256x8xf32>
    %76 = tpu.matmul %74, %75, %cst_50 {dimension_numbers = #tpu.dot_dimension_numbers<[1], [0], [0], [1], [0, 0, 1, 1], [], []>} : vector<256x72xf32>, vector<72x8xf32>, vector<256x8xf32> -> vector<256x8xf32>
    %c0_51 = arith.constant 0 : index
    %c0_52 = arith.constant 0 : index
    %77 = vector.load %arg3[%c0_51, %c0_52] : memref<1x8xf32, #tpu.memory_space<vmem>>, vector<1x8xf32>
    %78 = vector.broadcast %77 : vector<1x8xf32> to vector<256x8xf32>
    %79 = arith.addf %76, %78 : vector<256x8xf32>
    %cst_53 = arith.constant 0.000000e+00 : f32
    %80 = vector.broadcast %cst_53 : f32 to vector<256x8xf32>
    %81 = arith.maximumf %79, %80 : vector<256x8xf32>
    %c32_54 = arith.constant 32 : index
    %c0_55 = arith.constant 0 : index
    %82 = vector.load %arg8[%c32_54, %c0_55] : memref<320x8xf32, #tpu.memory_space<vmem>>, vector<256x8xf32>
    tpu.vector_store %arg8[%c32_54, %c0_55], %81 {strides = array<i32>} : memref<320x8xf32, #tpu.memory_space<vmem>>, vector<256x8xf32>,
    %c15_56 = arith.constant 15 : index
    %c0_57 = arith.constant 0 : index
    %83 = vector.load %arg8[%c15_56, %c0_57] : memref<320x8xf32, #tpu.memory_space<vmem>>, vector<256x8xf32>
    %cst_58 = arith.constant 0.000000e+00 : f32
    %84 = vector.broadcast %cst_58 : f32 to vector<256x8xf32>
    %85 = vector.shape_cast %29 : vector<256x1xi1> to vector<256x1xi1>
    %86 = vector.broadcast %85 : vector<256x1xi1> to vector<256x8xi1>
    %87 = arith.select %86, %83, %84 : vector<256x8xi1>, vector<256x8xf32>
    %c0_59 = arith.constant 0 : index
    %c0_60 = arith.constant 0 : index
    %88 = vector.load %arg10[%c0_59, %c0_60] : memref<256x72xf32, #tpu.memory_space<vmem>>, vector<256x8xf32>
    tpu.vector_store %arg10[%c0_59, %c0_60], %87 {strides = array<i32>} : memref<256x72xf32, #tpu.memory_space<vmem>>, vector<256x8xf32>,
    %c16_61 = arith.constant 16 : index
    %c0_62 = arith.constant 0 : index
    %89 = vector.load %arg8[%c16_61, %c0_62] : memref<320x8xf32, #tpu.memory_space<vmem>>, vector<256x8xf32>
    %c0_63 = arith.constant 0 : index
    %c8_64 = arith.constant 8 : index
    %90 = vector.load %arg10[%c0_63, %c8_64] : memref<256x72xf32, #tpu.memory_space<vmem>>, vector<256x8xf32>
    tpu.vector_store %arg10[%c0_63, %c8_64], %89 {strides = array<i32>} : memref<256x72xf32, #tpu.memory_space<vmem>>, vector<256x8xf32>,
    %c17_65 = arith.constant 17 : index
    %c0_66 = arith.constant 0 : index
    %91 = vector.load %arg8[%c17_65, %c0_66] : memref<320x8xf32, #tpu.memory_space<vmem>>, vector<256x8xf32>
    %cst_67 = arith.constant 0.000000e+00 : f32
    %92 = vector.broadcast %cst_67 : f32 to vector<256x8xf32>
    %93 = vector.shape_cast %31 : vector<256x1xi1> to vector<256x1xi1>
    %94 = vector.broadcast %93 : vector<256x1xi1> to vector<256x8xi1>
    %95 = arith.select %94, %91, %92 : vector<256x8xi1>, vector<256x8xf32>
    %c0_68 = arith.constant 0 : index
    %c16_69 = arith.constant 16 : index
    %96 = vector.load %arg10[%c0_68, %c16_69] : memref<256x72xf32, #tpu.memory_space<vmem>>, vector<256x8xf32>
    tpu.vector_store %arg10[%c0_68, %c16_69], %95 {strides = array<i32>} : memref<256x72xf32, #tpu.memory_space<vmem>>, vector<256x8xf32>,
    %c31_70 = arith.constant 31 : index
    %c0_71 = arith.constant 0 : index
    %97 = vector.load %arg8[%c31_70, %c0_71] : memref<320x8xf32, #tpu.memory_space<vmem>>, vector<256x8xf32>
    %cst_72 = arith.constant 0.000000e+00 : f32
    %98 = vector.broadcast %cst_72 : f32 to vector<256x8xf32>
    %99 = vector.shape_cast %29 : vector<256x1xi1> to vector<256x1xi1>
    %100 = vector.broadcast %99 : vector<256x1xi1> to vector<256x8xi1>
    %101 = arith.select %100, %97, %98 : vector<256x8xi1>, vector<256x8xf32>
    %c0_73 = arith.constant 0 : index
    %c24_74 = arith.constant 24 : index
    %102 = vector.load %arg10[%c0_73, %c24_74] : memref<256x72xf32, #tpu.memory_space<vmem>>, vector<256x8xf32>
    tpu.vector_store %arg10[%c0_73, %c24_74], %101 {strides = array<i32>} : memref<256x72xf32, #tpu.memory_space<vmem>>, vector<256x8xf32>,
    %c32_75 = arith.constant 32 : index
    %c0_76 = arith.constant 0 : index
    %103 = vector.load %arg8[%c32_75, %c0_76] : memref<320x8xf32, #tpu.memory_space<vmem>>, vector<256x8xf32>
    %c0_77 = arith.constant 0 : index
    %c32_78 = arith.constant 32 : index
    %104 = vector.load %arg10[%c0_77, %c32_78] : memref<256x72xf32, #tpu.memory_space<vmem>>, vector<256x8xf32>
    tpu.vector_store %arg10[%c0_77, %c32_78], %103 {strides = array<i32>} : memref<256x72xf32, #tpu.memory_space<vmem>>, vector<256x8xf32>,
    %c33_79 = arith.constant 33 : index
    %c0_80 = arith.constant 0 : index
    %105 = vector.load %arg8[%c33_79, %c0_80] : memref<320x8xf32, #tpu.memory_space<vmem>>, vector<256x8xf32>
    %cst_81 = arith.constant 0.000000e+00 : f32
    %106 = vector.broadcast %cst_81 : f32 to vector<256x8xf32>
    %107 = vector.shape_cast %31 : vector<256x1xi1> to vector<256x1xi1>
    %108 = vector.broadcast %107 : vector<256x1xi1> to vector<256x8xi1>
    %109 = arith.select %108, %105, %106 : vector<256x8xi1>, vector<256x8xf32>
    %c0_82 = arith.constant 0 : index
    %c40_83 = arith.constant 40 : index
    %110 = vector.load %arg10[%c0_82, %c40_83] : memref<256x72xf32, #tpu.memory_space<vmem>>, vector<256x8xf32>
    tpu.vector_store %arg10[%c0_82, %c40_83], %109 {strides = array<i32>} : memref<256x72xf32, #tpu.memory_space<vmem>>, vector<256x8xf32>,
    %c47_84 = arith.constant 47 : index
    %c0_85 = arith.constant 0 : index
    %111 = vector.load %arg8[%c47_84, %c0_85] : memref<320x8xf32, #tpu.memory_space<vmem>>, vector<256x8xf32>
    %cst_86 = arith.constant 0.000000e+00 : f32
    %112 = vector.broadcast %cst_86 : f32 to vector<256x8xf32>
    %113 = vector.shape_cast %29 : vector<256x1xi1> to vector<256x1xi1>
    %114 = vector.broadcast %113 : vector<256x1xi1> to vector<256x8xi1>
    %115 = arith.select %114, %111, %112 : vector<256x8xi1>, vector<256x8xf32>
    %c0_87 = arith.constant 0 : index
    %c48_88 = arith.constant 48 : index
    %116 = vector.load %arg10[%c0_87, %c48_88] : memref<256x72xf32, #tpu.memory_space<vmem>>, vector<256x8xf32>
    tpu.vector_store %arg10[%c0_87, %c48_88], %115 {strides = array<i32>} : memref<256x72xf32, #tpu.memory_space<vmem>>, vector<256x8xf32>,
    %c48_89 = arith.constant 48 : index
    %c0_90 = arith.constant 0 : index
    %117 = vector.load %arg8[%c48_89, %c0_90] : memref<320x8xf32, #tpu.memory_space<vmem>>, vector<256x8xf32>
    %c0_91 = arith.constant 0 : index
    %c56_92 = arith.constant 56 : index
    %118 = vector.load %arg10[%c0_91, %c56_92] : memref<256x72xf32, #tpu.memory_space<vmem>>, vector<256x8xf32>
    tpu.vector_store %arg10[%c0_91, %c56_92], %117 {strides = array<i32>} : memref<256x72xf32, #tpu.memory_space<vmem>>, vector<256x8xf32>,
    %c49_93 = arith.constant 49 : index
    %c0_94 = arith.constant 0 : index
    %119 = vector.load %arg8[%c49_93, %c0_94] : memref<320x8xf32, #tpu.memory_space<vmem>>, vector<256x8xf32>
    %cst_95 = arith.constant 0.000000e+00 : f32
    %120 = vector.broadcast %cst_95 : f32 to vector<256x8xf32>
    %121 = vector.shape_cast %31 : vector<256x1xi1> to vector<256x1xi1>
    %122 = vector.broadcast %121 : vector<256x1xi1> to vector<256x8xi1>
    %123 = arith.select %122, %119, %120 : vector<256x8xi1>, vector<256x8xf32>
    %c0_96 = arith.constant 0 : index
    %c64_97 = arith.constant 64 : index
    %124 = vector.load %arg10[%c0_96, %c64_97] : memref<256x72xf32, #tpu.memory_space<vmem>>, vector<256x8xf32>
    tpu.vector_store %arg10[%c0_96, %c64_97], %123 {strides = array<i32>} : memref<256x72xf32, #tpu.memory_space<vmem>>, vector<256x8xf32>,
    %c0_98 = arith.constant 0 : index
    %c0_99 = arith.constant 0 : index
    %125 = vector.load %arg10[%c0_98, %c0_99] : memref<256x72xf32, #tpu.memory_space<vmem>>, vector<256x72xf32>
    %c0_100 = arith.constant 0 : index
    %c0_101 = arith.constant 0 : index
    %126 = vector.load %arg4[%c0_100, %c0_101] : memref<72x8xf32, #tpu.memory_space<vmem>>, vector<72x8xf32>
    %cst_102 = arith.constant dense<0.000000e+00> : vector<256x8xf32>
    %127 = tpu.matmul %125, %126, %cst_102 {dimension_numbers = #tpu.dot_dimension_numbers<[1], [0], [0], [1], [0, 0, 1, 1], [], []>} : vector<256x72xf32>, vector<72x8xf32>, vector<256x8xf32> -> vector<256x8xf32>
    %c0_103 = arith.constant 0 : index
    %c0_104 = arith.constant 0 : index
    %128 = vector.load %arg5[%c0_103, %c0_104] : memref<1x8xf32, #tpu.memory_space<vmem>>, vector<1x8xf32>
    %129 = vector.broadcast %128 : vector<1x8xf32> to vector<256x8xf32>
    %130 = arith.addf %127, %129 : vector<256x8xf32>
    %c0_105 = arith.constant 0 : index
    %c0_106 = arith.constant 0 : index
    %c0_107 = arith.constant 0 : index
    %131 = vector.load %arg1[%c0_105, %c0_106, %c0_107] : memref<1x256x8xf32, #tpu.memory_space<vmem>>, vector<1x256x8xf32>
    %132 = vector.shape_cast %131 : vector<1x256x8xf32> to vector<256x8xf32>
    %133 = arith.addf %130, %132 : vector<256x8xf32>
    %cst_108 = arith.constant 0.000000e+00 : f32
    %134 = vector.broadcast %cst_108 : f32 to vector<256x8xf32>
    %135 = arith.maximumf %133, %134 : vector<256x8xf32>
    %c0_109 = arith.constant 0 : index
    %c0_110 = arith.constant 0 : index
    %c0_111 = arith.constant 0 : index
    %136 = vector.load %arg6[%c0_109, %c0_110, %c0_111] : memref<1x256x8xf32, #tpu.memory_space<vmem>>, vector<1x256x8xf32>
    %137 = vector.shape_cast %136 : vector<1x256x8xf32> to vector<256x8xf32>
    %138 = vector.shape_cast %135 : vector<256x8xf32> to vector<1x256x8xf32>
    tpu.vector_store %arg6[%c0_109, %c0_110, %c0_111], %138 {strides = array<i32>} : memref<1x256x8xf32, #tpu.memory_space<vmem>>, vector<1x256x8xf32>,
    return
  }
  func.func @transform_0(%arg0: i32) -> (i32, i32, i32) {
    %c0_i32 = arith.constant 0 : i32
    %c0_i32_0 = arith.constant 0 : i32
    %c0_i32_1 = arith.constant 0 : i32
    return %arg0, %c0_i32, %c0_i32_0 : i32, i32, i32
  }
  func.func @transform_1(%arg0: i32) -> (i32, i32) {
    %c0_i32 = arith.constant 0 : i32
    %c0_i32_0 = arith.constant 0 : i32
    %c0_i32_1 = arith.constant 0 : i32
    return %c0_i32, %c0_i32_0 : i32, i32
  }
  func.func @transform_2(%arg0: i32) -> (i32, i32) {
    %c0_i32 = arith.constant 0 : i32
    %c0_i32_0 = arith.constant 0 : i32
    %c0_i32_1 = arith.constant 0 : i32
    return %c0_i32, %c0_i32_0 : i32, i32
  }
  func.func @transform_3(%arg0: i32) -> (i32, i32) {
    %c0_i32 = arith.constant 0 : i32
    %c0_i32_0 = arith.constant 0 : i32
    %c0_i32_1 = arith.constant 0 : i32
    return %c0_i32, %c0_i32_0 : i32, i32
  }
  func.func @transform_4(%arg0: i32) -> (i32, i32) {
    %c0_i32 = arith.constant 0 : i32
    %c0_i32_0 = arith.constant 0 : i32
    %c0_i32_1 = arith.constant 0 : i32
    return %c0_i32, %c0_i32_0 : i32, i32
  }
  func.func @transform_5(%arg0: i32) -> (i32, i32, i32) {
    %c0_i32 = arith.constant 0 : i32
    %c0_i32_0 = arith.constant 0 : i32
    %c0_i32_1 = arith.constant 0 : i32
    return %arg0, %c0_i32, %c0_i32_0 : i32, i32, i32
  }
}

</mosaic_0001>

<llo_original>
// kernel: tpu_custom_call.1
$region0: #{tpu_custom_call.1}
  #allocation0 [shape = 'u32[]', space=smem, size = 0x4, offset = 0x4, fixed_abs, tag = 'smem constant byte address 0x4 - core index']
  #allocation1 [shape = 'u32[72,128]{1,0:T(1,128)}', space=vmem, size = 0x9000, scoped, tag = 'internal scratch']
  #allocation2 [shape = 'f32[320,8]{1,0:T(8,128)}', space=vmem, size = 0x28000, scoped, tag = 'scratch operand']
  #allocation3 [shape = 'f32[320,8]{1,0:T(8,128)}', space=vmem, size = 0x28000, scoped, tag = 'scratch operand']
  #allocation4 [shape = 'f32[256,72]{1,0:T(8,128)}', space=vmem, size = 0x20000, scoped, tag = 'scratch operand']
  #allocation5 [shape = 'f32[256,72]{1,0:T(8,128)}', space=vmem, size = 0x20000, scoped, tag = 'scratch operand']
  %s0 = inlined_call_operand.vmem [shape: f32[2,256,8], index: 0, kind: input, shape index: {}]
  %s1 = inlined_call_operand.vmem [shape: f32[72,8], index: 1, kind: input, shape index: {}]
  %s2 = inlined_call_operand.vmem [shape: f32[1,8], index: 2, kind: input, shape index: {}]
  %s3 = inlined_call_operand.vmem [shape: f32[72,8], index: 3, kind: input, shape index: {}]
  %s4 = inlined_call_operand.vmem [shape: f32[1,8], index: 4, kind: input, shape index: {}]
  %s5 = inlined_call_operand.vmem [shape: f32[2,256,8], index: 5, kind: output, shape index: {}]
  %s6 = sld [smem:[#allocation0]]
  $region53: #{tpu_custom_call.1} parent=0
    _
  %s8 = ssub.s32 1, %s6
  %s9 = scalar_select 0, %s8, %s6
  loop: start=0, step=1, limit=4
  $region2: #{tpu_custom_call.1} parent=0 // loop_pre_header
    _
  $region3: #{tpu_custom_call.1} parent=0 // loop_header
    %s11 = sphi 0, %s15
    %p12 = scmp.ge.s32.totalorder %s11, 4
    %s21 = sphi 0, %s23
    %s24 = sphi 0, %s21
    %s25 = sphi 0, %s24
    %s41 = sphi 0, %s25
    %s45 = sphi 0, %s45
    %s47 = sphi 0, %s45
    %s48 = sphi 0, %s47
    %s62 = sphi 0, %s48
    %s66 = sphi 0, %s66
    %s68 = sphi 0, %s66
    %s69 = sphi 0, %s68
    %s83 = sphi 0, %s69
    %s87 = sphi 0, %s87
    %s89 = sphi 0, %s87
    %s90 = sphi 0, %s89
    %s104 = sphi 0, %s90
    %s108 = sphi 0, %s108
    %s110 = sphi 0, %s108
    %s111 = sphi 0, %s110
    %s125 = sphi 0, %s111
    %s131 = sphi 0, %s133
    %s134 = sphi 0, %s131
    %s135 = sphi 0, %s134
    %s151 = sphi 0, %s135
  $region4: #{tpu_custom_call.1} parent=0 // loop_header_branch
    %14 = sbr.rel (%p12) target = $region8
  $region5: #{tpu_custom_call.1} parent=0 // loop_body
    %s16 = ssub.s32 %s11, 1
    %s17 = ssub.s32 %s11, 2
    %s18 = sadd.s32 %s11, 1
    %s19 = ssub.s32 %s11, %s18
    %p20 = scmp.eq.s32.totalorder %s19, 0
    %s22 = sadd.s32 %s21, 1
    %s23 = scalar_select %p20, %s21, %s22
    %p26 = pneg %p20
    %p27 = scmp.eq.s32.totalorder %s11, 1
    %p28 = por %p26, %p27
    %p29 = scmp.ne.s32.totalorder %s21, %s24
    %p30 = scmp.eq.s32.totalorder %s11, 0
    %p31 = por %p29, %p30
    %p32 = scmp.ne.s32.totalorder %s21, %s24
    %p33 = scmp.eq.s32.totalorder %s16, 1
    %p34 = por %p32, %p33
    %p35 = scmp.ne.s32.totalorder %s24, %s25
    %p36 = scmp.eq.s32.totalorder %s16, 0
    %p37 = por %p35, %p36
    %p38 = scmp.ne.s32.totalorder %s24, %s25
    %p39 = scmp.eq.s32.totalorder %s17, 1
    %p40 = por %p38, %p39
    %p42 = scmp.ne.s32.totalorder %s25, %s41
    %p43 = scmp.eq.s32.totalorder %s17, 0
    %p44 = por %p42, %p43
    %s46 = sadd.s32 %s45, 1
    %p49 = scmp.eq.s32.totalorder %s11, 1
    %p50 = scmp.ne.s32.totalorder %s45, %s47
    %p51 = scmp.eq.s32.totalorder %s11, 0
    %p52 = por %p50, %p51
    %p53 = scmp.ne.s32.totalorder %s45, %s47
    %p54 = scmp.eq.s32.totalorder %s16, 1
    %p55 = por %p53, %p54
    %p56 = scmp.ne.s32.totalorder %s47, %s48
    %p57 = scmp.eq.s32.totalorder %s16, 0
    %p58 = por %p56, %p57
    %p59 = scmp.ne.s32.totalorder %s47, %s48
    %p60 = scmp.eq.s32.totalorder %s17, 1
    %p61 = por %p59, %p60
    %p63 = scmp.ne.s32.totalorder %s48, %s62
    %p64 = scmp.eq.s32.totalorder %s17, 0
    %p65 = por %p63, %p64
    %s67 = sadd.s32 %s66, 1
    %p70 = scmp.eq.s32.totalorder %s11, 1
    %p71 = scmp.ne.s32.totalorder %s66, %s68
    %p72 = scmp.eq.s32.totalorder %s11, 0
    %p73 = por %p71, %p72
    %p74 = scmp.ne.s32.totalorder %s66, %s68
    %p75 = scmp.eq.s32.totalorder %s16, 1
    %p76 = por %p74, %p75
    %p77 = scmp.ne.s32.totalorder %s68, %s69
    %p78 = scmp.eq.s32.totalorder %s16, 0
    %p79 = por %p77, %p78
    %p80 = scmp.ne.s32.totalorder %s68, %s69
    %p81 = scmp.eq.s32.totalorder %s17, 1
    %p82 = por %p80, %p81
    %p84 = scmp.ne.s32.totalorder %s69, %s83
    %p85 = scmp.eq.s32.totalorder %s17, 0
    %p86 = por %p84, %p85
    %s88 = sadd.s32 %s87, 1
    %p91 = scmp.eq.s32.totalorder %s11, 1
    %p92 = scmp.ne.s32.totalorder %s87, %s89
    %p93 = scmp.eq.s32.totalorder %s11, 0
    %p94 = por %p92, %p93
    %p95 = scmp.ne.s32.totalorder %s87, %s89
    %p96 = scmp.eq.s32.totalorder %s16, 1
    %p97 = por %p95, %p96
    %p98 = scmp.ne.s32.totalorder %s89, %s90
    %p99 = scmp.eq.s32.totalorder %s16, 0
    %p100 = por %p98, %p99
    %p101 = scmp.ne.s32.totalorder %s89, %s90
    %p102 = scmp.eq.s32.totalorder %s17, 1
    %p103 = por %p101, %p102
    %p105 = scmp.ne.s32.totalorder %s90, %s104
    %p106 = scmp.eq.s32.totalorder %s17, 0
    %p107 = por %p105, %p106
    %s109 = sadd.s32 %s108, 1
    %p112 = scmp.eq.s32.totalorder %s11, 1
    %p113 = scmp.ne.s32.totalorder %s108, %s110
    %p114 = scmp.eq.s32.totalorder %s11, 0
    %p115 = por %p113, %p114
    %p116 = scmp.ne.s32.totalorder %s108, %s110
    %p117 = scmp.eq.s32.totalorder %s16, 1
    %p118 = por %p116, %p117
    %p119 = scmp.ne.s32.totalorder %s110, %s111
    %p120 = scmp.eq.s32.totalorder %s16, 0
    %p121 = por %p119, %p120
    %p122 = scmp.ne.s32.totalorder %s110, %s111
    %p123 = scmp.eq.s32.totalorder %s17, 1
    %p124 = por %p122, %p123
    %p126 = scmp.ne.s32.totalorder %s111, %s125
    %p127 = scmp.eq.s32.totalorder %s17, 0
    %p128 = por %p126, %p127
    %s129 = ssub.s32 %s11, %s18
    %p130 = scmp.eq.s32.totalorder %s129, 0
    %s132 = sadd.s32 %s131, 1
    %s133 = scalar_select %p130, %s131, %s132
    %p136 = pneg %p130
    %p137 = scmp.eq.s32.totalorder %s11, 1
    %p138 = por %p136, %p137
    %p139 = scmp.ne.s32.totalorder %s131, %s134
    %p140 = scmp.eq.s32.totalorder %s11, 0
    %p141 = por %p139, %p140
    %p142 = scmp.ne.s32.totalorder %s131, %s134
    %p143 = scmp.eq.s32.totalorder %s16, 1
    %p144 = por %p142, %p143
    %p145 = scmp.ne.s32.totalorder %s134, %s135
    %p146 = scmp.eq.s32.totalorder %s16, 0
    %p147 = por %p145, %p146
    %p148 = scmp.ne.s32.totalorder %s134, %s135
    %p149 = scmp.eq.s32.totalorder %s17, 1
    %p150 = por %p148, %p149
    %p152 = scmp.ne.s32.totalorder %s135, %s151
    %p153 = scmp.eq.s32.totalorder %s17, 0
    %p154 = por %p152, %p153
    %p155 = scmp.le.s32.totalorder 1, %s11
    %p156 = scmp.lt.s32.totalorder %s11, 3
    %p157 = pnand %p155, %p156
    %p158 = pneg %p157
    // Predicated region
    $region9: #{tpu_custom_call.1} parent=5 // pred_check
      _
    $region10: #{tpu_custom_call.1} parent=5 // pred_check_branch
      %160 = sbr.rel (%p157) target = $region12
    $region11: #{tpu_custom_call.1} parent=5 // pred_region
      %s161 = ssub.s32 %s11, 1
      // Predicated region
      $region13: #{tpu_custom_call.1} parent=11 // pred_check
        %p162 = pneg %p58
      $region14: #{tpu_custom_call.1} parent=11 // pred_check_branch
        %164 = sbr.rel (%p162) target = $region16
      $region15: #{tpu_custom_call.1} parent=11 // pred_region
        _
      $region16: #{tpu_custom_call.1} parent=11 // pred_fallthru
        _
      // Predicated region
      $region17: #{tpu_custom_call.1} parent=11 // pred_check
        %p165 = pneg %p79
      $region18: #{tpu_custom_call.1} parent=11 // pred_check_branch
        %167 = sbr.rel (%p165) target = $region20
      $region19: #{tpu_custom_call.1} parent=11 // pred_region
        _
      $region20: #{tpu_custom_call.1} parent=11 // pred_fallthru
        _
      // Predicated region
      $region21: #{tpu_custom_call.1} parent=11 // pred_check
        %p168 = pneg %p100
      $region22: #{tpu_custom_call.1} parent=11 // pred_check_branch
        %170 = sbr.rel (%p168) target = $region24
      $region23: #{tpu_custom_call.1} parent=11 // pred_region
        _
      $region24: #{tpu_custom_call.1} parent=11 // pred_fallthru
        _
      // Predicated region
      $region25: #{tpu_custom_call.1} parent=11 // pred_check
        %p171 = pneg %p121
      $region26: #{tpu_custom_call.1} parent=11 // pred_check_branch
        %173 = sbr.rel (%p171) target = $region28
      $region27: #{tpu_custom_call.1} parent=11 // pred_region
        _
      $region28: #{tpu_custom_call.1} parent=11 // pred_fallthru
        _
    $region12: #{tpu_custom_call.1} parent=5 // pred_fallthru
      _
    %p174 = scmp.lt.s32.totalorder %s11, 2
    // Predicated region
    $region29: #{tpu_custom_call.1} parent=5 // pred_check
      %p175 = pneg %p174
    $region30: #{tpu_custom_call.1} parent=5 // pred_check_branch
      %177 = sbr.rel (%p175) target = $region32
    $region31: #{tpu_custom_call.1} parent=5 // pred_region
      // Predicated region
      $region33: #{tpu_custom_call.1} parent=31 // pred_check
        %p178 = pneg %p31
      $region34: #{tpu_custom_call.1} parent=31 // pred_check_branch
        %180 = sbr.rel (%p178) target = $region36
      $region35: #{tpu_custom_call.1} parent=31 // pred_region
        %p181 = scmp.lt.s32.totalorder %s11, 1
        %s182 = scalar_select %p181, %s11, 1
        %s183 = smul.addr %s182, 32
        %s184 = smul.addr %s183, 8
        %s185 = scalar_lea.vmem %s0, %s184
      $region36: #{tpu_custom_call.1} parent=31 // pred_fallthru
        _
    $region32: #{tpu_custom_call.1} parent=5 // pred_fallthru
      _
    %p186 = scmp.le.s32.totalorder 1, %s11
    %p187 = scmp.lt.s32.totalorder %s11, 3
    %p188 = pnand %p186, %p187
    %p189 = pneg %p188
    // Predicated region
    $region37: #{tpu_custom_call.1} parent=5 // pred_check
      _
    $region38: #{tpu_custom_call.1} parent=5 // pred_check_branch
      %191 = sbr.rel (%p188) target = $region40
    $region39: #{tpu_custom_call.1} parent=5 // pred_region
      %s192 = ssub.s32 %s11, 1
      %p193 = scmp.lt.s32.totalorder %s16, 1
      %s194 = scalar_select %p193, %s16, 1
      %s195 = smul.addr %s194, 32
      %s196 = smul.addr %s195, 8
      %s197 = scalar_lea.vmem %s0, %s196
      %p198 = pneg %p37
      %p199 = pneg %p34
      %p200 = pneg %p58
      %p201 = pneg %p55
      %p202 = pneg %p79
      %p203 = pneg %p76
      %p204 = pneg %p100
      %p205 = pneg %p97
      %p206 = pneg %p121
      %p207 = pneg %p118
      %p208 = pneg %p147
      %p209 = pneg %p144
      %p210 = scmp.lt.s32.totalorder %s16, 1
      %s211 = scalar_select %p210, %s16, 1
      %s212 = smul.addr %s211, 32
      %s213 = smul.addr %s212, 8
      %s214 = scalar_lea.vmem %s5, %s213
      %p215 = scmp.lt.s32.totalorder %s16, 1
      %s216 = scalar_select %p215, %s16, 1
      %s217 = smul.addr %s216, 32
      %s218 = smul.addr %s217, 8
      %s219 = scalar_lea.vmem %s0, %s218
      %p220 = scmp.lt.s32.totalorder %s16, 1
      %s221 = scalar_select %p220, %s16, 1
      %s222 = smul.addr %s221, 32
      %s223 = smul.addr %s222, 8
      %s224 = scalar_lea.vmem %s5, %s223
      %vm225 = vcmask 64512
      %226 = vst.msk [vmem:[#allocation2] sm:$0xff] %vm225, 0.0
      %227 = vst.msk [vmem:[#allocation2 + $0x8] sm:$0xff] %vm225, 0.0
      %228 = vst.msk [vmem:[#allocation2 + $0x10] sm:$0xff] %vm225, 0.0
      %229 = vst.msk [vmem:[#allocation2 + $0x18] sm:$0xff] %vm225, 0.0
      %230 = vst.msk [vmem:[#allocation2 + $0x120] sm:$0xff] %vm225, 0.0
      %231 = vst.msk [vmem:[#allocation2 + $0x128] sm:$0xff] %vm225, 0.0
      %232 = vst.msk [vmem:[#allocation2 + $0x130] sm:$0xff] %vm225, 0.0
      %233 = vst.msk [vmem:[#allocation2 + $0x138] sm:$0xff] %vm225, 0.0
      %234 = vst.msk [vmem:[#allocation3] sm:$0xff] %vm225, 0.0
      %235 = vst.msk [vmem:[#allocation3 + $0x8] sm:$0xff] %vm225, 0.0
      %236 = vst.msk [vmem:[#allocation3 + $0x10] sm:$0xff] %vm225, 0.0
      %237 = vst.msk [vmem:[#allocation3 + $0x18] sm:$0xff] %vm225, 0.0
      %238 = vst.msk [vmem:[#allocation3 + $0x120] sm:$0xff] %vm225, 0.0
      %239 = vst.msk [vmem:[#allocation3 + $0x128] sm:$0xff] %vm225, 0.0
      %240 = vst.msk [vmem:[#allocation3 + $0x130] sm:$0xff] %vm225, 0.0
      %241 = vst.msk [vmem:[#allocation3 + $0x138] sm:$0xff] %vm225, 0.0
      %v242 = vld [vmem:[%s219] sm:$0xff]
      %v243 = vld [vmem:[%s219 + $0x8] sm:$0xff]
      %v244 = vld [vmem:[%s219 + $0x10] sm:$0xff]
      %v245 = vld [vmem:[%s219 + $0x18] sm:$0xff]
      %v246 = vld [vmem:[%s219 + $0x20] sm:$0xff]
      %v247 = vld [vmem:[%s219 + $0x28] sm:$0xff]
      %v248 = vld [vmem:[%s219 + $0x30] sm:$0xff]
      %v249 = vld [vmem:[%s219 + $0x38] sm:$0xff]
      %v250 = vld [vmem:[%s219 + $0x40] sm:$0xff]
      %v251 = vld [vmem:[%s219 + $0x48] sm:$0xff]
      %v252 = vld [vmem:[%s219 + $0x50] sm:$0xff]
      %v253 = vld [vmem:[%s219 + $0x58] sm:$0xff]
      %v254 = vld [vmem:[%s219 + $0x60] sm:$0xff]
      %v255 = vld [vmem:[%s219 + $0x68] sm:$0xff]
      %v256 = vld [vmem:[%s219 + $0x70] sm:$0xff]
      %v257 = vld [vmem:[%s219 + $0x78] sm:$0xff]
      %v258 = vld [vmem:[%s219 + $0x80] sm:$0xff]
      %v259 = vld [vmem:[%s219 + $0x88] sm:$0xff]
      %v260 = vld [vmem:[%s219 + $0x90] sm:$0xff]
      %v261 = vld [vmem:[%s219 + $0x98] sm:$0xff]
      %v262 = vld [vmem:[%s219 + $0xa0] sm:$0xff]
      %v263 = vld [vmem:[%s219 + $0xa8] sm:$0xff]
      %v264 = vld [vmem:[%s219 + $0xb0] sm:$0xff]
      %v265 = vld [vmem:[%s219 + $0xb8] sm:$0xff]
      %v266 = vld [vmem:[%s219 + $0xc0] sm:$0xff]
      %v267 = vld [vmem:[%s219 + $0xc8] sm:$0xff]
      %v268 = vld [vmem:[%s219 + $0xd0] sm:$0xff]
      %v269 = vld [vmem:[%s219 + $0xd8] sm:$0xff]
      %v270 = vld [vmem:[%s219 + $0xe0] sm:$0xff]
      %v271 = vld [vmem:[%s219 + $0xe8] sm:$0xff]
      %v272 = vld [vmem:[%s219 + $0xf0] sm:$0xff]
      %v273 = vld [vmem:[%s219 + $0xf8] sm:$0xff]
      %274 = vst.msk [vmem:[#allocation2 + $0x20] sm:$0xff] %vm225, %v242
      %275 = vst.msk [vmem:[#allocation2 + $0x28] sm:$0xff] %vm225, %v243
      %276 = vst.msk [vmem:[#allocation2 + $0x30] sm:$0xff] %vm225, %v244
      %277 = vst.msk [vmem:[#allocation2 + $0x38] sm:$0xff] %vm225, %v245
      %278 = vst.msk [vmem:[#allocation2 + $0x40] sm:$0xff] %vm225, %v246
      %279 = vst.msk [vmem:[#allocation2 + $0x48] sm:$0xff] %vm225, %v247
      %280 = vst.msk [vmem:[#allocation2 + $0x50] sm:$0xff] %vm225, %v248
      %281 = vst.msk [vmem:[#allocation2 + $0x58] sm:$0xff] %vm225, %v249
      %282 = vst.msk [vmem:[#allocation2 + $0x60] sm:$0xff] %vm225, %v250
      %283 = vst.msk [vmem:[#allocation2 + $0x68] sm:$0xff] %vm225, %v251
      %284 = vst.msk [vmem:[#allocation2 + $0x70] sm:$0xff] %vm225, %v252
      %285 = vst.msk [vmem:[#allocation2 + $0x78] sm:$0xff] %vm225, %v253
      %286 = vst.msk [vmem:[#allocation2 + $0x80] sm:$0xff] %vm225, %v254
      %287 = vst.msk [vmem:[#allocation2 + $0x88] sm:$0xff] %vm225, %v255
      %288 = vst.msk [vmem:[#allocation2 + $0x90] sm:$0xff] %vm225, %v256
      %289 = vst.msk [vmem:[#allocation2 + $0x98] sm:$0xff] %vm225, %v257
      %290 = vst.msk [vmem:[#allocation2 + $0xa0] sm:$0xff] %vm225, %v258
      %291 = vst.msk [vmem:[#allocation2 + $0xa8] sm:$0xff] %vm225, %v259
      %292 = vst.msk [vmem:[#allocation2 + $0xb0] sm:$0xff] %vm225, %v260
      %293 = vst.msk [vmem:[#allocation2 + $0xb8] sm:$0xff] %vm225, %v261
      %294 = vst.msk [vmem:[#allocation2 + $0xc0] sm:$0xff] %vm225, %v262
      %295 = vst.msk [vmem:[#allocation2 + $0xc8] sm:$0xff] %vm225, %v263
      %296 = vst.msk [vmem:[#allocation2 + $0xd0] sm:$0xff] %vm225, %v264
      %297 = vst.msk [vmem:[#allocation2 + $0xd8] sm:$0xff] %vm225, %v265
      %298 = vst.msk [vmem:[#allocation2 + $0xe0] sm:$0xff] %vm225, %v266
      %299 = vst.msk [vmem:[#allocation2 + $0xe8] sm:$0xff] %vm225, %v267
      %300 = vst.msk [vmem:[#allocation2 + $0xf0] sm:$0xff] %vm225, %v268
      %301 = vst.msk [vmem:[#allocation2 + $0xf8] sm:$0xff] %vm225, %v269
      %302 = vst.msk [vmem:[#allocation2 + $0x100] sm:$0xff] %vm225, %v270
      %303 = vst.msk [vmem:[#allocation2 + $0x108] sm:$0xff] %vm225, %v271
      %304 = vst.msk [vmem:[#allocation2 + $0x110] sm:$0xff] %vm225, %v272
      %305 = vst.msk [vmem:[#allocation2 + $0x118] sm:$0xff] %vm225, %v273
      %v306 = vlaneseq
      %v307 = vshrl.u32 %v306, 7
      %v308 = vadd.s32 %v307, 8
      %v309 = vadd.s32 %v307, 16
      %v310 = vadd.s32 %v307, 24
      %v311 = vadd.s32 %v307, 32
      %v312 = vadd.s32 %v307, 40
      %v313 = vadd.s32 %v307, 48
      %v314 = vadd.s32 %v307, 56
      %v315 = vadd.s32 %v307, 64
      %v316 = vadd.s32 %v307, 72
      %v317 = vadd.s32 %v307, 80
      %v318 = vadd.s32 %v307, 88
      %v319 = vadd.s32 %v307, 96
      %v320 = vadd.s32 %v307, 104
      %v321 = vadd.s32 %v307, 112
      %v322 = vadd.s32 %v307, 120
      %v323 = vadd.s32 %v307, 128
      %v324 = vadd.s32 %v307, 136
      %v325 = vadd.s32 %v307, 144
      %v326 = vadd.s32 %v307, 152
      %v327 = vadd.s32 %v307, 160
      %v328 = vadd.s32 %v307, 168
      %v329 = vadd.s32 %v307, 176
      %v330 = vadd.s32 %v307, 184
      %v331 = vadd.s32 %v307, 192
      %v332 = vadd.s32 %v307, 200
      %v333 = vadd.s32 %v307, 208
      %v334 = vadd.s32 %v307, 216
      %v335 = vadd.s32 %v307, 224
      %v336 = vadd.s32 %v307, 232
      %v337 = vadd.s32 %v307, 240
      %v338 = vadd.s32 %v307, 248
      %vm339 = vcmp.lt.s32.totalorder %v307, 0
      %v340 = vsub.s32 0, %v307
      %v341 = vsel %vm339, %v340, %v307
      %v342 = vshrl.u32 %v341, 4
      %v343 = vand.u32 %v341, 15
      %v344 = vsub.s32 0, %v343
      %v345 = vsel %vm339, %v344, %v343
      %vm346 = vcmp.lt.s32.totalorder %v308, 0
      %v347 = vsub.s32 0, %v308
      %v348 = vsel %vm346, %v347, %v308
      %v349 = vshrl.u32 %v348, 4
      %v350 = vand.u32 %v348, 15
      %v351 = vsub.s32 0, %v350
      %v352 = vsel %vm346, %v351, %v350
      %vm353 = vcmp.lt.s32.totalorder %v309, 0
      %v354 = vsub.s32 0, %v309
      %v355 = vsel %vm353, %v354, %v309
      %v356 = vshrl.u32 %v355, 4
      %v357 = vand.u32 %v355, 15
      %v358 = vsub.s32 0, %v357
      %v359 = vsel %vm353, %v358, %v357
      %vm360 = vcmp.lt.s32.totalorder %v310, 0
      %v361 = vsub.s32 0, %v310
      %v362 = vsel %vm360, %v361, %v310
      %v363 = vshrl.u32 %v362, 4
      %v364 = vand.u32 %v362, 15
      %v365 = vsub.s32 0, %v364
      %v366 = vsel %vm360, %v365, %v364
      %vm367 = vcmp.lt.s32.totalorder %v311, 0
      %v368 = vsub.s32 0, %v311
      %v369 = vsel %vm367, %v368, %v311
      %v370 = vshrl.u32 %v369, 4
      %v371 = vand.u32 %v369, 15
      %v372 = vsub.s32 0, %v371
      %v373 = vsel %vm367, %v372, %v371
      %vm374 = vcmp.lt.s32.totalorder %v312, 0
      %v375 = vsub.s32 0, %v312
      %v376 = vsel %vm374, %v375, %v312
      %v377 = vshrl.u32 %v376, 4
      %v378 = vand.u32 %v376, 15
      %v379 = vsub.s32 0, %v378
      %v380 = vsel %vm374, %v379, %v378
      %vm381 = vcmp.lt.s32.totalorder %v313, 0
      %v382 = vsub.s32 0, %v313
      %v383 = vsel %vm381, %v382, %v313
      %v384 = vshrl.u32 %v383, 4
      %v385 = vand.u32 %v383, 15
      %v386 = vsub.s32 0, %v385
      %v387 = vsel %vm381, %v386, %v385
      %vm388 = vcmp.lt.s32.totalorder %v314, 0
      %v389 = vsub.s32 0, %v314
      %v390 = vsel %vm388, %v389, %v314
      %v391 = vshrl.u32 %v390, 4
      %v392 = vand.u32 %v390, 15
      %v393 = vsub.s32 0, %v392
      %v394 = vsel %vm388, %v393, %v392
      %vm395 = vcmp.lt.s32.totalorder %v315, 0
      %v396 = vsub.s32 0, %v315
      %v397 = vsel %vm395, %v396, %v315
      %v398 = vshrl.u32 %v397, 4
      %v399 = vand.u32 %v397, 15
      %v400 = vsub.s32 0, %v399
      %v401 = vsel %vm395, %v400, %v399
      %vm402 = vcmp.lt.s32.totalorder %v316, 0
      %v403 = vsub.s32 0, %v316
      %v404 = vsel %vm402, %v403, %v316
      %v405 = vshrl.u32 %v404, 4
      %v406 = vand.u32 %v404, 15
      %v407 = vsub.s32 0, %v406
      %v408 = vsel %vm402, %v407, %v406
      %vm409 = vcmp.lt.s32.totalorder %v317, 0
      %v410 = vsub.s32 0, %v317
      %v411 = vsel %vm409, %v410, %v317
      %v412 = vshrl.u32 %v411, 4
      %v413 = vand.u32 %v411, 15
      %v414 = vsub.s32 0, %v413
      %v415 = vsel %vm409, %v414, %v413
      %vm416 = vcmp.lt.s32.totalorder %v318, 0
      %v417 = vsub.s32 0, %v318
      %v418 = vsel %vm416, %v417, %v318
      %v419 = vshrl.u32 %v418, 4
      %v420 = vand.u32 %v418, 15
      %v421 = vsub.s32 0, %v420
      %v422 = vsel %vm416, %v421, %v420
      %vm423 = vcmp.lt.s32.totalorder %v319, 0
      %v424 = vsub.s32 0, %v319
      %v425 = vsel %vm423, %v424, %v319
      %v426 = vshrl.u32 %v425, 4
      %v427 = vand.u32 %v425, 15
      %v428 = vsub.s32 0, %v427
      %v429 = vsel %vm423, %v428, %v427
      %vm430 = vcmp.lt.s32.totalorder %v320, 0
      %v431 = vsub.s32 0, %v320
      %v432 = vsel %vm430, %v431, %v320
      %v433 = vshrl.u32 %v432, 4
      %v434 = vand.u32 %v432, 15
      %v435 = vsub.s32 0, %v434
      %v436 = vsel %vm430, %v435, %v434
      %vm437 = vcmp.lt.s32.totalorder %v321, 0
      %v438 = vsub.s32 0, %v321
      %v439 = vsel %vm437, %v438, %v321
      %v440 = vshrl.u32 %v439, 4
      %v441 = vand.u32 %v439, 15
      %v442 = vsub.s32 0, %v441
      %v443 = vsel %vm437, %v442, %v441
      %vm444 = vcmp.lt.s32.totalorder %v322, 0
      %v445 = vsub.s32 0, %v322
      %v446 = vsel %vm444, %v445, %v322
      %v447 = vshrl.u32 %v446, 4
      %v448 = vand.u32 %v446, 15
      %v449 = vsub.s32 0, %v448
      %v450 = vsel %vm444, %v449, %v448
      %vm451 = vcmp.lt.s32.totalorder %v323, 0
      %v452 = vsub.s32 0, %v323
      %v453 = vsel %vm451, %v452, %v323
      %v454 = vshrl.u32 %v453, 4
      %v455 = vand.u32 %v453, 15
      %v456 = vsub.s32 0, %v455
      %v457 = vsel %vm451, %v456, %v455
      %vm458 = vcmp.lt.s32.totalorder %v324, 0
      %v459 = vsub.s32 0, %v324
      %v460 = vsel %vm458, %v459, %v324
      %v461 = vshrl.u32 %v460, 4
      %v462 = vand.u32 %v460, 15
      %v463 = vsub.s32 0, %v462
      %v464 = vsel %vm458, %v463, %v462
      %vm465 = vcmp.lt.s32.totalorder %v325, 0
      %v466 = vsub.s32 0, %v325
      %v467 = vsel %vm465, %v466, %v325
      %v468 = vshrl.u32 %v467, 4
      %v469 = vand.u32 %v467, 15
      %v470 = vsub.s32 0, %v469
      %v471 = vsel %vm465, %v470, %v469
      %vm472 = vcmp.lt.s32.totalorder %v326, 0
      %v473 = vsub.s32 0, %v326
      %v474 = vsel %vm472, %v473, %v326
      %v475 = vshrl.u32 %v474, 4
      %v476 = vand.u32 %v474, 15
      %v477 = vsub.s32 0, %v476
      %v478 = vsel %vm472, %v477, %v476
      %vm479 = vcmp.lt.s32.totalorder %v327, 0
      %v480 = vsub.s32 0, %v327
      %v481 = vsel %vm479, %v480, %v327
      %v482 = vshrl.u32 %v481, 4
      %v483 = vand.u32 %v481, 15
      %v484 = vsub.s32 0, %v483
      %v485 = vsel %vm479, %v484, %v483
      %vm486 = vcmp.lt.s32.totalorder %v328, 0
      %v487 = vsub.s32 0, %v328
      %v488 = vsel %vm486, %v487, %v328
      %v489 = vshrl.u32 %v488, 4
      %v490 = vand.u32 %v488, 15
      %v491 = vsub.s32 0, %v490
      %v492 = vsel %vm486, %v491, %v490
      %vm493 = vcmp.lt.s32.totalorder %v329, 0
      %v494 = vsub.s32 0, %v329
      %v495 = vsel %vm493, %v494, %v329
      %v496 = vshrl.u32 %v495, 4
      %v497 = vand.u32 %v495, 15
      %v498 = vsub.s32 0, %v497
      %v499 = vsel %vm493, %v498, %v497
      %vm500 = vcmp.lt.s32.totalorder %v330, 0
      %v501 = vsub.s32 0, %v330
      %v502 = vsel %vm500, %v501, %v330
      %v503 = vshrl.u32 %v502, 4
      %v504 = vand.u32 %v502, 15
      %v505 = vsub.s32 0, %v504
      %v506 = vsel %vm500, %v505, %v504
      %vm507 = vcmp.lt.s32.totalorder %v331, 0
      %v508 = vsub.s32 0, %v331
      %v509 = vsel %vm507, %v508, %v331
      %v510 = vshrl.u32 %v509, 4
      %v511 = vand.u32 %v509, 15
      %v512 = vsub.s32 0, %v511
      %v513 = vsel %vm507, %v512, %v511
      %vm514 = vcmp.lt.s32.totalorder %v332, 0
      %v515 = vsub.s32 0, %v332
      %v516 = vsel %vm514, %v515, %v332
      %v517 = vshrl.u32 %v516, 4
      %v518 = vand.u32 %v516, 15
      %v519 = vsub.s32 0, %v518
      %v520 = vsel %vm514, %v519, %v518
      %vm521 = vcmp.lt.s32.totalorder %v333, 0
      %v522 = vsub.s32 0, %v333
      %v523 = vsel %vm521, %v522, %v333
      %v524 = vshrl.u32 %v523, 4
      %v525 = vand.u32 %v523, 15
      %v526 = vsub.s32 0, %v525
      %v527 = vsel %vm521, %v526, %v525
      %vm528 = vcmp.lt.s32.totalorder %v334, 0
      %v529 = vsub.s32 0, %v334
      %v530 = vsel %vm528, %v529, %v334
      %v531 = vshrl.u32 %v530, 4
      %v532 = vand.u32 %v530, 15
      %v533 = vsub.s32 0, %v532
      %v534 = vsel %vm528, %v533, %v532
      %vm535 = vcmp.lt.s32.totalorder %v335, 0
      %v536 = vsub.s32 0, %v335
      %v537 = vsel %vm535, %v536, %v335
      %v538 = vshrl.u32 %v537, 4
      %v539 = vand.u32 %v537, 15
      %v540 = vsub.s32 0, %v539
      %v541 = vsel %vm535, %v540, %v539
      %vm542 = vcmp.lt.s32.totalorder %v336, 0
      %v543 = vsub.s32 0, %v336
      %v544 = vsel %vm542, %v543, %v336
      %v545 = vshrl.u32 %v544, 4
      %v546 = vand.u32 %v544, 15
      %v547 = vsub.s32 0, %v546
      %v548 = vsel %vm542, %v547, %v546
      %vm549 = vcmp.lt.s32.totalorder %v337, 0
      %v550 = vsub.s32 0, %v337
      %v551 = vsel %vm549, %v550, %v337
      %v552 = vshrl.u32 %v551, 4
      %v553 = vand.u32 %v551, 15
      %v554 = vsub.s32 0, %v553
      %v555 = vsel %vm549, %v554, %v553
      %vm556 = vcmp.lt.s32.totalorder %v338, 0
      %v557 = vsub.s32 0, %v338
      %v558 = vsel %vm556, %v557, %v338
      %v559 = vshrl.u32 %v558, 4
      %v560 = vand.u32 %v558, 15
      %v561 = vsub.s32 0, %v560
      %v562 = vsel %vm556, %v561, %v560
      %vm563 = vcmp.ne.s32.totalorder %v345, 0
      %vm564 = vcmp.ne.s32.totalorder %v352, 0
      %vm565 = vcmp.ne.s32.totalorder %v359, 0
      %vm566 = vcmp.ne.s32.totalorder %v366, 0
      %vm567 = vcmp.ne.s32.totalorder %v373, 0
      %vm568 = vcmp.ne.s32.totalorder %v380, 0
      %vm569 = vcmp.ne.s32.totalorder %v387, 0
      %vm570 = vcmp.ne.s32.totalorder %v394, 0
      %vm571 = vcmp.ne.s32.totalorder %v401, 0
      %vm572 = vcmp.ne.s32.totalorder %v408, 0
      %vm573 = vcmp.ne.s32.totalorder %v415, 0
      %vm574 = vcmp.ne.s32.totalorder %v422, 0
      %vm575 = vcmp.ne.s32.totalorder %v429, 0
      %vm576 = vcmp.ne.s32.totalorder %v436, 0
      %vm577 = vcmp.ne.s32.totalorder %v443, 0
      %vm578 = vcmp.ne.s32.totalorder %v450, 0
      %vm579 = vcmp.ne.s32.totalorder %v457, 0
      %vm580 = vcmp.ne.s32.totalorder %v464, 0
      %vm581 = vcmp.ne.s32.totalorder %v471, 0
      %vm582 = vcmp.ne.s32.totalorder %v478, 0
      %vm583 = vcmp.ne.s32.totalorder %v485, 0
      %vm584 = vcmp.ne.s32.totalorder %v492, 0
      %vm585 = vcmp.ne.s32.totalorder %v499, 0
      %vm586 = vcmp.ne.s32.totalorder %v506, 0
      %vm587 = vcmp.ne.s32.totalorder %v513, 0
      %vm588 = vcmp.ne.s32.totalorder %v520, 0
      %vm589 = vcmp.ne.s32.totalorder %v527, 0
      %vm590 = vcmp.ne.s32.totalorder %v534, 0
      %vm591 = vcmp.ne.s32.totalorder %v541, 0
      %vm592 = vcmp.ne.s32.totalorder %v548, 0
      %vm593 = vcmp.ne.s32.totalorder %v555, 0
      %vm594 = vcmp.ne.s32.totalorder %v562, 0
      %vm595 = vcmp.lt.s32.totalorder %v345, 0
      %vm596 = vcmp.lt.s32.totalorder %v352, 0
      %vm597 = vcmp.lt.s32.totalorder %v359, 0
      %vm598 = vcmp.lt.s32.totalorder %v366, 0
      %vm599 = vcmp.lt.s32.totalorder %v373, 0
      %vm600 = vcmp.lt.s32.totalorder %v380, 0
      %vm601 = vcmp.lt.s32.totalorder %v387, 0
      %vm602 = vcmp.lt.s32.totalorder %v394, 0
      %vm603 = vcmp.lt.s32.totalorder %v401, 0
      %vm604 = vcmp.lt.s32.totalorder %v408, 0
      %vm605 = vcmp.lt.s32.totalorder %v415, 0
      %vm606 = vcmp.lt.s32.totalorder %v422, 0
      %vm607 = vcmp.lt.s32.totalorder %v429, 0
      %vm608 = vcmp.lt.s32.totalorder %v436, 0
      %vm609 = vcmp.lt.s32.totalorder %v443, 0
      %vm610 = vcmp.lt.s32.totalorder %v450, 0
      %vm611 = vcmp.lt.s32.totalorder %v457, 0
      %vm612 = vcmp.lt.s32.totalorder %v464, 0
      %vm613 = vcmp.lt.s32.totalorder %v471, 0
      %vm614 = vcmp.lt.s32.totalorder %v478, 0
      %vm615 = vcmp.lt.s32.totalorder %v485, 0
      %vm616 = vcmp.lt.s32.totalorder %v492, 0
      %vm617 = vcmp.lt.s32.totalorder %v499, 0
      %vm618 = vcmp.lt.s32.totalorder %v506, 0
      %vm619 = vcmp.lt.s32.totalorder %v513, 0
      %vm620 = vcmp.lt.s32.totalorder %v520, 0
      %vm621 = vcmp.lt.s32.totalorder %v527, 0
      %vm622 = vcmp.lt.s32.totalorder %v534, 0
      %vm623 = vcmp.lt.s32.totalorder %v541, 0
      %vm624 = vcmp.lt.s32.totalorder %v548, 0
      %vm625 = vcmp.lt.s32.totalorder %v555, 0
      %vm626 = vcmp.lt.s32.totalorder %v562, 0
      %vm627 = vmand %vm595, %vm563
      %vm628 = vmand %vm596, %vm564
      %vm629 = vmand %vm597, %vm565
      %vm630 = vmand %vm598, %vm566
      %vm631 = vmand %vm599, %vm567
      %vm632 = vmand %vm600, %vm568
      %vm633 = vmand %vm601, %vm569
      %vm634 = vmand %vm602, %vm570
      %vm635 = vmand %vm603, %vm571
      %vm636 = vmand %vm604, %vm572
      %vm637 = vmand %vm605, %vm573
      %vm638 = vmand %vm606, %vm574
      %vm639 = vmand %vm607, %vm575
      %vm640 = vmand %vm608, %vm576
      %vm641 = vmand %vm609, %vm577
      %vm642 = vmand %vm610, %vm578
      %vm643 = vmand %vm611, %vm579
      %vm644 = vmand %vm612, %vm580
      %vm645 = vmand %vm613, %vm581
      %vm646 = vmand %vm614, %vm582
      %vm647 = vmand %vm615, %vm583
      %vm648 = vmand %vm616, %vm584
      %vm649 = vmand %vm617, %vm585
      %vm650 = vmand %vm618, %vm586
      %vm651 = vmand %vm619, %vm587
      %vm652 = vmand %vm620, %vm588
      %vm653 = vmand %vm621, %vm589
      %vm654 = vmand %vm622, %vm590
      %vm655 = vmand %vm623, %vm591
      %vm656 = vmand %vm624, %vm592
      %vm657 = vmand %vm625, %vm593
      %vm658 = vmand %vm626, %vm594
      %v659 = vadd.s32 %v345, 16
      %v660 = vadd.s32 %v352, 16
      %v661 = vadd.s32 %v359, 16
      %v662 = vadd.s32 %v366, 16
      %v663 = vadd.s32 %v373, 16
      %v664 = vadd.s32 %v380, 16
      %v665 = vadd.s32 %v387, 16
      %v666 = vadd.s32 %v394, 16
      %v667 = vadd.s32 %v401, 16
      %v668 = vadd.s32 %v408, 16
      %v669 = vadd.s32 %v415, 16
      %v670 = vadd.s32 %v422, 16
      %v671 = vadd.s32 %v429, 16
      %v672 = vadd.s32 %v436, 16
      %v673 = vadd.s32 %v443, 16
      %v674 = vadd.s32 %v450, 16
      %v675 = vadd.s32 %v457, 16
      %v676 = vadd.s32 %v464, 16
      %v677 = vadd.s32 %v471, 16
      %v678 = vadd.s32 %v478, 16
      %v679 = vadd.s32 %v485, 16
      %v680 = vadd.s32 %v492, 16
      %v681 = vadd.s32 %v499, 16
      %v682 = vadd.s32 %v506, 16
      %v683 = vadd.s32 %v513, 16
      %v684 = vadd.s32 %v520, 16
      %v685 = vadd.s32 %v527, 16
      %v686 = vadd.s32 %v534, 16
      %v687 = vadd.s32 %v541, 16
      %v688 = vadd.s32 %v548, 16
      %v689 = vadd.s32 %v555, 16
      %v690 = vadd.s32 %v562, 16
      %v691 = vsel %vm627, %v659, %v345
      %v692 = vsel %vm628, %v660, %v352
      %v693 = vsel %vm629, %v661, %v359
      %v694 = vsel %vm630, %v662, %v366
      %v695 = vsel %vm631, %v663, %v373
      %v696 = vsel %vm632, %v664, %v380
      %v697 = vsel %vm633, %v665, %v387
      %v698 = vsel %vm634, %v666, %v394
      %v699 = vsel %vm635, %v667, %v401
      %v700 = vsel %vm636, %v668, %v408
      %v701 = vsel %vm637, %v669, %v415
      %v702 = vsel %vm638, %v670, %v422
      %v703 = vsel %vm639, %v671, %v429
      %v704 = vsel %vm640, %v672, %v436
      %v705 = vsel %vm641, %v673, %v443
      %v706 = vsel %vm642, %v674, %v450
      %v707 = vsel %vm643, %v675, %v457
      %v708 = vsel %vm644, %v676, %v464
      %v709 = vsel %vm645, %v677, %v471
      %v710 = vsel %vm646, %v678, %v478
      %v711 = vsel %vm647, %v679, %v485
      %v712 = vsel %vm648, %v680, %v492
      %v713 = vsel %vm649, %v681, %v499
      %v714 = vsel %vm650, %v682, %v506
      %v715 = vsel %vm651, %v683, %v513
      %v716 = vsel %vm652, %v684, %v520
      %v717 = vsel %vm653, %v685, %v527
      %v718 = vsel %vm654, %v686, %v534
      %v719 = vsel %vm655, %v687, %v541
      %v720 = vsel %vm656, %v688, %v548
      %v721 = vsel %vm657, %v689, %v555
      %v722 = vsel %vm658, %v690, %v562
      %vm723 = vcmp.ne.s32.totalorder %v691, 0
      %vm724 = vcmp.ne.s32.totalorder %v692, 0
      %vm725 = vcmp.ne.s32.totalorder %v693, 0
      %vm726 = vcmp.ne.s32.totalorder %v694, 0
      %vm727 = vcmp.ne.s32.totalorder %v695, 0
      %vm728 = vcmp.ne.s32.totalorder %v696, 0
      %vm729 = vcmp.ne.s32.totalorder %v697, 0
      %vm730 = vcmp.ne.s32.totalorder %v698, 0
      %vm731 = vcmp.ne.s32.totalorder %v699, 0
      %vm732 = vcmp.ne.s32.totalorder %v700, 0
      %vm733 = vcmp.ne.s32.totalorder %v701, 0
      %vm734 = vcmp.ne.s32.totalorder %v702, 0
      %vm735 = vcmp.ne.s32.totalorder %v703, 0
      %vm736 = vcmp.ne.s32.totalorder %v704, 0
      %vm737 = vcmp.ne.s32.totalorder %v705, 0
      %vm738 = vcmp.ne.s32.totalorder %v706, 0
      %vm739 = vcmp.ne.s32.totalorder %v707, 0
      %vm740 = vcmp.ne.s32.totalorder %v708, 0
      %vm741 = vcmp.ne.s32.totalorder %v709, 0
      %vm742 = vcmp.ne.s32.totalorder %v710, 0
      %vm743 = vcmp.ne.s32.totalorder %v711, 0
      %vm744 = vcmp.ne.s32.totalorder %v712, 0
      %vm745 = vcmp.ne.s32.totalorder %v713, 0
      %vm746 = vcmp.ne.s32.totalorder %v714, 0
      %vm747 = vcmp.ne.s32.totalorder %v715, 0
      %vm748 = vcmp.ne.s32.totalorder %v716, 0
      %vm749 = vcmp.ne.s32.totalorder %v717, 0
      %vm750 = vcmp.ne.s32.totalorder %v718, 0
      %vm751 = vcmp.ne.s32.totalorder %v719, 0
      %vm752 = vcmp.ne.s32.totalorder %v720, 0
      %vm753 = vcmp.ne.s32.totalorder %v721, 0
      %vm754 = vcmp.ne.s32.totalorder %v722, 0
      %vm755 = vcmp.ne.s32.totalorder %v691, 15
      %vm756 = vcmp.ne.s32.totalorder %v692, 15
      %vm757 = vcmp.ne.s32.totalorder %v693, 15
      %vm758 = vcmp.ne.s32.totalorder %v694, 15
      %vm759 = vcmp.ne.s32.totalorder %v695, 15
      %vm760 = vcmp.ne.s32.totalorder %v696, 15
      %vm761 = vcmp.ne.s32.totalorder %v697, 15
      %vm762 = vcmp.ne.s32.totalorder %v698, 15
      %vm763 = vcmp.ne.s32.totalorder %v699, 15
      %vm764 = vcmp.ne.s32.totalorder %v700, 15
      %vm765 = vcmp.ne.s32.totalorder %v701, 15
      %vm766 = vcmp.ne.s32.totalorder %v702, 15
      %vm767 = vcmp.ne.s32.totalorder %v703, 15
      %vm768 = vcmp.ne.s32.totalorder %v704, 15
      %vm769 = vcmp.ne.s32.totalorder %v705, 15
      %vm770 = vcmp.ne.s32.totalorder %v706, 15
      %vm771 = vcmp.ne.s32.totalorder %v707, 15
      %vm772 = vcmp.ne.s32.totalorder %v708, 15
      %vm773 = vcmp.ne.s32.totalorder %v709, 15
      %vm774 = vcmp.ne.s32.totalorder %v710, 15
      %vm775 = vcmp.ne.s32.totalorder %v711, 15
      %vm776 = vcmp.ne.s32.totalorder %v712, 15
      %vm777 = vcmp.ne.s32.totalorder %v713, 15
      %vm778 = vcmp.ne.s32.totalorder %v714, 15
      %vm779 = vcmp.ne.s32.totalorder %v715, 15
      %vm780 = vcmp.ne.s32.totalorder %v716, 15
      %vm781 = vcmp.ne.s32.totalorder %v717, 15
      %vm782 = vcmp.ne.s32.totalorder %v718, 15
      %vm783 = vcmp.ne.s32.totalorder %v719, 15
      %vm784 = vcmp.ne.s32.totalorder %v720, 15
      %vm785 = vcmp.ne.s32.totalorder %v721, 15
      %vm786 = vcmp.ne.s32.totalorder %v722, 15
      %v787 = vld [vmem:[#allocation2 + $0xf] sm:$0xff]
      %v788 = vld [vmem:[#allocation2 + $0x17] sm:$0xff]
      %v789 = vld [vmem:[#allocation2 + $0x1f] sm:$0xff]
      %v790 = vld [vmem:[#allocation2 + $0x27] sm:$0xff]
      %v791 = vld [vmem:[#allocation2 + $0x2f] sm:$0xff]
      %v792 = vld [vmem:[#allocation2 + $0x37] sm:$0xff]
      %v793 = vld [vmem:[#allocation2 + $0x3f] sm:$0xff]
      %v794 = vld [vmem:[#allocation2 + $0x47] sm:$0xff]
      %v795 = vld [vmem:[#allocation2 + $0x4f] sm:$0xff]
      %v796 = vld [vmem:[#allocation2 + $0x57] sm:$0xff]
      %v797 = vld [vmem:[#allocation2 + $0x5f] sm:$0xff]
      %v798 = vld [vmem:[#allocation2 + $0x67] sm:$0xff]
      %v799 = vld [vmem:[#allocation2 + $0x6f] sm:$0xff]
      %v800 = vld [vmem:[#allocation2 + $0x77] sm:$0xff]
      %v801 = vld [vmem:[#allocation2 + $0x7f] sm:$0xff]
      %v802 = vld [vmem:[#allocation2 + $0x87] sm:$0xff]
      %v803 = vld [vmem:[#allocation2 + $0x8f] sm:$0xff]
      %v804 = vld [vmem:[#allocation2 + $0x97] sm:$0xff]
      %v805 = vld [vmem:[#allocation2 + $0x9f] sm:$0xff]
      %v806 = vld [vmem:[#allocation2 + $0xa7] sm:$0xff]
      %v807 = vld [vmem:[#allocation2 + $0xaf] sm:$0xff]
      %v808 = vld [vmem:[#allocation2 + $0xb7] sm:$0xff]
      %v809 = vld [vmem:[#allocation2 + $0xbf] sm:$0xff]
      %v810 = vld [vmem:[#allocation2 + $0xc7] sm:$0xff]
      %v811 = vld [vmem:[#allocation2 + $0xcf] sm:$0xff]
      %v812 = vld [vmem:[#allocation2 + $0xd7] sm:$0xff]
      %v813 = vld [vmem:[#allocation2 + $0xdf] sm:$0xff]
      %v814 = vld [vmem:[#allocation2 + $0xe7] sm:$0xff]
      %v815 = vld [vmem:[#allocation2 + $0xef] sm:$0xff]
      %v816 = vld [vmem:[#allocation2 + $0xf7] sm:$0xff]
      %v817 = vld [vmem:[#allocation2 + $0xff] sm:$0xff]
      %v818 = vld [vmem:[#allocation2 + $0x107] sm:$0xff]
      %v819 = vsel %vm723, 1, 0
      %v820 = vsel %vm724, 1, 0
      %v821 = vsel %vm725, 1, 0
      %v822 = vsel %vm726, 1, 0
      %v823 = vsel %vm727, 1, 0
      %v824 = vsel %vm728, 1, 0
      %v825 = vsel %vm729, 1, 0
      %v826 = vsel %vm730, 1, 0
      %v827 = vsel %vm731, 1, 0
      %v828 = vsel %vm732, 1, 0
      %v829 = vsel %vm733, 1, 0
      %v830 = vsel %vm734, 1, 0
      %v831 = vsel %vm735, 1, 0
      %v832 = vsel %vm736, 1, 0
      %v833 = vsel %vm737, 1, 0
      %v834 = vsel %vm738, 1, 0
      %v835 = vsel %vm739, 1, 0
      %v836 = vsel %vm740, 1, 0
      %v837 = vsel %vm741, 1, 0
      %v838 = vsel %vm742, 1, 0
      %v839 = vsel %vm743, 1, 0
      %v840 = vsel %vm744, 1, 0
      %v841 = vsel %vm745, 1, 0
      %v842 = vsel %vm746, 1, 0
      %v843 = vsel %vm747, 1, 0
      %v844 = vsel %vm748, 1, 0
      %v845 = vsel %vm749, 1, 0
      %v846 = vsel %vm750, 1, 0
      %v847 = vsel %vm751, 1, 0
      %v848 = vsel %vm752, 1, 0
      %v849 = vsel %vm753, 1, 0
      %v850 = vsel %vm754, 1, 0
      %vm851 = vcmp.eq.s32.totalorder %v819, 1
      %vm852 = vcmp.eq.s32.totalorder %v820, 1
      %vm853 = vcmp.eq.s32.totalorder %v821, 1
      %vm854 = vcmp.eq.s32.totalorder %v822, 1
      %vm855 = vcmp.eq.s32.totalorder %v823, 1
      %vm856 = vcmp.eq.s32.totalorder %v824, 1
      %vm857 = vcmp.eq.s32.totalorder %v825, 1
      %vm858 = vcmp.eq.s32.totalorder %v826, 1
      %vm859 = vcmp.eq.s32.totalorder %v827, 1
      %vm860 = vcmp.eq.s32.totalorder %v828, 1
      %vm861 = vcmp.eq.s32.totalorder %v829, 1
      %vm862 = vcmp.eq.s32.totalorder %v830, 1
      %vm863 = vcmp.eq.s32.totalorder %v831, 1
      %vm864 = vcmp.eq.s32.totalorder %v832, 1
      %vm865 = vcmp.eq.s32.totalorder %v833, 1
      %vm866 = vcmp.eq.s32.totalorder %v834, 1
      %vm867 = vcmp.eq.s32.totalorder %v835, 1
      %vm868 = vcmp.eq.s32.totalorder %v836, 1
      %vm869 = vcmp.eq.s32.totalorder %v837, 1
      %vm870 = vcmp.eq.s32.totalorder %v838, 1
      %vm871 = vcmp.eq.s32.totalorder %v839, 1
      %vm872 = vcmp.eq.s32.totalorder %v840, 1
      %vm873 = vcmp.eq.s32.totalorder %v841, 1
      %vm874 = vcmp.eq.s32.totalorder %v842, 1
      %vm875 = vcmp.eq.s32.totalorder %v843, 1
      %vm876 = vcmp.eq.s32.totalorder %v844, 1
      %vm877 = vcmp.eq.s32.totalorder %v845, 1
      %vm878 = vcmp.eq.s32.totalorder %v846, 1
      %vm879 = vcmp.eq.s32.totalorder %v847, 1
      %vm880 = vcmp.eq.s32.totalorder %v848, 1
      %vm881 = vcmp.eq.s32.totalorder %v849, 1
      %vm882 = vcmp.eq.s32.totalorder %v850, 1
      %v883 = vsel %vm851, %v787, 0.0
      %v884 = vsel %vm852, %v788, 0.0
      %v885 = vsel %vm853, %v789, 0.0
      %v886 = vsel %vm854, %v790, 0.0
      %v887 = vsel %vm855, %v791, 0.0
      %v888 = vsel %vm856, %v792, 0.0
      %v889 = vsel %vm857, %v793, 0.0
      %v890 = vsel %vm858, %v794, 0.0
      %v891 = vsel %vm859, %v795, 0.0
      %v892 = vsel %vm860, %v796, 0.0
      %v893 = vsel %vm861, %v797, 0.0
      %v894 = vsel %vm862, %v798, 0.0
      %v895 = vsel %vm863, %v799, 0.0
      %v896 = vsel %vm864, %v800, 0.0
      %v897 = vsel %vm865, %v801, 0.0
      %v898 = vsel %vm866, %v802, 0.0
      %v899 = vsel %vm867, %v803, 0.0
      %v900 = vsel %vm868, %v804, 0.0
      %v901 = vsel %vm869, %v805, 0.0
      %v902 = vsel %vm870, %v806, 0.0
      %v903 = vsel %vm871, %v807, 0.0
      %v904 = vsel %vm872, %v808, 0.0
      %v905 = vsel %vm873, %v809, 0.0
      %v906 = vsel %vm874, %v810, 0.0
      %v907 = vsel %vm875, %v811, 0.0
      %v908 = vsel %vm876, %v812, 0.0
      %v909 = vsel %vm877, %v813, 0.0
      %v910 = vsel %vm878, %v814, 0.0
      %v911 = vsel %vm879, %v815, 0.0
      %v912 = vsel %vm880, %v816, 0.0
      %v913 = vsel %vm881, %v817, 0.0
      %v914 = vsel %vm882, %v818, 0.0
      %915 = vst.msk [vmem:[#allocation4] sm:$0xff] %vm225, %v883
      %916 = vst.msk [vmem:[#allocation4 + $0x8] sm:$0xff] %vm225, %v884
      %917 = vst.msk [vmem:[#allocation4 + $0x10] sm:$0xff] %vm225, %v885
      %918 = vst.msk [vmem:[#allocation4 + $0x18] sm:$0xff] %vm225, %v886
      %919 = vst.msk [vmem:[#allocation4 + $0x20] sm:$0xff] %vm225, %v887
      %920 = vst.msk [vmem:[#allocation4 + $0x28] sm:$0xff] %vm225, %v888
      %921 = vst.msk [vmem:[#allocation4 + $0x30] sm:$0xff] %vm225, %v889
      %922 = vst.msk [vmem:[#allocation4 + $0x38] sm:$0xff] %vm225, %v890
      %923 = vst.msk [vmem:[#allocation4 + $0x40] sm:$0xff] %vm225, %v891
      %924 = vst.msk [vmem:[#allocation4 + $0x48] sm:$0xff] %vm225, %v892
      %925 = vst.msk [vmem:[#allocation4 + $0x50] sm:$0xff] %vm225, %v893
      %926 = vst.msk [vmem:[#allocation4 + $0x58] sm:$0xff] %vm225, %v894
      %927 = vst.msk [vmem:[#allocation4 + $0x60] sm:$0xff] %vm225, %v895
      %928 = vst.msk [vmem:[#allocation4 + $0x68] sm:$0xff] %vm225, %v896
      %929 = vst.msk [vmem:[#allocation4 + $0x70] sm:$0xff] %vm225, %v897
      %930 = vst.msk [vmem:[#allocation4 + $0x78] sm:$0xff] %vm225, %v898
      %931 = vst.msk [vmem:[#allocation4 + $0x80] sm:$0xff] %vm225, %v899
      %932 = vst.msk [vmem:[#allocation4 + $0x88] sm:$0xff] %vm225, %v900
      %933 = vst.msk [vmem:[#allocation4 + $0x90] sm:$0xff] %vm225, %v901
      %934 = vst.msk [vmem:[#allocation4 + $0x98] sm:$0xff] %vm225, %v902
      %935 = vst.msk [vmem:[#allocation4 + $0xa0] sm:$0xff] %vm225, %v903
      %936 = vst.msk [vmem:[#allocation4 + $0xa8] sm:$0xff] %vm225, %v904
      %937 = vst.msk [vmem:[#allocation4 + $0xb0] sm:$0xff] %vm225, %v905
      %938 = vst.msk [vmem:[#allocation4 + $0xb8] sm:$0xff] %vm225, %v906
      %939 = vst.msk [vmem:[#allocation4 + $0xc0] sm:$0xff] %vm225, %v907
      %940 = vst.msk [vmem:[#allocation4 + $0xc8] sm:$0xff] %vm225, %v908
      %941 = vst.msk [vmem:[#allocation4 + $0xd0] sm:$0xff] %vm225, %v909
      %942 = vst.msk [vmem:[#allocation4 + $0xd8] sm:$0xff] %vm225, %v910
      %943 = vst.msk [vmem:[#allocation4 + $0xe0] sm:$0xff] %vm225, %v911
      %944 = vst.msk [vmem:[#allocation4 + $0xe8] sm:$0xff] %vm225, %v912
      %945 = vst.msk [vmem:[#allocation4 + $0xf0] sm:$0xff] %vm225, %v913
      %946 = vst.msk [vmem:[#allocation4 + $0xf8] sm:$0xff] %vm225, %v914
      %v947 = vld [vmem:[#allocation2 + $0x10] sm:$0xff]
      %v948 = vld [vmem:[#allocation2 + $0x18] sm:$0xff]
      %v949 = vld [vmem:[#allocation2 + $0x20] sm:$0xff]
      %v950 = vld [vmem:[#allocation2 + $0x28] sm:$0xff]
      %v951 = vld [vmem:[#allocation2 + $0x30] sm:$0xff]
      %v952 = vld [vmem:[#allocation2 + $0x38] sm:$0xff]
      %v953 = vld [vmem:[#allocation2 + $0x40] sm:$0xff]
      %v954 = vld [vmem:[#allocation2 + $0x48] sm:$0xff]
      %v955 = vld [vmem:[#allocation2 + $0x50] sm:$0xff]
      %v956 = vld [vmem:[#allocation2 + $0x58] sm:$0xff]
      %v957 = vld [vmem:[#allocation2 + $0x60] sm:$0xff]
      %v958 = vld [vmem:[#allocation2 + $0x68] sm:$0xff]
      %v959 = vld [vmem:[#allocation2 + $0x70] sm:$0xff]
      %v960 = vld [vmem:[#allocation2 + $0x78] sm:$0xff]
      %v961 = vld [vmem:[#allocation2 + $0x80] sm:$0xff]
      %v962 = vld [vmem:[#allocation2 + $0x88] sm:$0xff]
      %v963 = vld [vmem:[#allocation2 + $0x90] sm:$0xff]
      %v964 = vld [vmem:[#allocation2 + $0x98] sm:$0xff]
      %v965 = vld [vmem:[#allocation2 + $0xa0] sm:$0xff]
      %v966 = vld [vmem:[#allocation2 + $0xa8] sm:$0xff]
      %v967 = vld [vmem:[#allocation2 + $0xb0] sm:$0xff]
      %v968 = vld [vmem:[#allocation2 + $0xb8] sm:$0xff]
      %v969 = vld [vmem:[#allocation2 + $0xc0] sm:$0xff]
      %v970 = vld [vmem:[#allocation2 + $0xc8] sm:$0xff]
      %v971 = vld [vmem:[#allocation2 + $0xd0] sm:$0xff]
      %v972 = vld [vmem:[#allocation2 + $0xd8] sm:$0xff]
      %v973 = vld [vmem:[#allocation2 + $0xe0] sm:$0xff]
      %v974 = vld [vmem:[#allocation2 + $0xe8] sm:$0xff]
      %v975 = vld [vmem:[#allocation2 + $0xf0] sm:$0xff]
      %v976 = vld [vmem:[#allocation2 + $0xf8] sm:$0xff]
      %v977 = vld [vmem:[#allocation2 + $0x100] sm:$0xff]
      %v978 = vld [vmem:[#allocation2 + $0x108] sm:$0xff]
      %1011 = vrot.lane.b32.xlu0 %v947, 8
      %v1012 = vpop.permute.xlu0 %1011
      %1013 = vrot.lane.b32.xlu0 %v948, 8
      %v1014 = vpop.permute.xlu0 %1013
      %1015 = vrot.lane.b32.xlu0 %v949, 8
      %v1016 = vpop.permute.xlu0 %1015
      %1017 = vrot.lane.b32.xlu0 %v950, 8
      %v1018 = vpop.permute.xlu0 %1017
      %1019 = vrot.lane.b32.xlu0 %v951, 8
      %v1020 = vpop.permute.xlu0 %1019
      %1021 = vrot.lane.b32.xlu0 %v952, 8
      %v1022 = vpop.permute.xlu0 %1021
      %1023 = vrot.lane.b32.xlu0 %v953, 8
      %v1024 = vpop.permute.xlu0 %1023
      %1025 = vrot.lane.b32.xlu0 %v954, 8
      %v1026 = vpop.permute.xlu0 %1025
      %1027 = vrot.lane.b32.xlu0 %v955, 8
      %v1028 = vpop.permute.xlu0 %1027
      %1029 = vrot.lane.b32.xlu0 %v956, 8
      %v1030 = vpop.permute.xlu0 %1029
      %1031 = vrot.lane.b32.xlu0 %v957, 8
      %v1032 = vpop.permute.xlu0 %1031
      %1033 = vrot.lane.b32.xlu0 %v958, 8
      %v1034 = vpop.permute.xlu0 %1033
      %1035 = vrot.lane.b32.xlu0 %v959, 8
      %v1036 = vpop.permute.xlu0 %1035
      %1037 = vrot.lane.b32.xlu0 %v960, 8
      %v1038 = vpop.permute.xlu0 %1037
      %1039 = vrot.lane.b32.xlu0 %v961, 8
      %v1040 = vpop.permute.xlu0 %1039
      %1041 = vrot.lane.b32.xlu0 %v962, 8
      %v1042 = vpop.permute.xlu0 %1041
      %1043 = vrot.lane.b32.xlu0 %v963, 8
      %v1044 = vpop.permute.xlu0 %1043
      %1045 = vrot.lane.b32.xlu0 %v964, 8
      %v1046 = vpop.permute.xlu0 %1045
      %1047 = vrot.lane.b32.xlu0 %v965, 8
      %v1048 = vpop.permute.xlu0 %1047
      %1049 = vrot.lane.b32.xlu0 %v966, 8
      %v1050 = vpop.permute.xlu0 %1049
      %1051 = vrot.lane.b32.xlu0 %v967, 8
      %v1052 = vpop.permute.xlu0 %1051
      %1053 = vrot.lane.b32.xlu0 %v968, 8
      %v1054 = vpop.permute.xlu0 %1053
      %1055 = vrot.lane.b32.xlu0 %v969, 8
      %v1056 = vpop.permute.xlu0 %1055
      %1057 = vrot.lane.b32.xlu0 %v970, 8
      %v1058 = vpop.permute.xlu0 %1057
      %1059 = vrot.lane.b32.xlu0 %v971, 8
      %v1060 = vpop.permute.xlu0 %1059
      %1061 = vrot.lane.b32.xlu0 %v972, 8
      %v1062 = vpop.permute.xlu0 %1061
      %1063 = vrot.lane.b32.xlu0 %v973, 8
      %v1064 = vpop.permute.xlu0 %1063
      %1065 = vrot.lane.b32.xlu0 %v974, 8
      %v1066 = vpop.permute.xlu0 %1065
      %1067 = vrot.lane.b32.xlu0 %v975, 8
      %v1068 = vpop.permute.xlu0 %1067
      %1069 = vrot.lane.b32.xlu0 %v976, 8
      %v1070 = vpop.permute.xlu0 %1069
      %1071 = vrot.lane.b32.xlu0 %v977, 8
      %v1072 = vpop.permute.xlu0 %1071
      %1073 = vrot.lane.b32.xlu0 %v978, 8
      %v1074 = vpop.permute.xlu0 %1073
      %vm1107 = vcmask 130112
      %1108 = vst.msk [vmem:[#allocation4] sm:$0xff] %vm1107, %v1012
      %1109 = vst.msk [vmem:[#allocation4 + $0x8] sm:$0xff] %vm1107, %v1014
      %1110 = vst.msk [vmem:[#allocation4 + $0x10] sm:$0xff] %vm1107, %v1016
      %1111 = vst.msk [vmem:[#allocation4 + $0x18] sm:$0xff] %vm1107, %v1018
      %1112 = vst.msk [vmem:[#allocation4 + $0x20] sm:$0xff] %vm1107, %v1020
      %1113 = vst.msk [vmem:[#allocation4 + $0x28] sm:$0xff] %vm1107, %v1022
      %1114 = vst.msk [vmem:[#allocation4 + $0x30] sm:$0xff] %vm1107, %v1024
      %1115 = vst.msk [vmem:[#allocation4 + $0x38] sm:$0xff] %vm1107, %v1026
      %1116 = vst.msk [vmem:[#allocation4 + $0x40] sm:$0xff] %vm1107, %v1028
      %1117 = vst.msk [vmem:[#allocation4 + $0x48] sm:$0xff] %vm1107, %v1030
      %1118 = vst.msk [vmem:[#allocation4 + $0x50] sm:$0xff] %vm1107, %v1032
      %1119 = vst.msk [vmem:[#allocation4 + $0x58] sm:$0xff] %vm1107, %v1034
      %1120 = vst.msk [vmem:[#allocation4 + $0x60] sm:$0xff] %vm1107, %v1036
      %1121 = vst.msk [vmem:[#allocation4 + $0x68] sm:$0xff] %vm1107, %v1038
      %1122 = vst.msk [vmem:[#allocation4 + $0x70] sm:$0xff] %vm1107, %v1040
      %1123 = vst.msk [vmem:[#allocation4 + $0x78] sm:$0xff] %vm1107, %v1042
      %1124 = vst.msk [vmem:[#allocation4 + $0x80] sm:$0xff] %vm1107, %v1044
      %1125 = vst.msk [vmem:[#allocation4 + $0x88] sm:$0xff] %vm1107, %v1046
      %1126 = vst.msk [vmem:[#allocation4 + $0x90] sm:$0xff] %vm1107, %v1048
      %1127 = vst.msk [vmem:[#allocation4 + $0x98] sm:$0xff] %vm1107, %v1050
      %1128 = vst.msk [vmem:[#allocation4 + $0xa0] sm:$0xff] %vm1107, %v1052
      %1129 = vst.msk [vmem:[#allocation4 + $0xa8] sm:$0xff] %vm1107, %v1054
      %1130 = vst.msk [vmem:[#allocation4 + $0xb0] sm:$0xff] %vm1107, %v1056
      %1131 = vst.msk [vmem:[#allocation4 + $0xb8] sm:$0xff] %vm1107, %v1058
      %1132 = vst.msk [vmem:[#allocation4 + $0xc0] sm:$0xff] %vm1107, %v1060
      %1133 = vst.msk [vmem:[#allocation4 + $0xc8] sm:$0xff] %vm1107, %v1062
      %1134 = vst.msk [vmem:[#allocation4 + $0xd0] sm:$0xff] %vm1107, %v1064
      %1135 = vst.msk [vmem:[#allocation4 + $0xd8] sm:$0xff] %vm1107, %v1066
      %1136 = vst.msk [vmem:[#allocation4 + $0xe0] sm:$0xff] %vm1107, %v1068
      %1137 = vst.msk [vmem:[#allocation4 + $0xe8] sm:$0xff] %vm1107, %v1070
      %1138 = vst.msk [vmem:[#allocation4 + $0xf0] sm:$0xff] %vm1107, %v1072
      %1139 = vst.msk [vmem:[#allocation4 + $0xf8] sm:$0xff] %vm1107, %v1074
      %v1140 = vld [vmem:[#allocation2 + $0x11] sm:$0xff]
      %v1141 = vld [vmem:[#allocation2 + $0x19] sm:$0xff]
      %v1142 = vld [vmem:[#allocation2 + $0x21] sm:$0xff]
      %v1143 = vld [vmem:[#allocation2 + $0x29] sm:$0xff]
      %v1144 = vld [vmem:[#allocation2 + $0x31] sm:$0xff]
      %v1145 = vld [vmem:[#allocation2 + $0x39] sm:$0xff]
      %v1146 = vld [vmem:[#allocation2 + $0x41] sm:$0xff]
      %v1147 = vld [vmem:[#allocation2 + $0x49] sm:$0xff]
      %v1148 = vld [vmem:[#allocation2 + $0x51] sm:$0xff]
      %v1149 = vld [vmem:[#allocation2 + $0x59] sm:$0xff]
      %v1150 = vld [vmem:[#allocation2 + $0x61] sm:$0xff]
      %v1151 = vld [vmem:[#allocation2 + $0x69] sm:$0xff]
      %v1152 = vld [vmem:[#allocation2 + $0x71] sm:$0xff]
      %v1153 = vld [vmem:[#allocation2 + $0x79] sm:$0xff]
      %v1154 = vld [vmem:[#allocation2 + $0x81] sm:$0xff]
      %v1155 = vld [vmem:[#allocation2 + $0x89] sm:$0xff]
      %v1156 = vld [vmem:[#allocation2 + $0x91] sm:$0xff]
      %v1157 = vld [vmem:[#allocation2 + $0x99] sm:$0xff]
      %v1158 = vld [vmem:[#allocation2 + $0xa1] sm:$0xff]
      %v1159 = vld [vmem:[#allocation2 + $0xa9] sm:$0xff]
      %v1160 = vld [vmem:[#allocation2 + $0xb1] sm:$0xff]
      %v1161 = vld [vmem:[#allocation2 + $0xb9] sm:$0xff]
      %v1162 = vld [vmem:[#allocation2 + $0xc1] sm:$0xff]
      %v1163 = vld [vmem:[#allocation2 + $0xc9] sm:$0xff]
      %v1164 = vld [vmem:[#allocation2 + $0xd1] sm:$0xff]
      %v1165 = vld [vmem:[#allocation2 + $0xd9] sm:$0xff]
      %v1166 = vld [vmem:[#allocation2 + $0xe1] sm:$0xff]
      %v1167 = vld [vmem:[#allocation2 + $0xe9] sm:$0xff]
      %v1168 = vld [vmem:[#allocation2 + $0xf1] sm:$0xff]
      %v1169 = vld [vmem:[#allocation2 + $0xf9] sm:$0xff]
      %v1170 = vld [vmem:[#allocation2 + $0x101] sm:$0xff]
      %v1171 = vld [vmem:[#allocation2 + $0x109] sm:$0xff]
      %v1172 = vsel %vm755, 1, 0
      %v1173 = vsel %vm756, 1, 0
      %v1174 = vsel %vm757, 1, 0
      %v1175 = vsel %vm758, 1, 0
      %v1176 = vsel %vm759, 1, 0
      %v1177 = vsel %vm760, 1, 0
      %v1178 = vsel %vm761, 1, 0
      %v1179 = vsel %vm762, 1, 0
      %v1180 = vsel %vm763, 1, 0
      %v1181 = vsel %vm764, 1, 0
      %v1182 = vsel %vm765, 1, 0
      %v1183 = vsel %vm766, 1, 0
      %v1184 = vsel %vm767, 1, 0
      %v1185 = vsel %vm768, 1, 0
      %v1186 = vsel %vm769, 1, 0
      %v1187 = vsel %vm770, 1, 0
      %v1188 = vsel %vm771, 1, 0
      %v1189 = vsel %vm772, 1, 0
      %v1190 = vsel %vm773, 1, 0
      %v1191 = vsel %vm774, 1, 0
      %v1192 = vsel %vm775, 1, 0
      %v1193 = vsel %vm776, 1, 0
      %v1194 = vsel %vm777, 1, 0
      %v1195 = vsel %vm778, 1, 0
      %v1196 = vsel %vm779, 1, 0
      %v1197 = vsel %vm780, 1, 0
      %v1198 = vsel %vm781, 1, 0
      %v1199 = vsel %vm782, 1, 0
      %v1200 = vsel %vm783, 1, 0
      %v1201 = vsel %vm784, 1, 0
      %v1202 = vsel %vm785, 1, 0
      %v1203 = vsel %vm786, 1, 0
      %vm1204 = vcmp.eq.s32.totalorder %v1172, 1
      %vm1205 = vcmp.eq.s32.totalorder %v1173, 1
      %vm1206 = vcmp.eq.s32.totalorder %v1174, 1
      %vm1207 = vcmp.eq.s32.totalorder %v1175, 1
      %vm1208 = vcmp.eq.s32.totalorder %v1176, 1
      %vm1209 = vcmp.eq.s32.totalorder %v1177, 1
      %vm1210 = vcmp.eq.s32.totalorder %v1178, 1
      %vm1211 = vcmp.eq.s32.totalorder %v1179, 1
      %vm1212 = vcmp.eq.s32.totalorder %v1180, 1
      %vm1213 = vcmp.eq.s32.totalorder %v1181, 1
      %vm1214 = vcmp.eq.s32.totalorder %v1182, 1
      %vm1215 = vcmp.eq.s32.totalorder %v1183, 1
      %vm1216 = vcmp.eq.s32.totalorder %v1184, 1
      %vm1217 = vcmp.eq.s32.totalorder %v1185, 1
      %vm1218 = vcmp.eq.s32.totalorder %v1186, 1
      %vm1219 = vcmp.eq.s32.totalorder %v1187, 1
      %vm1220 = vcmp.eq.s32.totalorder %v1188, 1
      %vm1221 = vcmp.eq.s32.totalorder %v1189, 1
      %vm1222 = vcmp.eq.s32.totalorder %v1190, 1
      %vm1223 = vcmp.eq.s32.totalorder %v1191, 1
      %vm1224 = vcmp.eq.s32.totalorder %v1192, 1
      %vm1225 = vcmp.eq.s32.totalorder %v1193, 1
      %vm1226 = vcmp.eq.s32.totalorder %v1194, 1
      %vm1227 = vcmp.eq.s32.totalorder %v1195, 1
      %vm1228 = vcmp.eq.s32.totalorder %v1196, 1
      %vm1229 = vcmp.eq.s32.totalorder %v1197, 1
      %vm1230 = vcmp.eq.s32.totalorder %v1198, 1
      %vm1231 = vcmp.eq.s32.totalorder %v1199, 1
      %vm1232 = vcmp.eq.s32.totalorder %v1200, 1
      %vm1233 = vcmp.eq.s32.totalorder %v1201, 1
      %vm1234 = vcmp.eq.s32.totalorder %v1202, 1
      %vm1235 = vcmp.eq.s32.totalorder %v1203, 1
      %v1236 = vsel %vm1204, %v1140, 0.0
      %v1237 = vsel %vm1205, %v1141, 0.0
      %v1238 = vsel %vm1206, %v1142, 0.0
      %v1239 = vsel %vm1207, %v1143, 0.0
      %v1240 = vsel %vm1208, %v1144, 0.0
      %v1241 = vsel %vm1209, %v1145, 0.0
      %v1242 = vsel %vm1210, %v1146, 0.0
      %v1243 = vsel %vm1211, %v1147, 0.0
      %v1244 = vsel %vm1212, %v1148, 0.0
      %v1245 = vsel %vm1213, %v1149, 0.0
      %v1246 = vsel %vm1214, %v1150, 0.0
      %v1247 = vsel %vm1215, %v1151, 0.0
      %v1248 = vsel %vm1216, %v1152, 0.0
      %v1249 = vsel %vm1217, %v1153, 0.0
      %v1250 = vsel %vm1218, %v1154, 0.0
      %v1251 = vsel %vm1219, %v1155, 0.0
      %v1252 = vsel %vm1220, %v1156, 0.0
      %v1253 = vsel %vm1221, %v1157, 0.0
      %v1254 = vsel %vm1222, %v1158, 0.0
      %v1255 = vsel %vm1223, %v1159, 0.0
      %v1256 = vsel %vm1224, %v1160, 0.0
      %v1257 = vsel %vm1225, %v1161, 0.0
      %v1258 = vsel %vm1226, %v1162, 0.0
      %v1259 = vsel %vm1227, %v1163, 0.0
      %v1260 = vsel %vm1228, %v1164, 0.0
      %v1261 = vsel %vm1229, %v1165, 0.0
      %v1262 = vsel %vm1230, %v1166, 0.0
      %v1263 = vsel %vm1231, %v1167, 0.0
      %v1264 = vsel %vm1232, %v1168, 0.0
      %v1265 = vsel %vm1233, %v1169, 0.0
      %v1266 = vsel %vm1234, %v1170, 0.0
      %v1267 = vsel %vm1235, %v1171, 0.0
      %1300 = vrot.lane.b32.xlu0 %v1236, 16
      %v1301 = vpop.permute.xlu0 %1300
      %1302 = vrot.lane.b32.xlu0 %v1237, 16
      %v1303 = vpop.permute.xlu0 %1302
      %1304 = vrot.lane.b32.xlu0 %v1238, 16
      %v1305 = vpop.permute.xlu0 %1304
      %1306 = vrot.lane.b32.xlu0 %v1239, 16
      %v1307 = vpop.permute.xlu0 %1306
      %1308 = vrot.lane.b32.xlu0 %v1240, 16
      %v1309 = vpop.permute.xlu0 %1308
      %1310 = vrot.lane.b32.xlu0 %v1241, 16
      %v1311 = vpop.permute.xlu0 %1310
      %1312 = vrot.lane.b32.xlu0 %v1242, 16
      %v1313 = vpop.permute.xlu0 %1312
      %1314 = vrot.lane.b32.xlu0 %v1243, 16
      %v1315 = vpop.permute.xlu0 %1314
      %1316 = vrot.lane.b32.xlu0 %v1244, 16
      %v1317 = vpop.permute.xlu0 %1316
      %1318 = vrot.lane.b32.xlu0 %v1245, 16
      %v1319 = vpop.permute.xlu0 %1318
      %1320 = vrot.lane.b32.xlu0 %v1246, 16
      %v1321 = vpop.permute.xlu0 %1320
      %1322 = vrot.lane.b32.xlu0 %v1247, 16
      %v1323 = vpop.permute.xlu0 %1322
      %1324 = vrot.lane.b32.xlu0 %v1248, 16
      %v1325 = vpop.permute.xlu0 %1324
      %1326 = vrot.lane.b32.xlu0 %v1249, 16
      %v1327 = vpop.permute.xlu0 %1326
      %1328 = vrot.lane.b32.xlu0 %v1250, 16
      %v1329 = vpop.permute.xlu0 %1328
      %1330 = vrot.lane.b32.xlu0 %v1251, 16
      %v1331 = vpop.permute.xlu0 %1330
      %1332 = vrot.lane.b32.xlu0 %v1252, 16
      %v1333 = vpop.permute.xlu0 %1332
      %1334 = vrot.lane.b32.xlu0 %v1253, 16
      %v1335 = vpop.permute.xlu0 %1334
      %1336 = vrot.lane.b32.xlu0 %v1254, 16
      %v1337 = vpop.permute.xlu0 %1336
      %1338 = vrot.lane.b32.xlu0 %v1255, 16
      %v1339 = vpop.permute.xlu0 %1338
      %1340 = vrot.lane.b32.xlu0 %v1256, 16
      %v1341 = vpop.permute.xlu0 %1340
      %1342 = vrot.lane.b32.xlu0 %v1257, 16
      %v1343 = vpop.permute.xlu0 %1342
      %1344 = vrot.lane.b32.xlu0 %v1258, 16
      %v1345 = vpop.permute.xlu0 %1344
      %1346 = vrot.lane.b32.xlu0 %v1259, 16
      %v1347 = vpop.permute.xlu0 %1346
      %1348 = vrot.lane.b32.xlu0 %v1260, 16
      %v1349 = vpop.permute.xlu0 %1348
      %1350 = vrot.lane.b32.xlu0 %v1261, 16
      %v1351 = vpop.permute.xlu0 %1350
      %1352 = vrot.lane.b32.xlu0 %v1262, 16
      %v1353 = vpop.permute.xlu0 %1352
      %1354 = vrot.lane.b32.xlu0 %v1263, 16
      %v1355 = vpop.permute.xlu0 %1354
      %1356 = vrot.lane.b32.xlu0 %v1264, 16
      %v1357 = vpop.permute.xlu0 %1356
      %1358 = vrot.lane.b32.xlu0 %v1265, 16
      %v1359 = vpop.permute.xlu0 %1358
      %1360 = vrot.lane.b32.xlu0 %v1266, 16
      %v1361 = vpop.permute.xlu0 %1360
      %1362 = vrot.lane.b32.xlu0 %v1267, 16
      %v1363 = vpop.permute.xlu0 %1362
      %vm1396 = vcmask 195712
      %1397 = vst.msk [vmem:[#allocation4] sm:$0xff] %vm1396, %v1301
      %1398 = vst.msk [vmem:[#allocation4 + $0x8] sm:$0xff] %vm1396, %v1303
      %1399 = vst.msk [vmem:[#allocation4 + $0x10] sm:$0xff] %vm1396, %v1305
      %1400 = vst.msk [vmem:[#allocation4 + $0x18] sm:$0xff] %vm1396, %v1307
      %1401 = vst.msk [vmem:[#allocation4 + $0x20] sm:$0xff] %vm1396, %v1309
      %1402 = vst.msk [vmem:[#allocation4 + $0x28] sm:$0xff] %vm1396, %v1311
      %1403 = vst.msk [vmem:[#allocation4 + $0x30] sm:$0xff] %vm1396, %v1313
      %1404 = vst.msk [vmem:[#allocation4 + $0x38] sm:$0xff] %vm1396, %v1315
      %1405 = vst.msk [vmem:[#allocation4 + $0x40] sm:$0xff] %vm1396, %v1317
      %1406 = vst.msk [vmem:[#allocation4 + $0x48] sm:$0xff] %vm1396, %v1319
      %1407 = vst.msk [vmem:[#allocation4 + $0x50] sm:$0xff] %vm1396, %v1321
      %1408 = vst.msk [vmem:[#allocation4 + $0x58] sm:$0xff] %vm1396, %v1323
      %1409 = vst.msk [vmem:[#allocation4 + $0x60] sm:$0xff] %vm1396, %v1325
      %1410 = vst.msk [vmem:[#allocation4 + $0x68] sm:$0xff] %vm1396, %v1327
      %1411 = vst.msk [vmem:[#allocation4 + $0x70] sm:$0xff] %vm1396, %v1329
      %1412 = vst.msk [vmem:[#allocation4 + $0x78] sm:$0xff] %vm1396, %v1331
      %1413 = vst.msk [vmem:[#allocation4 + $0x80] sm:$0xff] %vm1396, %v1333
      %1414 = vst.msk [vmem:[#allocation4 + $0x88] sm:$0xff] %vm1396, %v1335
      %1415 = vst.msk [vmem:[#allocation4 + $0x90] sm:$0xff] %vm1396, %v1337
      %1416 = vst.msk [vmem:[#allocation4 + $0x98] sm:$0xff] %vm1396, %v1339
      %1417 = vst.msk [vmem:[#allocation4 + $0xa0] sm:$0xff] %vm1396, %v1341
      %1418 = vst.msk [vmem:[#allocation4 + $0xa8] sm:$0xff] %vm1396, %v1343
      %1419 = vst.msk [vmem:[#allocation4 + $0xb0] sm:$0xff] %vm1396, %v1345
      %1420 = vst.msk [vmem:[#allocation4 + $0xb8] sm:$0xff] %vm1396, %v1347
      %1421 = vst.msk [vmem:[#allocation4 + $0xc0] sm:$0xff] %vm1396, %v1349
      %1422 = vst.msk [vmem:[#allocation4 + $0xc8] sm:$0xff] %vm1396, %v1351
      %1423 = vst.msk [vmem:[#allocation4 + $0xd0] sm:$0xff] %vm1396, %v1353
      %1424 = vst.msk [vmem:[#allocation4 + $0xd8] sm:$0xff] %vm1396, %v1355
      %1425 = vst.msk [vmem:[#allocation4 + $0xe0] sm:$0xff] %vm1396, %v1357
      %1426 = vst.msk [vmem:[#allocation4 + $0xe8] sm:$0xff] %vm1396, %v1359
      %1427 = vst.msk [vmem:[#allocation4 + $0xf0] sm:$0xff] %vm1396, %v1361
      %1428 = vst.msk [vmem:[#allocation4 + $0xf8] sm:$0xff] %vm1396, %v1363
      %v1429 = vld [vmem:[#allocation2 + $0x1f] sm:$0xff]
      %v1430 = vld [vmem:[#allocation2 + $0x27] sm:$0xff]
      %v1431 = vld [vmem:[#allocation2 + $0x2f] sm:$0xff]
      %v1432 = vld [vmem:[#allocation2 + $0x37] sm:$0xff]
      %v1433 = vld [vmem:[#allocation2 + $0x3f] sm:$0xff]
      %v1434 = vld [vmem:[#allocation2 + $0x47] sm:$0xff]
      %v1435 = vld [vmem:[#allocation2 + $0x4f] sm:$0xff]
      %v1436 = vld [vmem:[#allocation2 + $0x57] sm:$0xff]
      %v1437 = vld [vmem:[#allocation2 + $0x5f] sm:$0xff]
      %v1438 = vld [vmem:[#allocation2 + $0x67] sm:$0xff]
      %v1439 = vld [vmem:[#allocation2 + $0x6f] sm:$0xff]
      %v1440 = vld [vmem:[#allocation2 + $0x77] sm:$0xff]
      %v1441 = vld [vmem:[#allocation2 + $0x7f] sm:$0xff]
      %v1442 = vld [vmem:[#allocation2 + $0x87] sm:$0xff]
      %v1443 = vld [vmem:[#allocation2 + $0x8f] sm:$0xff]
      %v1444 = vld [vmem:[#allocation2 + $0x97] sm:$0xff]
      %v1445 = vld [vmem:[#allocation2 + $0x9f] sm:$0xff]
      %v1446 = vld [vmem:[#allocation2 + $0xa7] sm:$0xff]
      %v1447 = vld [vmem:[#allocation2 + $0xaf] sm:$0xff]
      %v1448 = vld [vmem:[#allocation2 + $0xb7] sm:$0xff]
      %v1449 = vld [vmem:[#allocation2 + $0xbf] sm:$0xff]
      %v1450 = vld [vmem:[#allocation2 + $0xc7] sm:$0xff]
      %v1451 = vld [vmem:[#allocation2 + $0xcf] sm:$0xff]
      %v1452 = vld [vmem:[#allocation2 + $0xd7] sm:$0xff]
      %v1453 = vld [vmem:[#allocation2 + $0xdf] sm:$0xff]
      %v1454 = vld [vmem:[#allocation2 + $0xe7] sm:$0xff]
      %v1455 = vld [vmem:[#allocation2 + $0xef] sm:$0xff]
      %v1456 = vld [vmem:[#allocation2 + $0xf7] sm:$0xff]
      %v1457 = vld [vmem:[#allocation2 + $0xff] sm:$0xff]
      %v1458 = vld [vmem:[#allocation2 + $0x107] sm:$0xff]
      %v1459 = vld [vmem:[#allocation2 + $0x10f] sm:$0xff]
      %v1460 = vld [vmem:[#allocation2 + $0x117] sm:$0xff]
      %v1461 = vsel %vm851, %v1429, 0.0
      %v1462 = vsel %vm852, %v1430, 0.0
      %v1463 = vsel %vm853, %v1431, 0.0
      %v1464 = vsel %vm854, %v1432, 0.0
      %v1465 = vsel %vm855, %v1433, 0.0
      %v1466 = vsel %vm856, %v1434, 0.0
      %v1467 = vsel %vm857, %v1435, 0.0
      %v1468 = vsel %vm858, %v1436, 0.0
      %v1469 = vsel %vm859, %v1437, 0.0
      %v1470 = vsel %vm860, %v1438, 0.0
      %v1471 = vsel %vm861, %v1439, 0.0
      %v1472 = vsel %vm862, %v1440, 0.0
      %v1473 = vsel %vm863, %v1441, 0.0
      %v1474 = vsel %vm864, %v1442, 0.0
      %v1475 = vsel %vm865, %v1443, 0.0
      %v1476 = vsel %vm866, %v1444, 0.0
      %v1477 = vsel %vm867, %v1445, 0.0
      %v1478 = vsel %vm868, %v1446, 0.0
      %v1479 = vsel %vm869, %v1447, 0.0
      %v1480 = vsel %vm870, %v1448, 0.0
      %v1481 = vsel %vm871, %v1449, 0.0
      %v1482 = vsel %vm872, %v1450, 0.0
      %v1483 = vsel %vm873, %v1451, 0.0
      %v1484 = vsel %vm874, %v1452, 0.0
      %v1485 = vsel %vm875, %v1453, 0.0
      %v1486 = vsel %vm876, %v1454, 0.0
      %v1487 = vsel %vm877, %v1455, 0.0
      %v1488 = vsel %vm878, %v1456, 0.0
      %v1489 = vsel %vm879, %v1457, 0.0
      %v1490 = vsel %vm880, %v1458, 0.0
      %v1491 = vsel %vm881, %v1459, 0.0
      %v1492 = vsel %vm882, %v1460, 0.0
      %1525 = vrot.lane.b32.xlu0 %v1461, 24
      %v1526 = vpop.permute.xlu0 %1525
      %1527 = vrot.lane.b32.xlu0 %v1462, 24
      %v1528 = vpop.permute.xlu0 %1527
      %1529 = vrot.lane.b32.xlu0 %v1463, 24
      %v1530 = vpop.permute.xlu0 %1529
      %1531 = vrot.lane.b32.xlu0 %v1464, 24
      %v1532 = vpop.permute.xlu0 %1531
      %1533 = vrot.lane.b32.xlu0 %v1465, 24
      %v1534 = vpop.permute.xlu0 %1533
      %1535 = vrot.lane.b32.xlu0 %v1466, 24
      %v1536 = vpop.permute.xlu0 %1535
      %1537 = vrot.lane.b32.xlu0 %v1467, 24
      %v1538 = vpop.permute.xlu0 %1537
      %1539 = vrot.lane.b32.xlu0 %v1468, 24
      %v1540 = vpop.permute.xlu0 %1539
      %1541 = vrot.lane.b32.xlu0 %v1469, 24
      %v1542 = vpop.permute.xlu0 %1541
      %1543 = vrot.lane.b32.xlu0 %v1470, 24
      %v1544 = vpop.permute.xlu0 %1543
      %1545 = vrot.lane.b32.xlu0 %v1471, 24
      %v1546 = vpop.permute.xlu0 %1545
      %1547 = vrot.lane.b32.xlu0 %v1472, 24
      %v1548 = vpop.permute.xlu0 %1547
      %1549 = vrot.lane.b32.xlu0 %v1473, 24
      %v1550 = vpop.permute.xlu0 %1549
      %1551 = vrot.lane.b32.xlu0 %v1474, 24
      %v1552 = vpop.permute.xlu0 %1551
      %1553 = vrot.lane.b32.xlu0 %v1475, 24
      %v1554 = vpop.permute.xlu0 %1553
      %1555 = vrot.lane.b32.xlu0 %v1476, 24
      %v1556 = vpop.permute.xlu0 %1555
      %1557 = vrot.lane.b32.xlu0 %v1477, 24
      %v1558 = vpop.permute.xlu0 %1557
      %1559 = vrot.lane.b32.xlu0 %v1478, 24
      %v1560 = vpop.permute.xlu0 %1559
      %1561 = vrot.lane.b32.xlu0 %v1479, 24
      %v1562 = vpop.permute.xlu0 %1561
      %1563 = vrot.lane.b32.xlu0 %v1480, 24
      %v1564 = vpop.permute.xlu0 %1563
      %1565 = vrot.lane.b32.xlu0 %v1481, 24
      %v1566 = vpop.permute.xlu0 %1565
      %1567 = vrot.lane.b32.xlu0 %v1482, 24
      %v1568 = vpop.permute.xlu0 %1567
      %1569 = vrot.lane.b32.xlu0 %v1483, 24
      %v1570 = vpop.permute.xlu0 %1569
      %1571 = vrot.lane.b32.xlu0 %v1484, 24
      %v1572 = vpop.permute.xlu0 %1571
      %1573 = vrot.lane.b32.xlu0 %v1485, 24
      %v1574 = vpop.permute.xlu0 %1573
      %1575 = vrot.lane.b32.xlu0 %v1486, 24
      %v1576 = vpop.permute.xlu0 %1575
      %1577 = vrot.lane.b32.xlu0 %v1487, 24
      %v1578 = vpop.permute.xlu0 %1577
      %1579 = vrot.lane.b32.xlu0 %v1488, 24
      %v1580 = vpop.permute.xlu0 %1579
      %1581 = vrot.lane.b32.xlu0 %v1489, 24
      %v1582 = vpop.permute.xlu0 %1581
      %1583 = vrot.lane.b32.xlu0 %v1490, 24
      %v1584 = vpop.permute.xlu0 %1583
      %1585 = vrot.lane.b32.xlu0 %v1491, 24
      %v1586 = vpop.permute.xlu0 %1585
      %1587 = vrot.lane.b32.xlu0 %v1492, 24
      %v1588 = vpop.permute.xlu0 %1587
      %vm1621 = vcmask 261312
      %1622 = vst.msk [vmem:[#allocation4] sm:$0xff] %vm1621, %v1526
      %1623 = vst.msk [vmem:[#allocation4 + $0x8] sm:$0xff] %vm1621, %v1528
      %1624 = vst.msk [vmem:[#allocation4 + $0x10] sm:$0xff] %vm1621, %v1530
      %1625 = vst.msk [vmem:[#allocation4 + $0x18] sm:$0xff] %vm1621, %v1532
      %1626 = vst.msk [vmem:[#allocation4 + $0x20] sm:$0xff] %vm1621, %v1534
      %1627 = vst.msk [vmem:[#allocation4 + $0x28] sm:$0xff] %vm1621, %v1536
      %1628 = vst.msk [vmem:[#allocation4 + $0x30] sm:$0xff] %vm1621, %v1538
      %1629 = vst.msk [vmem:[#allocation4 + $0x38] sm:$0xff] %vm1621, %v1540
      %1630 = vst.msk [vmem:[#allocation4 + $0x40] sm:$0xff] %vm1621, %v1542
      %1631 = vst.msk [vmem:[#allocation4 + $0x48] sm:$0xff] %vm1621, %v1544
      %1632 = vst.msk [vmem:[#allocation4 + $0x50] sm:$0xff] %vm1621, %v1546
      %1633 = vst.msk [vmem:[#allocation4 + $0x58] sm:$0xff] %vm1621, %v1548
      %1634 = vst.msk [vmem:[#allocation4 + $0x60] sm:$0xff] %vm1621, %v1550
      %1635 = vst.msk [vmem:[#allocation4 + $0x68] sm:$0xff] %vm1621, %v1552
      %1636 = vst.msk [vmem:[#allocation4 + $0x70] sm:$0xff] %vm1621, %v1554
      %1637 = vst.msk [vmem:[#allocation4 + $0x78] sm:$0xff] %vm1621, %v1556
      %1638 = vst.msk [vmem:[#allocation4 + $0x80] sm:$0xff] %vm1621, %v1558
      %1639 = vst.msk [vmem:[#allocation4 + $0x88] sm:$0xff] %vm1621, %v1560
      %1640 = vst.msk [vmem:[#allocation4 + $0x90] sm:$0xff] %vm1621, %v1562
      %1641 = vst.msk [vmem:[#allocation4 + $0x98] sm:$0xff] %vm1621, %v1564
      %1642 = vst.msk [vmem:[#allocation4 + $0xa0] sm:$0xff] %vm1621, %v1566
      %1643 = vst.msk [vmem:[#allocation4 + $0xa8] sm:$0xff] %vm1621, %v1568
      %1644 = vst.msk [vmem:[#allocation4 + $0xb0] sm:$0xff] %vm1621, %v1570
      %1645 = vst.msk [vmem:[#allocation4 + $0xb8] sm:$0xff] %vm1621, %v1572
      %1646 = vst.msk [vmem:[#allocation4 + $0xc0] sm:$0xff] %vm1621, %v1574
      %1647 = vst.msk [vmem:[#allocation4 + $0xc8] sm:$0xff] %vm1621, %v1576
      %1648 = vst.msk [vmem:[#allocation4 + $0xd0] sm:$0xff] %vm1621, %v1578
      %1649 = vst.msk [vmem:[#allocation4 + $0xd8] sm:$0xff] %vm1621, %v1580
      %1650 = vst.msk [vmem:[#allocation4 + $0xe0] sm:$0xff] %vm1621, %v1582
      %1651 = vst.msk [vmem:[#allocation4 + $0xe8] sm:$0xff] %vm1621, %v1584
      %1652 = vst.msk [vmem:[#allocation4 + $0xf0] sm:$0xff] %vm1621, %v1586
      %1653 = vst.msk [vmem:[#allocation4 + $0xf8] sm:$0xff] %vm1621, %v1588
      %v1654 = vld [vmem:[#allocation2 + $0x20] sm:$0xff]
      %v1655 = vld [vmem:[#allocation2 + $0x28] sm:$0xff]
      %v1656 = vld [vmem:[#allocation2 + $0x30] sm:$0xff]
      %v1657 = vld [vmem:[#allocation2 + $0x38] sm:$0xff]
      %v1658 = vld [vmem:[#allocation2 + $0x40] sm:$0xff]
      %v1659 = vld [vmem:[#allocation2 + $0x48] sm:$0xff]
      %v1660 = vld [vmem:[#allocation2 + $0x50] sm:$0xff]
      %v1661 = vld [vmem:[#allocation2 + $0x58] sm:$0xff]
      %v1662 = vld [vmem:[#allocation2 + $0x60] sm:$0xff]
      %v1663 = vld [vmem:[#allocation2 + $0x68] sm:$0xff]
      %v1664 = vld [vmem:[#allocation2 + $0x70] sm:$0xff]
      %v1665 = vld [vmem:[#allocation2 + $0x78] sm:$0xff]
      %v1666 = vld [vmem:[#allocation2 + $0x80] sm:$0xff]
      %v1667 = vld [vmem:[#allocation2 + $0x88] sm:$0xff]
      %v1668 = vld [vmem:[#allocation2 + $0x90] sm:$0xff]
      %v1669 = vld [vmem:[#allocation2 + $0x98] sm:$0xff]
      %v1670 = vld [vmem:[#allocation2 + $0xa0] sm:$0xff]
      %v1671 = vld [vmem:[#allocation2 + $0xa8] sm:$0xff]
      %v1672 = vld [vmem:[#allocation2 + $0xb0] sm:$0xff]
      %v1673 = vld [vmem:[#allocation2 + $0xb8] sm:$0xff]
      %v1674 = vld [vmem:[#allocation2 + $0xc0] sm:$0xff]
      %v1675 = vld [vmem:[#allocation2 + $0xc8] sm:$0xff]
      %v1676 = vld [vmem:[#allocation2 + $0xd0] sm:$0xff]
      %v1677 = vld [vmem:[#allocation2 + $0xd8] sm:$0xff]
      %v1678 = vld [vmem:[#allocation2 + $0xe0] sm:$0xff]
      %v1679 = vld [vmem:[#allocation2 + $0xe8] sm:$0xff]
      %v1680 = vld [vmem:[#allocation2 + $0xf0] sm:$0xff]
      %v1681 = vld [vmem:[#allocation2 + $0xf8] sm:$0xff]
      %v1682 = vld [vmem:[#allocation2 + $0x100] sm:$0xff]
      %v1683 = vld [vmem:[#allocation2 + $0x108] sm:$0xff]
      %v1684 = vld [vmem:[#allocation2 + $0x110] sm:$0xff]
      %v1685 = vld [vmem:[#allocation2 + $0x118] sm:$0xff]
      %1718 = vrot.lane.b32.xlu0 %v1654, 32
      %v1719 = vpop.permute.xlu0 %1718
      %1720 = vrot.lane.b32.xlu0 %v1655, 32
      %v1721 = vpop.permute.xlu0 %1720
      %1722 = vrot.lane.b32.xlu0 %v1656, 32
      %v1723 = vpop.permute.xlu0 %1722
      %1724 = vrot.lane.b32.xlu0 %v1657, 32
      %v1725 = vpop.permute.xlu0 %1724
      %1726 = vrot.lane.b32.xlu0 %v1658, 32
      %v1727 = vpop.permute.xlu0 %1726
      %1728 = vrot.lane.b32.xlu0 %v1659, 32
      %v1729 = vpop.permute.xlu0 %1728
      %1730 = vrot.lane.b32.xlu0 %v1660, 32
      %v1731 = vpop.permute.xlu0 %1730
      %1732 = vrot.lane.b32.xlu0 %v1661, 32
      %v1733 = vpop.permute.xlu0 %1732
      %1734 = vrot.lane.b32.xlu0 %v1662, 32
      %v1735 = vpop.permute.xlu0 %1734
      %1736 = vrot.lane.b32.xlu0 %v1663, 32
      %v1737 = vpop.permute.xlu0 %1736
      %1738 = vrot.lane.b32.xlu0 %v1664, 32
      %v1739 = vpop.permute.xlu0 %1738
      %1740 = vrot.lane.b32.xlu0 %v1665, 32
      %v1741 = vpop.permute.xlu0 %1740
      %1742 = vrot.lane.b32.xlu0 %v1666, 32
      %v1743 = vpop.permute.xlu0 %1742
      %1744 = vrot.lane.b32.xlu0 %v1667, 32
      %v1745 = vpop.permute.xlu0 %1744
      %1746 = vrot.lane.b32.xlu0 %v1668, 32
      %v1747 = vpop.permute.xlu0 %1746
      %1748 = vrot.lane.b32.xlu0 %v1669, 32
      %v1749 = vpop.permute.xlu0 %1748
      %1750 = vrot.lane.b32.xlu0 %v1670, 32
      %v1751 = vpop.permute.xlu0 %1750
      %1752 = vrot.lane.b32.xlu0 %v1671, 32
      %v1753 = vpop.permute.xlu0 %1752
      %1754 = vrot.lane.b32.xlu0 %v1672, 32
      %v1755 = vpop.permute.xlu0 %1754
      %1756 = vrot.lane.b32.xlu0 %v1673, 32
      %v1757 = vpop.permute.xlu0 %1756
      %1758 = vrot.lane.b32.xlu0 %v1674, 32
      %v1759 = vpop.permute.xlu0 %1758
      %1760 = vrot.lane.b32.xlu0 %v1675, 32
      %v1761 = vpop.permute.xlu0 %1760
      %1762 = vrot.lane.b32.xlu0 %v1676, 32
      %v1763 = vpop.permute.xlu0 %1762
      %1764 = vrot.lane.b32.xlu0 %v1677, 32
      %v1765 = vpop.permute.xlu0 %1764
      %1766 = vrot.lane.b32.xlu0 %v1678, 32
      %v1767 = vpop.permute.xlu0 %1766
      %1768 = vrot.lane.b32.xlu0 %v1679, 32
      %v1769 = vpop.permute.xlu0 %1768
      %1770 = vrot.lane.b32.xlu0 %v1680, 32
      %v1771 = vpop.permute.xlu0 %1770
      %1772 = vrot.lane.b32.xlu0 %v1681, 32
      %v1773 = vpop.permute.xlu0 %1772
      %1774 = vrot.lane.b32.xlu0 %v1682, 32
      %v1775 = vpop.permute.xlu0 %1774
      %1776 = vrot.lane.b32.xlu0 %v1683, 32
      %v1777 = vpop.permute.xlu0 %1776
      %1778 = vrot.lane.b32.xlu0 %v1684, 32
      %v1779 = vpop.permute.xlu0 %1778
      %1780 = vrot.lane.b32.xlu0 %v1685, 32
      %v1781 = vpop.permute.xlu0 %1780
      %vm1814 = vcmask 326912
      %1815 = vst.msk [vmem:[#allocation4] sm:$0xff] %vm1814, %v1719
      %1816 = vst.msk [vmem:[#allocation4 + $0x8] sm:$0xff] %vm1814, %v1721
      %1817 = vst.msk [vmem:[#allocation4 + $0x10] sm:$0xff] %vm1814, %v1723
      %1818 = vst.msk [vmem:[#allocation4 + $0x18] sm:$0xff] %vm1814, %v1725
      %1819 = vst.msk [vmem:[#allocation4 + $0x20] sm:$0xff] %vm1814, %v1727
      %1820 = vst.msk [vmem:[#allocation4 + $0x28] sm:$0xff] %vm1814, %v1729
      %1821 = vst.msk [vmem:[#allocation4 + $0x30] sm:$0xff] %vm1814, %v1731
      %1822 = vst.msk [vmem:[#allocation4 + $0x38] sm:$0xff] %vm1814, %v1733
      %1823 = vst.msk [vmem:[#allocation4 + $0x40] sm:$0xff] %vm1814, %v1735
      %1824 = vst.msk [vmem:[#allocation4 + $0x48] sm:$0xff] %vm1814, %v1737
      %1825 = vst.msk [vmem:[#allocation4 + $0x50] sm:$0xff] %vm1814, %v1739
      %1826 = vst.msk [vmem:[#allocation4 + $0x58] sm:$0xff] %vm1814, %v1741
      %1827 = vst.msk [vmem:[#allocation4 + $0x60] sm:$0xff] %vm1814, %v1743
      %1828 = vst.msk [vmem:[#allocation4 + $0x68] sm:$0xff] %vm1814, %v1745
      %1829 = vst.msk [vmem:[#allocation4 + $0x70] sm:$0xff] %vm1814, %v1747
      %1830 = vst.msk [vmem:[#allocation4 + $0x78] sm:$0xff] %vm1814, %v1749
      %1831 = vst.msk [vmem:[#allocation4 + $0x80] sm:$0xff] %vm1814, %v1751
      %1832 = vst.msk [vmem:[#allocation4 + $0x88] sm:$0xff] %vm1814, %v1753
      %1833 = vst.msk [vmem:[#allocation4 + $0x90] sm:$0xff] %vm1814, %v1755
      %1834 = vst.msk [vmem:[#allocation4 + $0x98] sm:$0xff] %vm1814, %v1757
      %1835 = vst.msk [vmem:[#allocation4 + $0xa0] sm:$0xff] %vm1814, %v1759
      %1836 = vst.msk [vmem:[#allocation4 + $0xa8] sm:$0xff] %vm1814, %v1761
      %1837 = vst.msk [vmem:[#allocation4 + $0xb0] sm:$0xff] %vm1814, %v1763
      %1838 = vst.msk [vmem:[#allocation4 + $0xb8] sm:$0xff] %vm1814, %v1765
      %1839 = vst.msk [vmem:[#allocation4 + $0xc0] sm:$0xff] %vm1814, %v1767
      %1840 = vst.msk [vmem:[#allocation4 + $0xc8] sm:$0xff] %vm1814, %v1769
      %1841 = vst.msk [vmem:[#allocation4 + $0xd0] sm:$0xff] %vm1814, %v1771
      %1842 = vst.msk [vmem:[#allocation4 + $0xd8] sm:$0xff] %vm1814, %v1773
      %1843 = vst.msk [vmem:[#allocation4 + $0xe0] sm:$0xff] %vm1814, %v1775
      %1844 = vst.msk [vmem:[#allocation4 + $0xe8] sm:$0xff] %vm1814, %v1777
      %1845 = vst.msk [vmem:[#allocation4 + $0xf0] sm:$0xff] %vm1814, %v1779
      %1846 = vst.msk [vmem:[#allocation4 + $0xf8] sm:$0xff] %vm1814, %v1781
      %v1847 = vld [vmem:[#allocation2 + $0x21] sm:$0xff]
      %v1848 = vld [vmem:[#allocation2 + $0x29] sm:$0xff]
      %v1849 = vld [vmem:[#allocation2 + $0x31] sm:$0xff]
      %v1850 = vld [vmem:[#allocation2 + $0x39] sm:$0xff]
      %v1851 = vld [vmem:[#allocation2 + $0x41] sm:$0xff]
      %v1852 = vld [vmem:[#allocation2 + $0x49] sm:$0xff]
      %v1853 = vld [vmem:[#allocation2 + $0x51] sm:$0xff]
      %v1854 = vld [vmem:[#allocation2 + $0x59] sm:$0xff]
      %v1855 = vld [vmem:[#allocation2 + $0x61] sm:$0xff]
      %v1856 = vld [vmem:[#allocation2 + $0x69] sm:$0xff]
      %v1857 = vld [vmem:[#allocation2 + $0x71] sm:$0xff]
      %v1858 = vld [vmem:[#allocation2 + $0x79] sm:$0xff]
      %v1859 = vld [vmem:[#allocation2 + $0x81] sm:$0xff]
      %v1860 = vld [vmem:[#allocation2 + $0x89] sm:$0xff]
      %v1861 = vld [vmem:[#allocation2 + $0x91] sm:$0xff]
      %v1862 = vld [vmem:[#allocation2 + $0x99] sm:$0xff]
      %v1863 = vld [vmem:[#allocation2 + $0xa1] sm:$0xff]
      %v1864 = vld [vmem:[#allocation2 + $0xa9] sm:$0xff]
      %v1865 = vld [vmem:[#allocation2 + $0xb1] sm:$0xff]
      %v1866 = vld [vmem:[#allocation2 + $0xb9] sm:$0xff]
      %v1867 = vld [vmem:[#allocation2 + $0xc1] sm:$0xff]
      %v1868 = vld [vmem:[#allocation2 + $0xc9] sm:$0xff]
      %v1869 = vld [vmem:[#allocation2 + $0xd1] sm:$0xff]
      %v1870 = vld [vmem:[#allocation2 + $0xd9] sm:$0xff]
      %v1871 = vld [vmem:[#allocation2 + $0xe1] sm:$0xff]
      %v1872 = vld [vmem:[#allocation2 + $0xe9] sm:$0xff]
      %v1873 = vld [vmem:[#allocation2 + $0xf1] sm:$0xff]
      %v1874 = vld [vmem:[#allocation2 + $0xf9] sm:$0xff]
      %v1875 = vld [vmem:[#allocation2 + $0x101] sm:$0xff]
      %v1876 = vld [vmem:[#allocation2 + $0x109] sm:$0xff]
      %v1877 = vld [vmem:[#allocation2 + $0x111] sm:$0xff]
      %v1878 = vld [vmem:[#allocation2 + $0x119] sm:$0xff]
      %v1879 = vsel %vm1204, %v1847, 0.0
      %v1880 = vsel %vm1205, %v1848, 0.0
      %v1881 = vsel %vm1206, %v1849, 0.0
      %v1882 = vsel %vm1207, %v1850, 0.0
      %v1883 = vsel %vm1208, %v1851, 0.0
      %v1884 = vsel %vm1209, %v1852, 0.0
      %v1885 = vsel %vm1210, %v1853, 0.0
      %v1886 = vsel %vm1211, %v1854, 0.0
      %v1887 = vsel %vm1212, %v1855, 0.0
      %v1888 = vsel %vm1213, %v1856, 0.0
      %v1889 = vsel %vm1214, %v1857, 0.0
      %v1890 = vsel %vm1215, %v1858, 0.0
      %v1891 = vsel %vm1216, %v1859, 0.0
      %v1892 = vsel %vm1217, %v1860, 0.0
      %v1893 = vsel %vm1218, %v1861, 0.0
      %v1894 = vsel %vm1219, %v1862, 0.0
      %v1895 = vsel %vm1220, %v1863, 0.0
      %v1896 = vsel %vm1221, %v1864, 0.0
      %v1897 = vsel %vm1222, %v1865, 0.0
      %v1898 = vsel %vm1223, %v1866, 0.0
      %v1899 = vsel %vm1224, %v1867, 0.0
      %v1900 = vsel %vm1225, %v1868, 0.0
      %v1901 = vsel %vm1226, %v1869, 0.0
      %v1902 = vsel %vm1227, %v1870, 0.0
      %v1903 = vsel %vm1228, %v1871, 0.0
      %v1904 = vsel %vm1229, %v1872, 0.0
      %v1905 = vsel %vm1230, %v1873, 0.0
      %v1906 = vsel %vm1231, %v1874, 0.0
      %v1907 = vsel %vm1232, %v1875, 0.0
      %v1908 = vsel %vm1233, %v1876, 0.0
      %v1909 = vsel %vm1234, %v1877, 0.0
      %v1910 = vsel %vm1235, %v1878, 0.0
      %1943 = vrot.lane.b32.xlu0 %v1879, 40
      %v1944 = vpop.permute.xlu0 %1943
      %1945 = vrot.lane.b32.xlu0 %v1880, 40
      %v1946 = vpop.permute.xlu0 %1945
      %1947 = vrot.lane.b32.xlu0 %v1881, 40
      %v1948 = vpop.permute.xlu0 %1947
      %1949 = vrot.lane.b32.xlu0 %v1882, 40
      %v1950 = vpop.permute.xlu0 %1949
      %1951 = vrot.lane.b32.xlu0 %v1883, 40
      %v1952 = vpop.permute.xlu0 %1951
      %1953 = vrot.lane.b32.xlu0 %v1884, 40
      %v1954 = vpop.permute.xlu0 %1953
      %1955 = vrot.lane.b32.xlu0 %v1885, 40
      %v1956 = vpop.permute.xlu0 %1955
      %1957 = vrot.lane.b32.xlu0 %v1886, 40
      %v1958 = vpop.permute.xlu0 %1957
      %1959 = vrot.lane.b32.xlu0 %v1887, 40
      %v1960 = vpop.permute.xlu0 %1959
      %1961 = vrot.lane.b32.xlu0 %v1888, 40
      %v1962 = vpop.permute.xlu0 %1961
      %1963 = vrot.lane.b32.xlu0 %v1889, 40
      %v1964 = vpop.permute.xlu0 %1963
      %1965 = vrot.lane.b32.xlu0 %v1890, 40
      %v1966 = vpop.permute.xlu0 %1965
      %1967 = vrot.lane.b32.xlu0 %v1891, 40
      %v1968 = vpop.permute.xlu0 %1967
      %1969 = vrot.lane.b32.xlu0 %v1892, 40
      %v1970 = vpop.permute.xlu0 %1969
      %1971 = vrot.lane.b32.xlu0 %v1893, 40
      %v1972 = vpop.permute.xlu0 %1971
      %1973 = vrot.lane.b32.xlu0 %v1894, 40
      %v1974 = vpop.permute.xlu0 %1973
      %1975 = vrot.lane.b32.xlu0 %v1895, 40
      %v1976 = vpop.permute.xlu0 %1975
      %1977 = vrot.lane.b32.xlu0 %v1896, 40
      %v1978 = vpop.permute.xlu0 %1977
      %1979 = vrot.lane.b32.xlu0 %v1897, 40
      %v1980 = vpop.permute.xlu0 %1979
      %1981 = vrot.lane.b32.xlu0 %v1898, 40
      %v1982 = vpop.permute.xlu0 %1981
      %1983 = vrot.lane.b32.xlu0 %v1899, 40
      %v1984 = vpop.permute.xlu0 %1983
      %1985 = vrot.lane.b32.xlu0 %v1900, 40
      %v1986 = vpop.permute.xlu0 %1985
      %1987 = vrot.lane.b32.xlu0 %v1901, 40
      %v1988 = vpop.permute.xlu0 %1987
      %1989 = vrot.lane.b32.xlu0 %v1902, 40
      %v1990 = vpop.permute.xlu0 %1989
      %1991 = vrot.lane.b32.xlu0 %v1903, 40
      %v1992 = vpop.permute.xlu0 %1991
      %1993 = vrot.lane.b32.xlu0 %v1904, 40
      %v1994 = vpop.permute.xlu0 %1993
      %1995 = vrot.lane.b32.xlu0 %v1905, 40
      %v1996 = vpop.permute.xlu0 %1995
      %1997 = vrot.lane.b32.xlu0 %v1906, 40
      %v1998 = vpop.permute.xlu0 %1997
      %1999 = vrot.lane.b32.xlu0 %v1907, 40
      %v2000 = vpop.permute.xlu0 %1999
      %2001 = vrot.lane.b32.xlu0 %v1908, 40
      %v2002 = vpop.permute.xlu0 %2001
      %2003 = vrot.lane.b32.xlu0 %v1909, 40
      %v2004 = vpop.permute.xlu0 %2003
      %2005 = vrot.lane.b32.xlu0 %v1910, 40
      %v2006 = vpop.permute.xlu0 %2005
      %vm2039 = vcmask 392512
      %2040 = vst.msk [vmem:[#allocation4] sm:$0xff] %vm2039, %v1944
      %2041 = vst.msk [vmem:[#allocation4 + $0x8] sm:$0xff] %vm2039, %v1946
      %2042 = vst.msk [vmem:[#allocation4 + $0x10] sm:$0xff] %vm2039, %v1948
      %2043 = vst.msk [vmem:[#allocation4 + $0x18] sm:$0xff] %vm2039, %v1950
      %2044 = vst.msk [vmem:[#allocation4 + $0x20] sm:$0xff] %vm2039, %v1952
      %2045 = vst.msk [vmem:[#allocation4 + $0x28] sm:$0xff] %vm2039, %v1954
      %2046 = vst.msk [vmem:[#allocation4 + $0x30] sm:$0xff] %vm2039, %v1956
      %2047 = vst.msk [vmem:[#allocation4 + $0x38] sm:$0xff] %vm2039, %v1958
      %2048 = vst.msk [vmem:[#allocation4 + $0x40] sm:$0xff] %vm2039, %v1960
      %2049 = vst.msk [vmem:[#allocation4 + $0x48] sm:$0xff] %vm2039, %v1962
      %2050 = vst.msk [vmem:[#allocation4 + $0x50] sm:$0xff] %vm2039, %v1964
      %2051 = vst.msk [vmem:[#allocation4 + $0x58] sm:$0xff] %vm2039, %v1966
      %2052 = vst.msk [vmem:[#allocation4 + $0x60] sm:$0xff] %vm2039, %v1968
      %2053 = vst.msk [vmem:[#allocation4 + $0x68] sm:$0xff] %vm2039, %v1970
      %2054 = vst.msk [vmem:[#allocation4 + $0x70] sm:$0xff] %vm2039, %v1972
      %2055 = vst.msk [vmem:[#allocation4 + $0x78] sm:$0xff] %vm2039, %v1974
      %2056 = vst.msk [vmem:[#allocation4 + $0x80] sm:$0xff] %vm2039, %v1976
      %2057 = vst.msk [vmem:[#allocation4 + $0x88] sm:$0xff] %vm2039, %v1978
      %2058 = vst.msk [vmem:[#allocation4 + $0x90] sm:$0xff] %vm2039, %v1980
      %2059 = vst.msk [vmem:[#allocation4 + $0x98] sm:$0xff] %vm2039, %v1982
      %2060 = vst.msk [vmem:[#allocation4 + $0xa0] sm:$0xff] %vm2039, %v1984
      %2061 = vst.msk [vmem:[#allocation4 + $0xa8] sm:$0xff] %vm2039, %v1986
      %2062 = vst.msk [vmem:[#allocation4 + $0xb0] sm:$0xff] %vm2039, %v1988
      %2063 = vst.msk [vmem:[#allocation4 + $0xb8] sm:$0xff] %vm2039, %v1990
      %2064 = vst.msk [vmem:[#allocation4 + $0xc0] sm:$0xff] %vm2039, %v1992
      %2065 = vst.msk [vmem:[#allocation4 + $0xc8] sm:$0xff] %vm2039, %v1994
      %2066 = vst.msk [vmem:[#allocation4 + $0xd0] sm:$0xff] %vm2039, %v1996
      %2067 = vst.msk [vmem:[#allocation4 + $0xd8] sm:$0xff] %vm2039, %v1998
      %2068 = vst.msk [vmem:[#allocation4 + $0xe0] sm:$0xff] %vm2039, %v2000
      %2069 = vst.msk [vmem:[#allocation4 + $0xe8] sm:$0xff] %vm2039, %v2002
      %2070 = vst.msk [vmem:[#allocation4 + $0xf0] sm:$0xff] %vm2039, %v2004
      %2071 = vst.msk [vmem:[#allocation4 + $0xf8] sm:$0xff] %vm2039, %v2006
      %v2072 = vld [vmem:[#allocation2 + $0x2f] sm:$0xff]
      %v2073 = vld [vmem:[#allocation2 + $0x37] sm:$0xff]
      %v2074 = vld [vmem:[#allocation2 + $0x3f] sm:$0xff]
      %v2075 = vld [vmem:[#allocation2 + $0x47] sm:$0xff]
      %v2076 = vld [vmem:[#allocation2 + $0x4f] sm:$0xff]
      %v2077 = vld [vmem:[#allocation2 + $0x57] sm:$0xff]
      %v2078 = vld [vmem:[#allocation2 + $0x5f] sm:$0xff]
      %v2079 = vld [vmem:[#allocation2 + $0x67] sm:$0xff]
      %v2080 = vld [vmem:[#allocation2 + $0x6f] sm:$0xff]
      %v2081 = vld [vmem:[#allocation2 + $0x77] sm:$0xff]
      %v2082 = vld [vmem:[#allocation2 + $0x7f] sm:$0xff]
      %v2083 = vld [vmem:[#allocation2 + $0x87] sm:$0xff]
      %v2084 = vld [vmem:[#allocation2 + $0x8f] sm:$0xff]
      %v2085 = vld [vmem:[#allocation2 + $0x97] sm:$0xff]
      %v2086 = vld [vmem:[#allocation2 + $0x9f] sm:$0xff]
      %v2087 = vld [vmem:[#allocation2 + $0xa7] sm:$0xff]
      %v2088 = vld [vmem:[#allocation2 + $0xaf] sm:$0xff]
      %v2089 = vld [vmem:[#allocation2 + $0xb7] sm:$0xff]
      %v2090 = vld [vmem:[#allocation2 + $0xbf] sm:$0xff]
      %v2091 = vld [vmem:[#allocation2 + $0xc7] sm:$0xff]
      %v2092 = vld [vmem:[#allocation2 + $0xcf] sm:$0xff]
      %v2093 = vld [vmem:[#allocation2 + $0xd7] sm:$0xff]
      %v2094 = vld [vmem:[#allocation2 + $0xdf] sm:$0xff]
      %v2095 = vld [vmem:[#allocation2 + $0xe7] sm:$0xff]
      %v2096 = vld [vmem:[#allocation2 + $0xef] sm:$0xff]
      %v2097 = vld [vmem:[#allocation2 + $0xf7] sm:$0xff]
      %v2098 = vld [vmem:[#allocation2 + $0xff] sm:$0xff]
      %v2099 = vld [vmem:[#allocation2 + $0x107] sm:$0xff]
      %v2100 = vld [vmem:[#allocation2 + $0x10f] sm:$0xff]
      %v2101 = vld [vmem:[#allocation2 + $0x117] sm:$0xff]
      %v2102 = vld [vmem:[#allocation2 + $0x11f] sm:$0xff]
      %v2103 = vld [vmem:[#allocation2 + $0x127] sm:$0xff]
      %v2104 = vsel %vm851, %v2072, 0.0
      %v2105 = vsel %vm852, %v2073, 0.0
      %v2106 = vsel %vm853, %v2074, 0.0
      %v2107 = vsel %vm854, %v2075, 0.0
      %v2108 = vsel %vm855, %v2076, 0.0
      %v2109 = vsel %vm856, %v2077, 0.0
      %v2110 = vsel %vm857, %v2078, 0.0
      %v2111 = vsel %vm858, %v2079, 0.0
      %v2112 = vsel %vm859, %v2080, 0.0
      %v2113 = vsel %vm860, %v2081, 0.0
      %v2114 = vsel %vm861, %v2082, 0.0
      %v2115 = vsel %vm862, %v2083, 0.0
      %v2116 = vsel %vm863, %v2084, 0.0
      %v2117 = vsel %vm864, %v2085, 0.0
      %v2118 = vsel %vm865, %v2086, 0.0
      %v2119 = vsel %vm866, %v2087, 0.0
      %v2120 = vsel %vm867, %v2088, 0.0
      %v2121 = vsel %vm868, %v2089, 0.0
      %v2122 = vsel %vm869, %v2090, 0.0
      %v2123 = vsel %vm870, %v2091, 0.0
      %v2124 = vsel %vm871, %v2092, 0.0
      %v2125 = vsel %vm872, %v2093, 0.0
      %v2126 = vsel %vm873, %v2094, 0.0
      %v2127 = vsel %vm874, %v2095, 0.0
      %v2128 = vsel %vm875, %v2096, 0.0
      %v2129 = vsel %vm876, %v2097, 0.0
      %v2130 = vsel %vm877, %v2098, 0.0
      %v2131 = vsel %vm878, %v2099, 0.0
      %v2132 = vsel %vm879, %v2100, 0.0
      %v2133 = vsel %vm880, %v2101, 0.0
      %v2134 = vsel %vm881, %v2102, 0.0
      %v2135 = vsel %vm882, %v2103, 0.0
      %2168 = vrot.lane.b32.xlu0 %v2104, 48
      %v2169 = vpop.permute.xlu0 %2168
      %2170 = vrot.lane.b32.xlu0 %v2105, 48
      %v2171 = vpop.permute.xlu0 %2170
      %2172 = vrot.lane.b32.xlu0 %v2106, 48
      %v2173 = vpop.permute.xlu0 %2172
      %2174 = vrot.lane.b32.xlu0 %v2107, 48
      %v2175 = vpop.permute.xlu0 %2174
      %2176 = vrot.lane.b32.xlu0 %v2108, 48
      %v2177 = vpop.permute.xlu0 %2176
      %2178 = vrot.lane.b32.xlu0 %v2109, 48
      %v2179 = vpop.permute.xlu0 %2178
      %2180 = vrot.lane.b32.xlu0 %v2110, 48
      %v2181 = vpop.permute.xlu0 %2180
      %2182 = vrot.lane.b32.xlu0 %v2111, 48
      %v2183 = vpop.permute.xlu0 %2182
      %2184 = vrot.lane.b32.xlu0 %v2112, 48
      %v2185 = vpop.permute.xlu0 %2184
      %2186 = vrot.lane.b32.xlu0 %v2113, 48
      %v2187 = vpop.permute.xlu0 %2186
      %2188 = vrot.lane.b32.xlu0 %v2114, 48
      %v2189 = vpop.permute.xlu0 %2188
      %2190 = vrot.lane.b32.xlu0 %v2115, 48
      %v2191 = vpop.permute.xlu0 %2190
      %2192 = vrot.lane.b32.xlu0 %v2116, 48
      %v2193 = vpop.permute.xlu0 %2192
      %2194 = vrot.lane.b32.xlu0 %v2117, 48
      %v2195 = vpop.permute.xlu0 %2194
      %2196 = vrot.lane.b32.xlu0 %v2118, 48
      %v2197 = vpop.permute.xlu0 %2196
      %2198 = vrot.lane.b32.xlu0 %v2119, 48
      %v2199 = vpop.permute.xlu0 %2198
      %2200 = vrot.lane.b32.xlu0 %v2120, 48
      %v2201 = vpop.permute.xlu0 %2200
      %2202 = vrot.lane.b32.xlu0 %v2121, 48
      %v2203 = vpop.permute.xlu0 %2202
      %2204 = vrot.lane.b32.xlu0 %v2122, 48
      %v2205 = vpop.permute.xlu0 %2204
      %2206 = vrot.lane.b32.xlu0 %v2123, 48
      %v2207 = vpop.permute.xlu0 %2206
      %2208 = vrot.lane.b32.xlu0 %v2124, 48
      %v2209 = vpop.permute.xlu0 %2208
      %2210 = vrot.lane.b32.xlu0 %v2125, 48
      %v2211 = vpop.permute.xlu0 %2210
      %2212 = vrot.lane.b32.xlu0 %v2126, 48
      %v2213 = vpop.permute.xlu0 %2212
      %2214 = vrot.lane.b32.xlu0 %v2127, 48
      %v2215 = vpop.permute.xlu0 %2214
      %2216 = vrot.lane.b32.xlu0 %v2128, 48
      %v2217 = vpop.permute.xlu0 %2216
      %2218 = vrot.lane.b32.xlu0 %v2129, 48
      %v2219 = vpop.permute.xlu0 %2218
      %2220 = vrot.lane.b32.xlu0 %v2130, 48
      %v2221 = vpop.permute.xlu0 %2220
      %2222 = vrot.lane.b32.xlu0 %v2131, 48
      %v2223 = vpop.permute.xlu0 %2222
      %2224 = vrot.lane.b32.xlu0 %v2132, 48
      %v2225 = vpop.permute.xlu0 %2224
      %2226 = vrot.lane.b32.xlu0 %v2133, 48
      %v2227 = vpop.permute.xlu0 %2226
      %2228 = vrot.lane.b32.xlu0 %v2134, 48
      %v2229 = vpop.permute.xlu0 %2228
      %2230 = vrot.lane.b32.xlu0 %v2135, 48
      %v2231 = vpop.permute.xlu0 %2230
      %vm2264 = vcmask 458112
      %2265 = vst.msk [vmem:[#allocation4] sm:$0xff] %vm2264, %v2169
      %2266 = vst.msk [vmem:[#allocation4 + $0x8] sm:$0xff] %vm2264, %v2171
      %2267 = vst.msk [vmem:[#allocation4 + $0x10] sm:$0xff] %vm2264, %v2173
      %2268 = vst.msk [vmem:[#allocation4 + $0x18] sm:$0xff] %vm2264, %v2175
      %2269 = vst.msk [vmem:[#allocation4 + $0x20] sm:$0xff] %vm2264, %v2177
      %2270 = vst.msk [vmem:[#allocation4 + $0x28] sm:$0xff] %vm2264, %v2179
      %2271 = vst.msk [vmem:[#allocation4 + $0x30] sm:$0xff] %vm2264, %v2181
      %2272 = vst.msk [vmem:[#allocation4 + $0x38] sm:$0xff] %vm2264, %v2183
      %2273 = vst.msk [vmem:[#allocation4 + $0x40] sm:$0xff] %vm2264, %v2185
      %2274 = vst.msk [vmem:[#allocation4 + $0x48] sm:$0xff] %vm2264, %v2187
      %2275 = vst.msk [vmem:[#allocation4 + $0x50] sm:$0xff] %vm2264, %v2189
      %2276 = vst.msk [vmem:[#allocation4 + $0x58] sm:$0xff] %vm2264, %v2191
      %2277 = vst.msk [vmem:[#allocation4 + $0x60] sm:$0xff] %vm2264, %v2193
      %2278 = vst.msk [vmem:[#allocation4 + $0x68] sm:$0xff] %vm2264, %v2195
      %2279 = vst.msk [vmem:[#allocation4 + $0x70] sm:$0xff] %vm2264, %v2197
      %2280 = vst.msk [vmem:[#allocation4 + $0x78] sm:$0xff] %vm2264, %v2199
      %2281 = vst.msk [vmem:[#allocation4 + $0x80] sm:$0xff] %vm2264, %v2201
      %2282 = vst.msk [vmem:[#allocation4 + $0x88] sm:$0xff] %vm2264, %v2203
      %2283 = vst.msk [vmem:[#allocation4 + $0x90] sm:$0xff] %vm2264, %v2205
      %2284 = vst.msk [vmem:[#allocation4 + $0x98] sm:$0xff] %vm2264, %v2207
      %2285 = vst.msk [vmem:[#allocation4 + $0xa0] sm:$0xff] %vm2264, %v2209
      %2286 = vst.msk [vmem:[#allocation4 + $0xa8] sm:$0xff] %vm2264, %v2211
      %2287 = vst.msk [vmem:[#allocation4 + $0xb0] sm:$0xff] %vm2264, %v2213
      %2288 = vst.msk [vmem:[#allocation4 + $0xb8] sm:$0xff] %vm2264, %v2215
      %2289 = vst.msk [vmem:[#allocation4 + $0xc0] sm:$0xff] %vm2264, %v2217
      %2290 = vst.msk [vmem:[#allocation4 + $0xc8] sm:$0xff] %vm2264, %v2219
      %2291 = vst.msk [vmem:[#allocation4 + $0xd0] sm:$0xff] %vm2264, %v2221
      %2292 = vst.msk [vmem:[#allocation4 + $0xd8] sm:$0xff] %vm2264, %v2223
      %2293 = vst.msk [vmem:[#allocation4 + $0xe0] sm:$0xff] %vm2264, %v2225
      %2294 = vst.msk [vmem:[#allocation4 + $0xe8] sm:$0xff] %vm2264, %v2227
      %2295 = vst.msk [vmem:[#allocation4 + $0xf0] sm:$0xff] %vm2264, %v2229
      %2296 = vst.msk [vmem:[#allocation4 + $0xf8] sm:$0xff] %vm2264, %v2231
      %v2297 = vld [vmem:[#allocation2 + $0x30] sm:$0xff]
      %v2298 = vld [vmem:[#allocation2 + $0x38] sm:$0xff]
      %v2299 = vld [vmem:[#allocation2 + $0x40] sm:$0xff]
      %v2300 = vld [vmem:[#allocation2 + $0x48] sm:$0xff]
      %v2301 = vld [vmem:[#allocation2 + $0x50] sm:$0xff]
      %v2302 = vld [vmem:[#allocation2 + $0x58] sm:$0xff]
      %v2303 = vld [vmem:[#allocation2 + $0x60] sm:$0xff]
      %v2304 = vld [vmem:[#allocation2 + $0x68] sm:$0xff]
      %v2305 = vld [vmem:[#allocation2 + $0x70] sm:$0xff]
      %v2306 = vld [vmem:[#allocation2 + $0x78] sm:$0xff]
      %v2307 = vld [vmem:[#allocation2 + $0x80] sm:$0xff]
      %v2308 = vld [vmem:[#allocation2 + $0x88] sm:$0xff]
      %v2309 = vld [vmem:[#allocation2 + $0x90] sm:$0xff]
      %v2310 = vld [vmem:[#allocation2 + $0x98] sm:$0xff]
      %v2311 = vld [vmem:[#allocation2 + $0xa0] sm:$0xff]
      %v2312 = vld [vmem:[#allocation2 + $0xa8] sm:$0xff]
      %v2313 = vld [vmem:[#allocation2 + $0xb0] sm:$0xff]
      %v2314 = vld [vmem:[#allocation2 + $0xb8] sm:$0xff]
      %v2315 = vld [vmem:[#allocation2 + $0xc0] sm:$0xff]
      %v2316 = vld [vmem:[#allocation2 + $0xc8] sm:$0xff]
      %v2317 = vld [vmem:[#allocation2 + $0xd0] sm:$0xff]
      %v2318 = vld [vmem:[#allocation2 + $0xd8] sm:$0xff]
      %v2319 = vld [vmem:[#allocation2 + $0xe0] sm:$0xff]
      %v2320 = vld [vmem:[#allocation2 + $0xe8] sm:$0xff]
      %v2321 = vld [vmem:[#allocation2 + $0xf0] sm:$0xff]
      %v2322 = vld [vmem:[#allocation2 + $0xf8] sm:$0xff]
      %v2323 = vld [vmem:[#allocation2 + $0x100] sm:$0xff]
      %v2324 = vld [vmem:[#allocation2 + $0x108] sm:$0xff]
      %v2325 = vld [vmem:[#allocation2 + $0x110] sm:$0xff]
      %v2326 = vld [vmem:[#allocation2 + $0x118] sm:$0xff]
      %v2327 = vld [vmem:[#allocation2 + $0x120] sm:$0xff]
      %v2328 = vld [vmem:[#allocation2 + $0x128] sm:$0xff]
      %2361 = vrot.lane.b32.xlu0 %v2297, 56
      %v2362 = vpop.permute.xlu0 %2361
      %2363 = vrot.lane.b32.xlu0 %v2298, 56
      %v2364 = vpop.permute.xlu0 %2363
      %2365 = vrot.lane.b32.xlu0 %v2299, 56
      %v2366 = vpop.permute.xlu0 %2365
      %2367 = vrot.lane.b32.xlu0 %v2300, 56
      %v2368 = vpop.permute.xlu0 %2367
      %2369 = vrot.lane.b32.xlu0 %v2301, 56
      %v2370 = vpop.permute.xlu0 %2369
      %2371 = vrot.lane.b32.xlu0 %v2302, 56
      %v2372 = vpop.permute.xlu0 %2371
      %2373 = vrot.lane.b32.xlu0 %v2303, 56
      %v2374 = vpop.permute.xlu0 %2373
      %2375 = vrot.lane.b32.xlu0 %v2304, 56
      %v2376 = vpop.permute.xlu0 %2375
      %2377 = vrot.lane.b32.xlu0 %v2305, 56
      %v2378 = vpop.permute.xlu0 %2377
      %2379 = vrot.lane.b32.xlu0 %v2306, 56
      %v2380 = vpop.permute.xlu0 %2379
      %2381 = vrot.lane.b32.xlu0 %v2307, 56
      %v2382 = vpop.permute.xlu0 %2381
      %2383 = vrot.lane.b32.xlu0 %v2308, 56
      %v2384 = vpop.permute.xlu0 %2383
      %2385 = vrot.lane.b32.xlu0 %v2309, 56
      %v2386 = vpop.permute.xlu0 %2385
      %2387 = vrot.lane.b32.xlu0 %v2310, 56
      %v2388 = vpop.permute.xlu0 %2387
      %2389 = vrot.lane.b32.xlu0 %v2311, 56
      %v2390 = vpop.permute.xlu0 %2389
      %2391 = vrot.lane.b32.xlu0 %v2312, 56
      %v2392 = vpop.permute.xlu0 %2391
      %2393 = vrot.lane.b32.xlu0 %v2313, 56
      %v2394 = vpop.permute.xlu0 %2393
      %2395 = vrot.lane.b32.xlu0 %v2314, 56
      %v2396 = vpop.permute.xlu0 %2395
      %2397 = vrot.lane.b32.xlu0 %v2315, 56
      %v2398 = vpop.permute.xlu0 %2397
      %2399 = vrot.lane.b32.xlu0 %v2316, 56
      %v2400 = vpop.permute.xlu0 %2399
      %2401 = vrot.lane.b32.xlu0 %v2317, 56
      %v2402 = vpop.permute.xlu0 %2401
      %2403 = vrot.lane.b32.xlu0 %v2318, 56
      %v2404 = vpop.permute.xlu0 %2403
      %2405 = vrot.lane.b32.xlu0 %v2319, 56
      %v2406 = vpop.permute.xlu0 %2405
      %2407 = vrot.lane.b32.xlu0 %v2320, 56
      %v2408 = vpop.permute.xlu0 %2407
      %2409 = vrot.lane.b32.xlu0 %v2321, 56
      %v2410 = vpop.permute.xlu0 %2409
      %2411 = vrot.lane.b32.xlu0 %v2322, 56
      %v2412 = vpop.permute.xlu0 %2411
      %2413 = vrot.lane.b32.xlu0 %v2323, 56
      %v2414 = vpop.permute.xlu0 %2413
      %2415 = vrot.lane.b32.xlu0 %v2324, 56
      %v2416 = vpop.permute.xlu0 %2415
      %2417 = vrot.lane.b32.xlu0 %v2325, 56
      %v2418 = vpop.permute.xlu0 %2417
      %2419 = vrot.lane.b32.xlu0 %v2326, 56
      %v2420 = vpop.permute.xlu0 %2419
      %2421 = vrot.lane.b32.xlu0 %v2327, 56
      %v2422 = vpop.permute.xlu0 %2421
      %2423 = vrot.lane.b32.xlu0 %v2328, 56
      %v2424 = vpop.permute.xlu0 %2423
      %vm2457 = vcmask 523712
      %2458 = vst.msk [vmem:[#allocation4] sm:$0xff] %vm2457, %v2362
      %2459 = vst.msk [vmem:[#allocation4 + $0x8] sm:$0xff] %vm2457, %v2364
      %2460 = vst.msk [vmem:[#allocation4 + $0x10] sm:$0xff] %vm2457, %v2366
      %2461 = vst.msk [vmem:[#allocation4 + $0x18] sm:$0xff] %vm2457, %v2368
      %2462 = vst.msk [vmem:[#allocation4 + $0x20] sm:$0xff] %vm2457, %v2370
      %2463 = vst.msk [vmem:[#allocation4 + $0x28] sm:$0xff] %vm2457, %v2372
      %2464 = vst.msk [vmem:[#allocation4 + $0x30] sm:$0xff] %vm2457, %v2374
      %2465 = vst.msk [vmem:[#allocation4 + $0x38] sm:$0xff] %vm2457, %v2376
      %2466 = vst.msk [vmem:[#allocation4 + $0x40] sm:$0xff] %vm2457, %v2378
      %2467 = vst.msk [vmem:[#allocation4 + $0x48] sm:$0xff] %vm2457, %v2380
      %2468 = vst.msk [vmem:[#allocation4 + $0x50] sm:$0xff] %vm2457, %v2382
      %2469 = vst.msk [vmem:[#allocation4 + $0x58] sm:$0xff] %vm2457, %v2384
      %2470 = vst.msk [vmem:[#allocation4 + $0x60] sm:$0xff] %vm2457, %v2386
      %2471 = vst.msk [vmem:[#allocation4 + $0x68] sm:$0xff] %vm2457, %v2388
      %2472 = vst.msk [vmem:[#allocation4 + $0x70] sm:$0xff] %vm2457, %v2390
      %2473 = vst.msk [vmem:[#allocation4 + $0x78] sm:$0xff] %vm2457, %v2392
      %2474 = vst.msk [vmem:[#allocation4 + $0x80] sm:$0xff] %vm2457, %v2394
      %2475 = vst.msk [vmem:[#allocation4 + $0x88] sm:$0xff] %vm2457, %v2396
      %2476 = vst.msk [vmem:[#allocation4 + $0x90] sm:$0xff] %vm2457, %v2398
      %2477 = vst.msk [vmem:[#allocation4 + $0x98] sm:$0xff] %vm2457, %v2400
      %2478 = vst.msk [vmem:[#allocation4 + $0xa0] sm:$0xff] %vm2457, %v2402
      %2479 = vst.msk [vmem:[#allocation4 + $0xa8] sm:$0xff] %vm2457, %v2404
      %2480 = vst.msk [vmem:[#allocation4 + $0xb0] sm:$0xff] %vm2457, %v2406
      %2481 = vst.msk [vmem:[#allocation4 + $0xb8] sm:$0xff] %vm2457, %v2408
      %2482 = vst.msk [vmem:[#allocation4 + $0xc0] sm:$0xff] %vm2457, %v2410
      %2483 = vst.msk [vmem:[#allocation4 + $0xc8] sm:$0xff] %vm2457, %v2412
      %2484 = vst.msk [vmem:[#allocation4 + $0xd0] sm:$0xff] %vm2457, %v2414
      %2485 = vst.msk [vmem:[#allocation4 + $0xd8] sm:$0xff] %vm2457, %v2416
      %2486 = vst.msk [vmem:[#allocation4 + $0xe0] sm:$0xff] %vm2457, %v2418
      %2487 = vst.msk [vmem:[#allocation4 + $0xe8] sm:$0xff] %vm2457, %v2420
      %2488 = vst.msk [vmem:[#allocation4 + $0xf0] sm:$0xff] %vm2457, %v2422
      %2489 = vst.msk [vmem:[#allocation4 + $0xf8] sm:$0xff] %vm2457, %v2424
      %v2490 = vld [vmem:[#allocation2 + $0x31] sm:$0xff]
      %v2491 = vld [vmem:[#allocation2 + $0x39] sm:$0xff]
      %v2492 = vld [vmem:[#allocation2 + $0x41] sm:$0xff]
      %v2493 = vld [vmem:[#allocation2 + $0x49] sm:$0xff]
      %v2494 = vld [vmem:[#allocation2 + $0x51] sm:$0xff]
      %v2495 = vld [vmem:[#allocation2 + $0x59] sm:$0xff]
      %v2496 = vld [vmem:[#allocation2 + $0x61] sm:$0xff]
      %v2497 = vld [vmem:[#allocation2 + $0x69] sm:$0xff]
      %v2498 = vld [vmem:[#allocation2 + $0x71] sm:$0xff]
      %v2499 = vld [vmem:[#allocation2 + $0x79] sm:$0xff]
      %v2500 = vld [vmem:[#allocation2 + $0x81] sm:$0xff]
      %v2501 = vld [vmem:[#allocation2 + $0x89] sm:$0xff]
      %v2502 = vld [vmem:[#allocation2 + $0x91] sm:$0xff]
      %v2503 = vld [vmem:[#allocation2 + $0x99] sm:$0xff]
      %v2504 = vld [vmem:[#allocation2 + $0xa1] sm:$0xff]
      %v2505 = vld [vmem:[#allocation2 + $0xa9] sm:$0xff]
      %v2506 = vld [vmem:[#allocation2 + $0xb1] sm:$0xff]
      %v2507 = vld [vmem:[#allocation2 + $0xb9] sm:$0xff]
      %v2508 = vld [vmem:[#allocation2 + $0xc1] sm:$0xff]
      %v2509 = vld [vmem:[#allocation2 + $0xc9] sm:$0xff]
      %v2510 = vld [vmem:[#allocation2 + $0xd1] sm:$0xff]
      %v2511 = vld [vmem:[#allocation2 + $0xd9] sm:$0xff]
      %v2512 = vld [vmem:[#allocation2 + $0xe1] sm:$0xff]
      %v2513 = vld [vmem:[#allocation2 + $0xe9] sm:$0xff]
      %v2514 = vld [vmem:[#allocation2 + $0xf1] sm:$0xff]
      %v2515 = vld [vmem:[#allocation2 + $0xf9] sm:$0xff]
      %v2516 = vld [vmem:[#allocation2 + $0x101] sm:$0xff]
      %v2517 = vld [vmem:[#allocation2 + $0x109] sm:$0xff]
      %v2518 = vld [vmem:[#allocation2 + $0x111] sm:$0xff]
      %v2519 = vld [vmem:[#allocation2 + $0x119] sm:$0xff]
      %v2520 = vld [vmem:[#allocation2 + $0x121] sm:$0xff]
      %v2521 = vld [vmem:[#allocation2 + $0x129] sm:$0xff]
      %v2522 = vsel %vm1204, %v2490, 0.0
      %v2523 = vsel %vm1205, %v2491, 0.0
      %v2524 = vsel %vm1206, %v2492, 0.0
      %v2525 = vsel %vm1207, %v2493, 0.0
      %v2526 = vsel %vm1208, %v2494, 0.0
      %v2527 = vsel %vm1209, %v2495, 0.0
      %v2528 = vsel %vm1210, %v2496, 0.0
      %v2529 = vsel %vm1211, %v2497, 0.0
      %v2530 = vsel %vm1212, %v2498, 0.0
      %v2531 = vsel %vm1213, %v2499, 0.0
      %v2532 = vsel %vm1214, %v2500, 0.0
      %v2533 = vsel %vm1215, %v2501, 0.0
      %v2534 = vsel %vm1216, %v2502, 0.0
      %v2535 = vsel %vm1217, %v2503, 0.0
      %v2536 = vsel %vm1218, %v2504, 0.0
      %v2537 = vsel %vm1219, %v2505, 0.0
      %v2538 = vsel %vm1220, %v2506, 0.0
      %v2539 = vsel %vm1221, %v2507, 0.0
      %v2540 = vsel %vm1222, %v2508, 0.0
      %v2541 = vsel %vm1223, %v2509, 0.0
      %v2542 = vsel %vm1224, %v2510, 0.0
      %v2543 = vsel %vm1225, %v2511, 0.0
      %v2544 = vsel %vm1226, %v2512, 0.0
      %v2545 = vsel %vm1227, %v2513, 0.0
      %v2546 = vsel %vm1228, %v2514, 0.0
      %v2547 = vsel %vm1229, %v2515, 0.0
      %v2548 = vsel %vm1230, %v2516, 0.0
      %v2549 = vsel %vm1231, %v2517, 0.0
      %v2550 = vsel %vm1232, %v2518, 0.0
      %v2551 = vsel %vm1233, %v2519, 0.0
      %v2552 = vsel %vm1234, %v2520, 0.0
      %v2553 = vsel %vm1235, %v2521, 0.0
      %2586 = vrot.lane.b32.xlu0 %v2522, 64
      %v2587 = vpop.permute.xlu0 %2586
      %2588 = vrot.lane.b32.xlu0 %v2523, 64
      %v2589 = vpop.permute.xlu0 %2588
      %2590 = vrot.lane.b32.xlu0 %v2524, 64
      %v2591 = vpop.permute.xlu0 %2590
      %2592 = vrot.lane.b32.xlu0 %v2525, 64
      %v2593 = vpop.permute.xlu0 %2592
      %2594 = vrot.lane.b32.xlu0 %v2526, 64
      %v2595 = vpop.permute.xlu0 %2594
      %2596 = vrot.lane.b32.xlu0 %v2527, 64
      %v2597 = vpop.permute.xlu0 %2596
      %2598 = vrot.lane.b32.xlu0 %v2528, 64
      %v2599 = vpop.permute.xlu0 %2598
      %2600 = vrot.lane.b32.xlu0 %v2529, 64
      %v2601 = vpop.permute.xlu0 %2600
      %2602 = vrot.lane.b32.xlu0 %v2530, 64
      %v2603 = vpop.permute.xlu0 %2602
      %2604 = vrot.lane.b32.xlu0 %v2531, 64
      %v2605 = vpop.permute.xlu0 %2604
      %2606 = vrot.lane.b32.xlu0 %v2532, 64
      %v2607 = vpop.permute.xlu0 %2606
      %2608 = vrot.lane.b32.xlu0 %v2533, 64
      %v2609 = vpop.permute.xlu0 %2608
      %2610 = vrot.lane.b32.xlu0 %v2534, 64
      %v2611 = vpop.permute.xlu0 %2610
      %2612 = vrot.lane.b32.xlu0 %v2535, 64
      %v2613 = vpop.permute.xlu0 %2612
      %2614 = vrot.lane.b32.xlu0 %v2536, 64
      %v2615 = vpop.permute.xlu0 %2614
      %2616 = vrot.lane.b32.xlu0 %v2537, 64
      %v2617 = vpop.permute.xlu0 %2616
      %2618 = vrot.lane.b32.xlu0 %v2538, 64
      %v2619 = vpop.permute.xlu0 %2618
      %2620 = vrot.lane.b32.xlu0 %v2539, 64
      %v2621 = vpop.permute.xlu0 %2620
      %2622 = vrot.lane.b32.xlu0 %v2540, 64
      %v2623 = vpop.permute.xlu0 %2622
      %2624 = vrot.lane.b32.xlu0 %v2541, 64
      %v2625 = vpop.permute.xlu0 %2624
      %2626 = vrot.lane.b32.xlu0 %v2542, 64
      %v2627 = vpop.permute.xlu0 %2626
      %2628 = vrot.lane.b32.xlu0 %v2543, 64
      %v2629 = vpop.permute.xlu0 %2628
      %2630 = vrot.lane.b32.xlu0 %v2544, 64
      %v2631 = vpop.permute.xlu0 %2630
      %2632 = vrot.lane.b32.xlu0 %v2545, 64
      %v2633 = vpop.permute.xlu0 %2632
      %2634 = vrot.lane.b32.xlu0 %v2546, 64
      %v2635 = vpop.permute.xlu0 %2634
      %2636 = vrot.lane.b32.xlu0 %v2547, 64
      %v2637 = vpop.permute.xlu0 %2636
      %2638 = vrot.lane.b32.xlu0 %v2548, 64
      %v2639 = vpop.permute.xlu0 %2638
      %2640 = vrot.lane.b32.xlu0 %v2549, 64
      %v2641 = vpop.permute.xlu0 %2640
      %2642 = vrot.lane.b32.xlu0 %v2550, 64
      %v2643 = vpop.permute.xlu0 %2642
      %2644 = vrot.lane.b32.xlu0 %v2551, 64
      %v2645 = vpop.permute.xlu0 %2644
      %2646 = vrot.lane.b32.xlu0 %v2552, 64
      %v2647 = vpop.permute.xlu0 %2646
      %2648 = vrot.lane.b32.xlu0 %v2553, 64
      %v2649 = vpop.permute.xlu0 %2648
      %vm2682 = vcmask 589312
      %2683 = vst.msk [vmem:[#allocation4] sm:$0xff] %vm2682, %v2587
      %2684 = vst.msk [vmem:[#allocation4 + $0x8] sm:$0xff] %vm2682, %v2589
      %2685 = vst.msk [vmem:[#allocation4 + $0x10] sm:$0xff] %vm2682, %v2591
      %2686 = vst.msk [vmem:[#allocation4 + $0x18] sm:$0xff] %vm2682, %v2593
      %2687 = vst.msk [vmem:[#allocation4 + $0x20] sm:$0xff] %vm2682, %v2595
      %2688 = vst.msk [vmem:[#allocation4 + $0x28] sm:$0xff] %vm2682, %v2597
      %2689 = vst.msk [vmem:[#allocation4 + $0x30] sm:$0xff] %vm2682, %v2599
      %2690 = vst.msk [vmem:[#allocation4 + $0x38] sm:$0xff] %vm2682, %v2601
      %2691 = vst.msk [vmem:[#allocation4 + $0x40] sm:$0xff] %vm2682, %v2603
      %2692 = vst.msk [vmem:[#allocation4 + $0x48] sm:$0xff] %vm2682, %v2605
      %2693 = vst.msk [vmem:[#allocation4 + $0x50] sm:$0xff] %vm2682, %v2607
      %2694 = vst.msk [vmem:[#allocation4 + $0x58] sm:$0xff] %vm2682, %v2609
      %2695 = vst.msk [vmem:[#allocation4 + $0x60] sm:$0xff] %vm2682, %v2611
      %2696 = vst.msk [vmem:[#allocation4 + $0x68] sm:$0xff] %vm2682, %v2613
      %2697 = vst.msk [vmem:[#allocation4 + $0x70] sm:$0xff] %vm2682, %v2615
      %2698 = vst.msk [vmem:[#allocation4 + $0x78] sm:$0xff] %vm2682, %v2617
      %2699 = vst.msk [vmem:[#allocation4 + $0x80] sm:$0xff] %vm2682, %v2619
      %2700 = vst.msk [vmem:[#allocation4 + $0x88] sm:$0xff] %vm2682, %v2621
      %2701 = vst.msk [vmem:[#allocation4 + $0x90] sm:$0xff] %vm2682, %v2623
      %2702 = vst.msk [vmem:[#allocation4 + $0x98] sm:$0xff] %vm2682, %v2625
      %2703 = vst.msk [vmem:[#allocation4 + $0xa0] sm:$0xff] %vm2682, %v2627
      %2704 = vst.msk [vmem:[#allocation4 + $0xa8] sm:$0xff] %vm2682, %v2629
      %2705 = vst.msk [vmem:[#allocation4 + $0xb0] sm:$0xff] %vm2682, %v2631
      %2706 = vst.msk [vmem:[#allocation4 + $0xb8] sm:$0xff] %vm2682, %v2633
      %2707 = vst.msk [vmem:[#allocation4 + $0xc0] sm:$0xff] %vm2682, %v2635
      %2708 = vst.msk [vmem:[#allocation4 + $0xc8] sm:$0xff] %vm2682, %v2637
      %2709 = vst.msk [vmem:[#allocation4 + $0xd0] sm:$0xff] %vm2682, %v2639
      %2710 = vst.msk [vmem:[#allocation4 + $0xd8] sm:$0xff] %vm2682, %v2641
      %2711 = vst.msk [vmem:[#allocation4 + $0xe0] sm:$0xff] %vm2682, %v2643
      %2712 = vst.msk [vmem:[#allocation4 + $0xe8] sm:$0xff] %vm2682, %v2645
      %2713 = vst.msk [vmem:[#allocation4 + $0xf0] sm:$0xff] %vm2682, %v2647
      %2714 = vst.msk [vmem:[#allocation4 + $0xf8] sm:$0xff] %vm2682, %v2649
      %v2715 = vld [vmem:[#allocation4] sm:$0xff]
      %v2716 = vld [vmem:[#allocation4 + $0x8] sm:$0xff]
      %v2717 = vld [vmem:[#allocation4 + $0x10] sm:$0xff]
      %v2718 = vld [vmem:[#allocation4 + $0x18] sm:$0xff]
      %v2719 = vld [vmem:[#allocation4 + $0x20] sm:$0xff]
      %v2720 = vld [vmem:[#allocation4 + $0x28] sm:$0xff]
      %v2721 = vld [vmem:[#allocation4 + $0x30] sm:$0xff]
      %v2722 = vld [vmem:[#allocation4 + $0x38] sm:$0xff]
      %v2723 = vld [vmem:[#allocation4 + $0x40] sm:$0xff]
      %v2724 = vld [vmem:[#allocation4 + $0x48] sm:$0xff]
      %v2725 = vld [vmem:[#allocation4 + $0x50] sm:$0xff]
      %v2726 = vld [vmem:[#allocation4 + $0x58] sm:$0xff]
      %v2727 = vld [vmem:[#allocation4 + $0x60] sm:$0xff]
      %v2728 = vld [vmem:[#allocation4 + $0x68] sm:$0xff]
      %v2729 = vld [vmem:[#allocation4 + $0x70] sm:$0xff]
      %v2730 = vld [vmem:[#allocation4 + $0x78] sm:$0xff]
      %v2731 = vld [vmem:[#allocation4 + $0x80] sm:$0xff]
      %v2732 = vld [vmem:[#allocation4 + $0x88] sm:$0xff]
      %v2733 = vld [vmem:[#allocation4 + $0x90] sm:$0xff]
      %v2734 = vld [vmem:[#allocation4 + $0x98] sm:$0xff]
      %v2735 = vld [vmem:[#allocation4 + $0xa0] sm:$0xff]
      %v2736 = vld [vmem:[#allocation4 + $0xa8] sm:$0xff]
      %v2737 = vld [vmem:[#allocation4 + $0xb0] sm:$0xff]
      %v2738 = vld [vmem:[#allocation4 + $0xb8] sm:$0xff]
      %v2739 = vld [vmem:[#allocation4 + $0xc0] sm:$0xff]
      %v2740 = vld [vmem:[#allocation4 + $0xc8] sm:$0xff]
      %v2741 = vld [vmem:[#allocation4 + $0xd0] sm:$0xff]
      %v2742 = vld [vmem:[#allocation4 + $0xd8] sm:$0xff]
      %v2743 = vld [vmem:[#allocation4 + $0xe0] sm:$0xff]
      %v2744 = vld [vmem:[#allocation4 + $0xe8] sm:$0xff]
      %v2745 = vld [vmem:[#allocation4 + $0xf0] sm:$0xff]
      %v2746 = vld [vmem:[#allocation4 + $0xf8] sm:$0xff]
      %v2747 = vld [vmem:[%s1] sm:$0xff]
      %v2748 = vld [vmem:[%s1 + $0x8] sm:$0xff]
      %v2749 = vld [vmem:[%s1 + $0x10] sm:$0xff]
      %v2750 = vld [vmem:[%s1 + $0x18] sm:$0xff]
      %v2751 = vld [vmem:[%s1 + $0x20] sm:$0xff]
      %v2752 = vld [vmem:[%s1 + $0x28] sm:$0xff]
      %v2753 = vld [vmem:[%s1 + $0x30] sm:$0xff]
      %v2754 = vld [vmem:[%s1 + $0x38] sm:$0xff]
      %v2755 = vld [vmem:[%s1 + $0x40] sm:$0xff]
      %v2756 = vld [vmem:[%s2] sm:$0x1]
      %v2758 = vperm.slane %v2756, 0
      %vm2760 = vcmask 588800
      %v2762 = vsel %vm2760, %v2715, 0
      %v2765 = vsel %vm2760, %v2716, 0
      %v2768 = vsel %vm2760, %v2717, 0
      %v2771 = vsel %vm2760, %v2718, 0
      %v2774 = vsel %vm2760, %v2719, 0
      %v2777 = vsel %vm2760, %v2720, 0
      %v2780 = vsel %vm2760, %v2721, 0
      %v2783 = vsel %vm2760, %v2722, 0
      %v2786 = vsel %vm2760, %v2723, 0
      %v2789 = vsel %vm2760, %v2724, 0
      %v2792 = vsel %vm2760, %v2725, 0
      %v2795 = vsel %vm2760, %v2726, 0
      %v2798 = vsel %vm2760, %v2727, 0
      %v2801 = vsel %vm2760, %v2728, 0
      %v2804 = vsel %vm2760, %v2729, 0
      %v2807 = vsel %vm2760, %v2730, 0
      %v2810 = vsel %vm2760, %v2731, 0
      %v2813 = vsel %vm2760, %v2732, 0
      %v2816 = vsel %vm2760, %v2733, 0
      %v2819 = vsel %vm2760, %v2734, 0
      %v2822 = vsel %vm2760, %v2735, 0
      %v2825 = vsel %vm2760, %v2736, 0
      %v2828 = vsel %vm2760, %v2737, 0
      %v2831 = vsel %vm2760, %v2738, 0
      %v2834 = vsel %vm2760, %v2739, 0
      %v2837 = vsel %vm2760, %v2740, 0
      %v2840 = vsel %vm2760, %v2741, 0
      %v2843 = vsel %vm2760, %v2742, 0
      %v2846 = vsel %vm2760, %v2743, 0
      %v2849 = vsel %vm2760, %v2744, 0
      %v2852 = vsel %vm2760, %v2745, 0
      %v2855 = vsel %vm2760, %v2746, 0
      %2857 = vmatpush.msra.mxu0 0.0
      %2858 = vmatpush.msra.mxu0 0.0
      %2859 = vmatpush.msra.mxu0 0.0
      %2860 = vmatpush.msra.mxu0 0.0
      %2861 = vmatpush.msra.mxu0 0.0
      %2862 = vmatpush.msra.mxu0 0.0
      %2863 = vmatpush.msra.mxu0 0.0
      %2864 = vmatpush.msra.mxu0 %v2755
      %2865 = vmatpush.msra.mxu0 %v2754
      %2866 = vmatpush.msra.mxu0 %v2753
      %2867 = vmatpush.msra.mxu0 %v2752
      %2868 = vmatpush.msra.mxu0 %v2751
      %2869 = vmatpush.msra.mxu0 %v2750
      %2870 = vmatpush.msra.mxu0 %v2749
      %2871 = vmatpush.msra.mxu0 %v2748
      %2872 = vmatpush.msra.mxu0 %v2747
      %2873 = vmatmul.f32.gmra.mxu0 %v2762
      %v2874 = vpop.f32.mrf.mxu0
      %v2875 = vadd.f32 %v2758, %v2874
      %2876 = vmatmul.f32.gmra.mxu0 %v2765
      %v2877 = vpop.f32.mrf.mxu0
      %v2878 = vadd.f32 %v2758, %v2877
      %2879 = vmatmul.f32.gmra.mxu0 %v2768
      %v2880 = vpop.f32.mrf.mxu0
      %v2881 = vadd.f32 %v2758, %v2880
      %2882 = vmatmul.f32.gmra.mxu0 %v2771
      %v2883 = vpop.f32.mrf.mxu0
      %v2884 = vadd.f32 %v2758, %v2883
      %2885 = vmatmul.f32.gmra.mxu0 %v2774
      %v2886 = vpop.f32.mrf.mxu0
      %v2887 = vadd.f32 %v2758, %v2886
      %2888 = vmatmul.f32.gmra.mxu0 %v2777
      %v2889 = vpop.f32.mrf.mxu0
      %v2890 = vadd.f32 %v2758, %v2889
      %2891 = vmatmul.f32.gmra.mxu0 %v2780
      %v2892 = vpop.f32.mrf.mxu0
      %v2893 = vadd.f32 %v2758, %v2892
      %2894 = vmatmul.f32.gmra.mxu0 %v2783
      %v2895 = vpop.f32.mrf.mxu0
      %v2896 = vadd.f32 %v2758, %v2895
      %2897 = vmatmul.f32.gmra.mxu0 %v2786
      %v2898 = vpop.f32.mrf.mxu0
      %v2899 = vadd.f32 %v2758, %v2898
      %2900 = vmatmul.f32.gmra.mxu0 %v2789
      %v2901 = vpop.f32.mrf.mxu0
      %v2902 = vadd.f32 %v2758, %v2901
      %2903 = vmatmul.f32.gmra.mxu0 %v2792
      %v2904 = vpop.f32.mrf.mxu0
      %v2905 = vadd.f32 %v2758, %v2904
      %2906 = vmatmul.f32.gmra.mxu0 %v2795
      %v2907 = vpop.f32.mrf.mxu0
      %v2908 = vadd.f32 %v2758, %v2907
      %2909 = vmatmul.f32.gmra.mxu0 %v2798
      %v2910 = vpop.f32.mrf.mxu0
      %v2911 = vadd.f32 %v2758, %v2910
      %2912 = vmatmul.f32.gmra.mxu0 %v2801
      %v2913 = vpop.f32.mrf.mxu0
      %v2914 = vadd.f32 %v2758, %v2913
      %2915 = vmatmul.f32.gmra.mxu0 %v2804
      %v2916 = vpop.f32.mrf.mxu0
      %v2917 = vadd.f32 %v2758, %v2916
      %2918 = vmatmul.f32.gmra.mxu0 %v2807
      %v2919 = vpop.f32.mrf.mxu0
      %v2920 = vadd.f32 %v2758, %v2919
      %2921 = vmatmul.f32.gmra.mxu0 %v2810
      %v2922 = vpop.f32.mrf.mxu0
      %v2923 = vadd.f32 %v2758, %v2922
      %2924 = vmatmul.f32.gmra.mxu0 %v2813
      %v2925 = vpop.f32.mrf.mxu0
      %v2926 = vadd.f32 %v2758, %v2925
      %2927 = vmatmul.f32.gmra.mxu0 %v2816
      %v2928 = vpop.f32.mrf.mxu0
      %v2929 = vadd.f32 %v2758, %v2928
      %2930 = vmatmul.f32.gmra.mxu0 %v2819
      %v2931 = vpop.f32.mrf.mxu0
      %v2932 = vadd.f32 %v2758, %v2931
      %2933 = vmatmul.f32.gmra.mxu0 %v2822
      %v2934 = vpop.f32.mrf.mxu0
      %v2935 = vadd.f32 %v2758, %v2934
      %2936 = vmatmul.f32.gmra.mxu0 %v2825
      %v2937 = vpop.f32.mrf.mxu0
      %v2938 = vadd.f32 %v2758, %v2937
      %2939 = vmatmul.f32.gmra.mxu0 %v2828
      %v2940 = vpop.f32.mrf.mxu0
      %v2941 = vadd.f32 %v2758, %v2940
      %2942 = vmatmul.f32.gmra.mxu0 %v2831
      %v2943 = vpop.f32.mrf.mxu0
      %v2944 = vadd.f32 %v2758, %v2943
      %2945 = vmatmul.f32.gmra.mxu0 %v2834
      %v2946 = vpop.f32.mrf.mxu0
      %v2947 = vadd.f32 %v2758, %v2946
      %2948 = vmatmul.f32.gmra.mxu0 %v2837
      %v2949 = vpop.f32.mrf.mxu0
      %v2950 = vadd.f32 %v2758, %v2949
      %2951 = vmatmul.f32.gmra.mxu0 %v2840
      %v2952 = vpop.f32.mrf.mxu0
      %v2953 = vadd.f32 %v2758, %v2952
      %2954 = vmatmul.f32.gmra.mxu0 %v2843
      %v2955 = vpop.f32.mrf.mxu0
      %v2956 = vadd.f32 %v2758, %v2955
      %2957 = vmatmul.f32.gmra.mxu0 %v2846
      %v2958 = vpop.f32.mrf.mxu0
      %v2959 = vadd.f32 %v2758, %v2958
      %2960 = vmatmul.f32.gmra.mxu0 %v2849
      %v2961 = vpop.f32.mrf.mxu0
      %v2962 = vadd.f32 %v2758, %v2961
      %2963 = vmatmul.f32.gmra.mxu0 %v2852
      %v2964 = vpop.f32.mrf.mxu0
      %v2965 = vadd.f32 %v2758, %v2964
      %2966 = vmatmul.f32.gmra.mxu0 %v2855
      %v2967 = vpop.f32.mrf.mxu0
      %v2968 = vadd.f32 %v2758, %v2967
      %2969 = vdwg.mxu0
      %v2970 = vmax.f32 %v2875, 0.0
      %v2971 = vmax.f32 %v2878, 0.0
      %v2972 = vmax.f32 %v2881, 0.0
      %v2973 = vmax.f32 %v2884, 0.0
      %v2974 = vmax.f32 %v2887, 0.0
      %v2975 = vmax.f32 %v2890, 0.0
      %v2976 = vmax.f32 %v2893, 0.0
      %v2977 = vmax.f32 %v2896, 0.0
      %v2978 = vmax.f32 %v2899, 0.0
      %v2979 = vmax.f32 %v2902, 0.0
      %v2980 = vmax.f32 %v2905, 0.0
      %v2981 = vmax.f32 %v2908, 0.0
      %v2982 = vmax.f32 %v2911, 0.0
      %v2983 = vmax.f32 %v2914, 0.0
      %v2984 = vmax.f32 %v2917, 0.0
      %v2985 = vmax.f32 %v2920, 0.0
      %v2986 = vmax.f32 %v2923, 0.0
      %v2987 = vmax.f32 %v2926, 0.0
      %v2988 = vmax.f32 %v2929, 0.0
      %v2989 = vmax.f32 %v2932, 0.0
      %v2990 = vmax.f32 %v2935, 0.0
      %v2991 = vmax.f32 %v2938, 0.0
      %v2992 = vmax.f32 %v2941, 0.0
      %v2993 = vmax.f32 %v2944, 0.0
      %v2994 = vmax.f32 %v2947, 0.0
      %v2995 = vmax.f32 %v2950, 0.0
      %v2996 = vmax.f32 %v2953, 0.0
      %v2997 = vmax.f32 %v2956, 0.0
      %v2998 = vmax.f32 %v2959, 0.0
      %v2999 = vmax.f32 %v2962, 0.0
      %v3000 = vmax.f32 %v2965, 0.0
      %v3001 = vmax.f32 %v2968, 0.0
      %3002 = vst.msk [vmem:[#allocation3 + $0x20] sm:$0xff] %vm225, %v2970
      %3003 = vst.msk [vmem:[#allocation3 + $0x28] sm:$0xff] %vm225, %v2971
      %3004 = vst.msk [vmem:[#allocation3 + $0x30] sm:$0xff] %vm225, %v2972
      %3005 = vst.msk [vmem:[#allocation3 + $0x38] sm:$0xff] %vm225, %v2973
      %3006 = vst.msk [vmem:[#allocation3 + $0x40] sm:$0xff] %vm225, %v2974
      %3007 = vst.msk [vmem:[#allocation3 + $0x48] sm:$0xff] %vm225, %v2975
      %3008 = vst.msk [vmem:[#allocation3 + $0x50] sm:$0xff] %vm225, %v2976
      %3009 = vst.msk [vmem:[#allocation3 + $0x58] sm:$0xff] %vm225, %v2977
      %3010 = vst.msk [vmem:[#allocation3 + $0x60] sm:$0xff] %vm225, %v2978
      %3011 = vst.msk [vmem:[#allocation3 + $0x68] sm:$0xff] %vm225, %v2979
      %3012 = vst.msk [vmem:[#allocation3 + $0x70] sm:$0xff] %vm225, %v2980
      %3013 = vst.msk [vmem:[#allocation3 + $0x78] sm:$0xff] %vm225, %v2981
      %3014 = vst.msk [vmem:[#allocation3 + $0x80] sm:$0xff] %vm225, %v2982
      %3015 = vst.msk [vmem:[#allocation3 + $0x88] sm:$0xff] %vm225, %v2983
      %3016 = vst.msk [vmem:[#allocation3 + $0x90] sm:$0xff] %vm225, %v2984
      %3017 = vst.msk [vmem:[#allocation3 + $0x98] sm:$0xff] %vm225, %v2985
      %3018 = vst.msk [vmem:[#allocation3 + $0xa0] sm:$0xff] %vm225, %v2986
      %3019 = vst.msk [vmem:[#allocation3 + $0xa8] sm:$0xff] %vm225, %v2987
      %3020 = vst.msk [vmem:[#allocation3 + $0xb0] sm:$0xff] %vm225, %v2988
      %3021 = vst.msk [vmem:[#allocation3 + $0xb8] sm:$0xff] %vm225, %v2989
      %3022 = vst.msk [vmem:[#allocation3 + $0xc0] sm:$0xff] %vm225, %v2990
      %3023 = vst.msk [vmem:[#allocation3 + $0xc8] sm:$0xff] %vm225, %v2991
      %3024 = vst.msk [vmem:[#allocation3 + $0xd0] sm:$0xff] %vm225, %v2992
      %3025 = vst.msk [vmem:[#allocation3 + $0xd8] sm:$0xff] %vm225, %v2993
      %3026 = vst.msk [vmem:[#allocation3 + $0xe0] sm:$0xff] %vm225, %v2994
      %3027 = vst.msk [vmem:[#allocation3 + $0xe8] sm:$0xff] %vm225, %v2995
      %3028 = vst.msk [vmem:[#allocation3 + $0xf0] sm:$0xff] %vm225, %v2996
      %3029 = vst.msk [vmem:[#allocation3 + $0xf8] sm:$0xff] %vm225, %v2997
      %3030 = vst.msk [vmem:[#allocation3 + $0x100] sm:$0xff] %vm225, %v2998
      %3031 = vst.msk [vmem:[#allocation3 + $0x108] sm:$0xff] %vm225, %v2999
      %3032 = vst.msk [vmem:[#allocation3 + $0x110] sm:$0xff] %vm225, %v3000
      %3033 = vst.msk [vmem:[#allocation3 + $0x118] sm:$0xff] %vm225, %v3001
      %v3034 = vld [vmem:[#allocation3 + $0xf] sm:$0xff]
      %v3035 = vld [vmem:[#allocation3 + $0x17] sm:$0xff]
      %v3036 = vld [vmem:[#allocation3 + $0x1f] sm:$0xff]
      %v3037 = vld [vmem:[#allocation3 + $0x27] sm:$0xff]
      %v3038 = vld [vmem:[#allocation3 + $0x2f] sm:$0xff]
      %v3039 = vld [vmem:[#allocation3 + $0x37] sm:$0xff]
      %v3040 = vld [vmem:[#allocation3 + $0x3f] sm:$0xff]
      %v3041 = vld [vmem:[#allocation3 + $0x47] sm:$0xff]
      %v3042 = vld [vmem:[#allocation3 + $0x4f] sm:$0xff]
      %v3043 = vld [vmem:[#allocation3 + $0x57] sm:$0xff]
      %v3044 = vld [vmem:[#allocation3 + $0x5f] sm:$0xff]
      %v3045 = vld [vmem:[#allocation3 + $0x67] sm:$0xff]
      %v3046 = vld [vmem:[#allocation3 + $0x6f] sm:$0xff]
      %v3047 = vld [vmem:[#allocation3 + $0x77] sm:$0xff]
      %v3048 = vld [vmem:[#allocation3 + $0x7f] sm:$0xff]
      %v3049 = vld [vmem:[#allocation3 + $0x87] sm:$0xff]
      %v3050 = vld [vmem:[#allocation3 + $0x8f] sm:$0xff]
      %v3051 = vld [vmem:[#allocation3 + $0x97] sm:$0xff]
      %v3052 = vld [vmem:[#allocation3 + $0x9f] sm:$0xff]
      %v3053 = vld [vmem:[#allocation3 + $0xa7] sm:$0xff]
      %v3054 = vld [vmem:[#allocation3 + $0xaf] sm:$0xff]
      %v3055 = vld [vmem:[#allocation3 + $0xb7] sm:$0xff]
      %v3056 = vld [vmem:[#allocation3 + $0xbf] sm:$0xff]
      %v3057 = vld [vmem:[#allocation3 + $0xc7] sm:$0xff]
      %v3058 = vld [vmem:[#allocation3 + $0xcf] sm:$0xff]
      %v3059 = vld [vmem:[#allocation3 + $0xd7] sm:$0xff]
      %v3060 = vld [vmem:[#allocation3 + $0xdf] sm:$0xff]
      %v3061 = vld [vmem:[#allocation3 + $0xe7] sm:$0xff]
      %v3062 = vld [vmem:[#allocation3 + $0xef] sm:$0xff]
      %v3063 = vld [vmem:[#allocation3 + $0xf7] sm:$0xff]
      %v3064 = vld [vmem:[#allocation3 + $0xff] sm:$0xff]
      %v3065 = vld [vmem:[#allocation3 + $0x107] sm:$0xff]
      %v3066 = vsel %vm851, %v3034, 0.0
      %v3067 = vsel %vm852, %v3035, 0.0
      %v3068 = vsel %vm853, %v3036, 0.0
      %v3069 = vsel %vm854, %v3037, 0.0
      %v3070 = vsel %vm855, %v3038, 0.0
      %v3071 = vsel %vm856, %v3039, 0.0
      %v3072 = vsel %vm857, %v3040, 0.0
      %v3073 = vsel %vm858, %v3041, 0.0
      %v3074 = vsel %vm859, %v3042, 0.0
      %v3075 = vsel %vm860, %v3043, 0.0
      %v3076 = vsel %vm861, %v3044, 0.0
      %v3077 = vsel %vm862, %v3045, 0.0
      %v3078 = vsel %vm863, %v3046, 0.0
      %v3079 = vsel %vm864, %v3047, 0.0
      %v3080 = vsel %vm865, %v3048, 0.0
      %v3081 = vsel %vm866, %v3049, 0.0
      %v3082 = vsel %vm867, %v3050, 0.0
      %v3083 = vsel %vm868, %v3051, 0.0
      %v3084 = vsel %vm869, %v3052, 0.0
      %v3085 = vsel %vm870, %v3053, 0.0
      %v3086 = vsel %vm871, %v3054, 0.0
      %v3087 = vsel %vm872, %v3055, 0.0
      %v3088 = vsel %vm873, %v3056, 0.0
      %v3089 = vsel %vm874, %v3057, 0.0
      %v3090 = vsel %vm875, %v3058, 0.0
      %v3091 = vsel %vm876, %v3059, 0.0
      %v3092 = vsel %vm877, %v3060, 0.0
      %v3093 = vsel %vm878, %v3061, 0.0
      %v3094 = vsel %vm879, %v3062, 0.0
      %v3095 = vsel %vm880, %v3063, 0.0
      %v3096 = vsel %vm881, %v3064, 0.0
      %v3097 = vsel %vm882, %v3065, 0.0
      %3098 = vst.msk [vmem:[#allocation5] sm:$0xff] %vm225, %v3066
      %3099 = vst.msk [vmem:[#allocation5 + $0x8] sm:$0xff] %vm225, %v3067
      %3100 = vst.msk [vmem:[#allocation5 + $0x10] sm:$0xff] %vm225, %v3068
      %3101 = vst.msk [vmem:[#allocation5 + $0x18] sm:$0xff] %vm225, %v3069
      %3102 = vst.msk [vmem:[#allocation5 + $0x20] sm:$0xff] %vm225, %v3070
      %3103 = vst.msk [vmem:[#allocation5 + $0x28] sm:$0xff] %vm225, %v3071
      %3104 = vst.msk [vmem:[#allocation5 + $0x30] sm:$0xff] %vm225, %v3072
      %3105 = vst.msk [vmem:[#allocation5 + $0x38] sm:$0xff] %vm225, %v3073
      %3106 = vst.msk [vmem:[#allocation5 + $0x40] sm:$0xff] %vm225, %v3074
      %3107 = vst.msk [vmem:[#allocation5 + $0x48] sm:$0xff] %vm225, %v3075
      %3108 = vst.msk [vmem:[#allocation5 + $0x50] sm:$0xff] %vm225, %v3076
      %3109 = vst.msk [vmem:[#allocation5 + $0x58] sm:$0xff] %vm225, %v3077
      %3110 = vst.msk [vmem:[#allocation5 + $0x60] sm:$0xff] %vm225, %v3078
      %3111 = vst.msk [vmem:[#allocation5 + $0x68] sm:$0xff] %vm225, %v3079
      %3112 = vst.msk [vmem:[#allocation5 + $0x70] sm:$0xff] %vm225, %v3080
      %3113 = vst.msk [vmem:[#allocation5 + $0x78] sm:$0xff] %vm225, %v3081
      %3114 = vst.msk [vmem:[#allocation5 + $0x80] sm:$0xff] %vm225, %v3082
      %3115 = vst.msk [vmem:[#allocation5 + $0x88] sm:$0xff] %vm225, %v3083
      %3116 = vst.msk [vmem:[#allocation5 + $0x90] sm:$0xff] %vm225, %v3084
      %3117 = vst.msk [vmem:[#allocation5 + $0x98] sm:$0xff] %vm225, %v3085
      %3118 = vst.msk [vmem:[#allocation5 + $0xa0] sm:$0xff] %vm225, %v3086
      %3119 = vst.msk [vmem:[#allocation5 + $0xa8] sm:$0xff] %vm225, %v3087
      %3120 = vst.msk [vmem:[#allocation5 + $0xb0] sm:$0xff] %vm225, %v3088
      %3121 = vst.msk [vmem:[#allocation5 + $0xb8] sm:$0xff] %vm225, %v3089
      %3122 = vst.msk [vmem:[#allocation5 + $0xc0] sm:$0xff] %vm225, %v3090
      %3123 = vst.msk [vmem:[#allocation5 + $0xc8] sm:$0xff] %vm225, %v3091
      %3124 = vst.msk [vmem:[#allocation5 + $0xd0] sm:$0xff] %vm225, %v3092
      %3125 = vst.msk [vmem:[#allocation5 + $0xd8] sm:$0xff] %vm225, %v3093
      %3126 = vst.msk [vmem:[#allocation5 + $0xe0] sm:$0xff] %vm225, %v3094
      %3127 = vst.msk [vmem:[#allocation5 + $0xe8] sm:$0xff] %vm225, %v3095
      %3128 = vst.msk [vmem:[#allocation5 + $0xf0] sm:$0xff] %vm225, %v3096
      %3129 = vst.msk [vmem:[#allocation5 + $0xf8] sm:$0xff] %vm225, %v3097
      %v3130 = vld [vmem:[#allocation3 + $0x10] sm:$0xff]
      %v3131 = vld [vmem:[#allocation3 + $0x18] sm:$0xff]
      %v3132 = vld [vmem:[#allocation3 + $0x20] sm:$0xff]
      %v3133 = vld [vmem:[#allocation3 + $0x28] sm:$0xff]
      %v3134 = vld [vmem:[#allocation3 + $0x30] sm:$0xff]
      %v3135 = vld [vmem:[#allocation3 + $0x38] sm:$0xff]
      %v3136 = vld [vmem:[#allocation3 + $0x40] sm:$0xff]
      %v3137 = vld [vmem:[#allocation3 + $0x48] sm:$0xff]
      %v3138 = vld [vmem:[#allocation3 + $0x50] sm:$0xff]
      %v3139 = vld [vmem:[#allocation3 + $0x58] sm:$0xff]
      %v3140 = vld [vmem:[#allocation3 + $0x60] sm:$0xff]
      %v3141 = vld [vmem:[#allocation3 + $0x68] sm:$0xff]
      %v3142 = vld [vmem:[#allocation3 + $0x70] sm:$0xff]
      %v3143 = vld [vmem:[#allocation3 + $0x78] sm:$0xff]
      %v3144 = vld [vmem:[#allocation3 + $0x80] sm:$0xff]
      %v3145 = vld [vmem:[#allocation3 + $0x88] sm:$0xff]
      %v3146 = vld [vmem:[#allocation3 + $0x90] sm:$0xff]
      %v3147 = vld [vmem:[#allocation3 + $0x98] sm:$0xff]
      %v3148 = vld [vmem:[#allocation3 + $0xa0] sm:$0xff]
      %v3149 = vld [vmem:[#allocation3 + $0xa8] sm:$0xff]
      %v3150 = vld [vmem:[#allocation3 + $0xb0] sm:$0xff]
      %v3151 = vld [vmem:[#allocation3 + $0xb8] sm:$0xff]
      %v3152 = vld [vmem:[#allocation3 + $0xc0] sm:$0xff]
      %v3153 = vld [vmem:[#allocation3 + $0xc8] sm:$0xff]
      %v3154 = vld [vmem:[#allocation3 + $0xd0] sm:$0xff]
      %v3155 = vld [vmem:[#allocation3 + $0xd8] sm:$0xff]
      %v3156 = vld [vmem:[#allocation3 + $0xe0] sm:$0xff]
      %v3157 = vld [vmem:[#allocation3 + $0xe8] sm:$0xff]
      %v3158 = vld [vmem:[#allocation3 + $0xf0] sm:$0xff]
      %v3159 = vld [vmem:[#allocation3 + $0xf8] sm:$0xff]
      %v3160 = vld [vmem:[#allocation3 + $0x100] sm:$0xff]
      %v3161 = vld [vmem:[#allocation3 + $0x108] sm:$0xff]
      %3194 = vrot.lane.b32.xlu0 %v3130, 8
      %v3195 = vpop.permute.xlu0 %3194
      %3196 = vrot.lane.b32.xlu0 %v3131, 8
      %v3197 = vpop.permute.xlu0 %3196
      %3198 = vrot.lane.b32.xlu0 %v3132, 8
      %v3199 = vpop.permute.xlu0 %3198
      %3200 = vrot.lane.b32.xlu0 %v3133, 8
      %v3201 = vpop.permute.xlu0 %3200
      %3202 = vrot.lane.b32.xlu0 %v3134, 8
      %v3203 = vpop.permute.xlu0 %3202
      %3204 = vrot.lane.b32.xlu0 %v3135, 8
      %v3205 = vpop.permute.xlu0 %3204
      %3206 = vrot.lane.b32.xlu0 %v3136, 8
      %v3207 = vpop.permute.xlu0 %3206
      %3208 = vrot.lane.b32.xlu0 %v3137, 8
      %v3209 = vpop.permute.xlu0 %3208
      %3210 = vrot.lane.b32.xlu0 %v3138, 8
      %v3211 = vpop.permute.xlu0 %3210
      %3212 = vrot.lane.b32.xlu0 %v3139, 8
      %v3213 = vpop.permute.xlu0 %3212
      %3214 = vrot.lane.b32.xlu0 %v3140, 8
      %v3215 = vpop.permute.xlu0 %3214
      %3216 = vrot.lane.b32.xlu0 %v3141, 8
      %v3217 = vpop.permute.xlu0 %3216
      %3218 = vrot.lane.b32.xlu0 %v3142, 8
      %v3219 = vpop.permute.xlu0 %3218
      %3220 = vrot.lane.b32.xlu0 %v3143, 8
      %v3221 = vpop.permute.xlu0 %3220
      %3222 = vrot.lane.b32.xlu0 %v3144, 8
      %v3223 = vpop.permute.xlu0 %3222
      %3224 = vrot.lane.b32.xlu0 %v3145, 8
      %v3225 = vpop.permute.xlu0 %3224
      %3226 = vrot.lane.b32.xlu0 %v3146, 8
      %v3227 = vpop.permute.xlu0 %3226
      %3228 = vrot.lane.b32.xlu0 %v3147, 8
      %v3229 = vpop.permute.xlu0 %3228
      %3230 = vrot.lane.b32.xlu0 %v3148, 8
      %v3231 = vpop.permute.xlu0 %3230
      %3232 = vrot.lane.b32.xlu0 %v3149, 8
      %v3233 = vpop.permute.xlu0 %3232
      %3234 = vrot.lane.b32.xlu0 %v3150, 8
      %v3235 = vpop.permute.xlu0 %3234
      %3236 = vrot.lane.b32.xlu0 %v3151, 8
      %v3237 = vpop.permute.xlu0 %3236
      %3238 = vrot.lane.b32.xlu0 %v3152, 8
      %v3239 = vpop.permute.xlu0 %3238
      %3240 = vrot.lane.b32.xlu0 %v3153, 8
      %v3241 = vpop.permute.xlu0 %3240
      %3242 = vrot.lane.b32.xlu0 %v3154, 8
      %v3243 = vpop.permute.xlu0 %3242
      %3244 = vrot.lane.b32.xlu0 %v3155, 8
      %v3245 = vpop.permute.xlu0 %3244
      %3246 = vrot.lane.b32.xlu0 %v3156, 8
      %v3247 = vpop.permute.xlu0 %3246
      %3248 = vrot.lane.b32.xlu0 %v3157, 8
      %v3249 = vpop.permute.xlu0 %3248
      %3250 = vrot.lane.b32.xlu0 %v3158, 8
      %v3251 = vpop.permute.xlu0 %3250
      %3252 = vrot.lane.b32.xlu0 %v3159, 8
      %v3253 = vpop.permute.xlu0 %3252
      %3254 = vrot.lane.b32.xlu0 %v3160, 8
      %v3255 = vpop.permute.xlu0 %3254
      %3256 = vrot.lane.b32.xlu0 %v3161, 8
      %v3257 = vpop.permute.xlu0 %3256
      %3290 = vst.msk [vmem:[#allocation5] sm:$0xff] %vm1107, %v3195
      %3291 = vst.msk [vmem:[#allocation5 + $0x8] sm:$0xff] %vm1107, %v3197
      %3292 = vst.msk [vmem:[#allocation5 + $0x10] sm:$0xff] %vm1107, %v3199
      %3293 = vst.msk [vmem:[#allocation5 + $0x18] sm:$0xff] %vm1107, %v3201
      %3294 = vst.msk [vmem:[#allocation5 + $0x20] sm:$0xff] %vm1107, %v3203
      %3295 = vst.msk [vmem:[#allocation5 + $0x28] sm:$0xff] %vm1107, %v3205
      %3296 = vst.msk [vmem:[#allocation5 + $0x30] sm:$0xff] %vm1107, %v3207
      %3297 = vst.msk [vmem:[#allocation5 + $0x38] sm:$0xff] %vm1107, %v3209
      %3298 = vst.msk [vmem:[#allocation5 + $0x40] sm:$0xff] %vm1107, %v3211
      %3299 = vst.msk [vmem:[#allocation5 + $0x48] sm:$0xff] %vm1107, %v3213
      %3300 = vst.msk [vmem:[#allocation5 + $0x50] sm:$0xff] %vm1107, %v3215
      %3301 = vst.msk [vmem:[#allocation5 + $0x58] sm:$0xff] %vm1107, %v3217
      %3302 = vst.msk [vmem:[#allocation5 + $0x60] sm:$0xff] %vm1107, %v3219
      %3303 = vst.msk [vmem:[#allocation5 + $0x68] sm:$0xff] %vm1107, %v3221
      %3304 = vst.msk [vmem:[#allocation5 + $0x70] sm:$0xff] %vm1107, %v3223
      %3305 = vst.msk [vmem:[#allocation5 + $0x78] sm:$0xff] %vm1107, %v3225
      %3306 = vst.msk [vmem:[#allocation5 + $0x80] sm:$0xff] %vm1107, %v3227
      %3307 = vst.msk [vmem:[#allocation5 + $0x88] sm:$0xff] %vm1107, %v3229
      %3308 = vst.msk [vmem:[#allocation5 + $0x90] sm:$0xff] %vm1107, %v3231
      %3309 = vst.msk [vmem:[#allocation5 + $0x98] sm:$0xff] %vm1107, %v3233
      %3310 = vst.msk [vmem:[#allocation5 + $0xa0] sm:$0xff] %vm1107, %v3235
      %3311 = vst.msk [vmem:[#allocation5 + $0xa8] sm:$0xff] %vm1107, %v3237
      %3312 = vst.msk [vmem:[#allocation5 + $0xb0] sm:$0xff] %vm1107, %v3239
      %3313 = vst.msk [vmem:[#allocation5 + $0xb8] sm:$0xff] %vm1107, %v3241
      %3314 = vst.msk [vmem:[#allocation5 + $0xc0] sm:$0xff] %vm1107, %v3243
      %3315 = vst.msk [vmem:[#allocation5 + $0xc8] sm:$0xff] %vm1107, %v3245
      %3316 = vst.msk [vmem:[#allocation5 + $0xd0] sm:$0xff] %vm1107, %v3247
      %3317 = vst.msk [vmem:[#allocation5 + $0xd8] sm:$0xff] %vm1107, %v3249
      %3318 = vst.msk [vmem:[#allocation5 + $0xe0] sm:$0xff] %vm1107, %v3251
      %3319 = vst.msk [vmem:[#allocation5 + $0xe8] sm:$0xff] %vm1107, %v3253
      %3320 = vst.msk [vmem:[#allocation5 + $0xf0] sm:$0xff] %vm1107, %v3255
      %3321 = vst.msk [vmem:[#allocation5 + $0xf8] sm:$0xff] %vm1107, %v3257
      %v3322 = vld [vmem:[#allocation3 + $0x11] sm:$0xff]
      %v3323 = vld [vmem:[#allocation3 + $0x19] sm:$0xff]
      %v3324 = vld [vmem:[#allocation3 + $0x21] sm:$0xff]
      %v3325 = vld [vmem:[#allocation3 + $0x29] sm:$0xff]
      %v3326 = vld [vmem:[#allocation3 + $0x31] sm:$0xff]
      %v3327 = vld [vmem:[#allocation3 + $0x39] sm:$0xff]
      %v3328 = vld [vmem:[#allocation3 + $0x41] sm:$0xff]
      %v3329 = vld [vmem:[#allocation3 + $0x49] sm:$0xff]
      %v3330 = vld [vmem:[#allocation3 + $0x51] sm:$0xff]
      %v3331 = vld [vmem:[#allocation3 + $0x59] sm:$0xff]
      %v3332 = vld [vmem:[#allocation3 + $0x61] sm:$0xff]
      %v3333 = vld [vmem:[#allocation3 + $0x69] sm:$0xff]
      %v3334 = vld [vmem:[#allocation3 + $0x71] sm:$0xff]
      %v3335 = vld [vmem:[#allocation3 + $0x79] sm:$0xff]
      %v3336 = vld [vmem:[#allocation3 + $0x81] sm:$0xff]
      %v3337 = vld [vmem:[#allocation3 + $0x89] sm:$0xff]
      %v3338 = vld [vmem:[#allocation3 + $0x91] sm:$0xff]
      %v3339 = vld [vmem:[#allocation3 + $0x99] sm:$0xff]
      %v3340 = vld [vmem:[#allocation3 + $0xa1] sm:$0xff]
      %v3341 = vld [vmem:[#allocation3 + $0xa9] sm:$0xff]
      %v3342 = vld [vmem:[#allocation3 + $0xb1] sm:$0xff]
      %v3343 = vld [vmem:[#allocation3 + $0xb9] sm:$0xff]
      %v3344 = vld [vmem:[#allocation3 + $0xc1] sm:$0xff]
      %v3345 = vld [vmem:[#allocation3 + $0xc9] sm:$0xff]
      %v3346 = vld [vmem:[#allocation3 + $0xd1] sm:$0xff]
      %v3347 = vld [vmem:[#allocation3 + $0xd9] sm:$0xff]
      %v3348 = vld [vmem:[#allocation3 + $0xe1] sm:$0xff]
      %v3349 = vld [vmem:[#allocation3 + $0xe9] sm:$0xff]
      %v3350 = vld [vmem:[#allocation3 + $0xf1] sm:$0xff]
      %v3351 = vld [vmem:[#allocation3 + $0xf9] sm:$0xff]
      %v3352 = vld [vmem:[#allocation3 + $0x101] sm:$0xff]
      %v3353 = vld [vmem:[#allocation3 + $0x109] sm:$0xff]
      %v3354 = vsel %vm1204, %v3322, 0.0
      %v3355 = vsel %vm1205, %v3323, 0.0
      %v3356 = vsel %vm1206, %v3324, 0.0
      %v3357 = vsel %vm1207, %v3325, 0.0
      %v3358 = vsel %vm1208, %v3326, 0.0
      %v3359 = vsel %vm1209, %v3327, 0.0
      %v3360 = vsel %vm1210, %v3328, 0.0
      %v3361 = vsel %vm1211, %v3329, 0.0
      %v3362 = vsel %vm1212, %v3330, 0.0
      %v3363 = vsel %vm1213, %v3331, 0.0
      %v3364 = vsel %vm1214, %v3332, 0.0
      %v3365 = vsel %vm1215, %v3333, 0.0
      %v3366 = vsel %vm1216, %v3334, 0.0
      %v3367 = vsel %vm1217, %v3335, 0.0
      %v3368 = vsel %vm1218, %v3336, 0.0
      %v3369 = vsel %vm1219, %v3337, 0.0
      %v3370 = vsel %vm1220, %v3338, 0.0
      %v3371 = vsel %vm1221, %v3339, 0.0
      %v3372 = vsel %vm1222, %v3340, 0.0
      %v3373 = vsel %vm1223, %v3341, 0.0
      %v3374 = vsel %vm1224, %v3342, 0.0
      %v3375 = vsel %vm1225, %v3343, 0.0
      %v3376 = vsel %vm1226, %v3344, 0.0
      %v3377 = vsel %vm1227, %v3345, 0.0
      %v3378 = vsel %vm1228, %v3346, 0.0
      %v3379 = vsel %vm1229, %v3347, 0.0
      %v3380 = vsel %vm1230, %v3348, 0.0
      %v3381 = vsel %vm1231, %v3349, 0.0
      %v3382 = vsel %vm1232, %v3350, 0.0
      %v3383 = vsel %vm1233, %v3351, 0.0
      %v3384 = vsel %vm1234, %v3352, 0.0
      %v3385 = vsel %vm1235, %v3353, 0.0
      %3418 = vrot.lane.b32.xlu0 %v3354, 16
      %v3419 = vpop.permute.xlu0 %3418
      %3420 = vrot.lane.b32.xlu0 %v3355, 16
      %v3421 = vpop.permute.xlu0 %3420
      %3422 = vrot.lane.b32.xlu0 %v3356, 16
      %v3423 = vpop.permute.xlu0 %3422
      %3424 = vrot.lane.b32.xlu0 %v3357, 16
      %v3425 = vpop.permute.xlu0 %3424
      %3426 = vrot.lane.b32.xlu0 %v3358, 16
      %v3427 = vpop.permute.xlu0 %3426
      %3428 = vrot.lane.b32.xlu0 %v3359, 16
      %v3429 = vpop.permute.xlu0 %3428
      %3430 = vrot.lane.b32.xlu0 %v3360, 16
      %v3431 = vpop.permute.xlu0 %3430
      %3432 = vrot.lane.b32.xlu0 %v3361, 16
      %v3433 = vpop.permute.xlu0 %3432
      %3434 = vrot.lane.b32.xlu0 %v3362, 16
      %v3435 = vpop.permute.xlu0 %3434
      %3436 = vrot.lane.b32.xlu0 %v3363, 16
      %v3437 = vpop.permute.xlu0 %3436
      %3438 = vrot.lane.b32.xlu0 %v3364, 16
      %v3439 = vpop.permute.xlu0 %3438
      %3440 = vrot.lane.b32.xlu0 %v3365, 16
      %v3441 = vpop.permute.xlu0 %3440
      %3442 = vrot.lane.b32.xlu0 %v3366, 16
      %v3443 = vpop.permute.xlu0 %3442
      %3444 = vrot.lane.b32.xlu0 %v3367, 16
      %v3445 = vpop.permute.xlu0 %3444
      %3446 = vrot.lane.b32.xlu0 %v3368, 16
      %v3447 = vpop.permute.xlu0 %3446
      %3448 = vrot.lane.b32.xlu0 %v3369, 16
      %v3449 = vpop.permute.xlu0 %3448
      %3450 = vrot.lane.b32.xlu0 %v3370, 16
      %v3451 = vpop.permute.xlu0 %3450
      %3452 = vrot.lane.b32.xlu0 %v3371, 16
      %v3453 = vpop.permute.xlu0 %3452
      %3454 = vrot.lane.b32.xlu0 %v3372, 16
      %v3455 = vpop.permute.xlu0 %3454
      %3456 = vrot.lane.b32.xlu0 %v3373, 16
      %v3457 = vpop.permute.xlu0 %3456
      %3458 = vrot.lane.b32.xlu0 %v3374, 16
      %v3459 = vpop.permute.xlu0 %3458
      %3460 = vrot.lane.b32.xlu0 %v3375, 16
      %v3461 = vpop.permute.xlu0 %3460
      %3462 = vrot.lane.b32.xlu0 %v3376, 16
      %v3463 = vpop.permute.xlu0 %3462
      %3464 = vrot.lane.b32.xlu0 %v3377, 16
      %v3465 = vpop.permute.xlu0 %3464
      %3466 = vrot.lane.b32.xlu0 %v3378, 16
      %v3467 = vpop.permute.xlu0 %3466
      %3468 = vrot.lane.b32.xlu0 %v3379, 16
      %v3469 = vpop.permute.xlu0 %3468
      %3470 = vrot.lane.b32.xlu0 %v3380, 16
      %v3471 = vpop.permute.xlu0 %3470
      %3472 = vrot.lane.b32.xlu0 %v3381, 16
      %v3473 = vpop.permute.xlu0 %3472
      %3474 = vrot.lane.b32.xlu0 %v3382, 16
      %v3475 = vpop.permute.xlu0 %3474
      %3476 = vrot.lane.b32.xlu0 %v3383, 16
      %v3477 = vpop.permute.xlu0 %3476
      %3478 = vrot.lane.b32.xlu0 %v3384, 16
      %v3479 = vpop.permute.xlu0 %3478
      %3480 = vrot.lane.b32.xlu0 %v3385, 16
      %v3481 = vpop.permute.xlu0 %3480
      %3514 = vst.msk [vmem:[#allocation5] sm:$0xff] %vm1396, %v3419
      %3515 = vst.msk [vmem:[#allocation5 + $0x8] sm:$0xff] %vm1396, %v3421
      %3516 = vst.msk [vmem:[#allocation5 + $0x10] sm:$0xff] %vm1396, %v3423
      %3517 = vst.msk [vmem:[#allocation5 + $0x18] sm:$0xff] %vm1396, %v3425
      %3518 = vst.msk [vmem:[#allocation5 + $0x20] sm:$0xff] %vm1396, %v3427
      %3519 = vst.msk [vmem:[#allocation5 + $0x28] sm:$0xff] %vm1396, %v3429
      %3520 = vst.msk [vmem:[#allocation5 + $0x30] sm:$0xff] %vm1396, %v3431
      %3521 = vst.msk [vmem:[#allocation5 + $0x38] sm:$0xff] %vm1396, %v3433
      %3522 = vst.msk [vmem:[#allocation5 + $0x40] sm:$0xff] %vm1396, %v3435
      %3523 = vst.msk [vmem:[#allocation5 + $0x48] sm:$0xff] %vm1396, %v3437
      %3524 = vst.msk [vmem:[#allocation5 + $0x50] sm:$0xff] %vm1396, %v3439
      %3525 = vst.msk [vmem:[#allocation5 + $0x58] sm:$0xff] %vm1396, %v3441
      %3526 = vst.msk [vmem:[#allocation5 + $0x60] sm:$0xff] %vm1396, %v3443
      %3527 = vst.msk [vmem:[#allocation5 + $0x68] sm:$0xff] %vm1396, %v3445
      %3528 = vst.msk [vmem:[#allocation5 + $0x70] sm:$0xff] %vm1396, %v3447
      %3529 = vst.msk [vmem:[#allocation5 + $0x78] sm:$0xff] %vm1396, %v3449
      %3530 = vst.msk [vmem:[#allocation5 + $0x80] sm:$0xff] %vm1396, %v3451
      %3531 = vst.msk [vmem:[#allocation5 + $0x88] sm:$0xff] %vm1396, %v3453
      %3532 = vst.msk [vmem:[#allocation5 + $0x90] sm:$0xff] %vm1396, %v3455
      %3533 = vst.msk [vmem:[#allocation5 + $0x98] sm:$0xff] %vm1396, %v3457
      %3534 = vst.msk [vmem:[#allocation5 + $0xa0] sm:$0xff] %vm1396, %v3459
      %3535 = vst.msk [vmem:[#allocation5 + $0xa8] sm:$0xff] %vm1396, %v3461
      %3536 = vst.msk [vmem:[#allocation5 + $0xb0] sm:$0xff] %vm1396, %v3463
      %3537 = vst.msk [vmem:[#allocation5 + $0xb8] sm:$0xff] %vm1396, %v3465
      %3538 = vst.msk [vmem:[#allocation5 + $0xc0] sm:$0xff] %vm1396, %v3467
      %3539 = vst.msk [vmem:[#allocation5 + $0xc8] sm:$0xff] %vm1396, %v3469
      %3540 = vst.msk [vmem:[#allocation5 + $0xd0] sm:$0xff] %vm1396, %v3471
      %3541 = vst.msk [vmem:[#allocation5 + $0xd8] sm:$0xff] %vm1396, %v3473
      %3542 = vst.msk [vmem:[#allocation5 + $0xe0] sm:$0xff] %vm1396, %v3475
      %3543 = vst.msk [vmem:[#allocation5 + $0xe8] sm:$0xff] %vm1396, %v3477
      %3544 = vst.msk [vmem:[#allocation5 + $0xf0] sm:$0xff] %vm1396, %v3479
      %3545 = vst.msk [vmem:[#allocation5 + $0xf8] sm:$0xff] %vm1396, %v3481
      %v3546 = vld [vmem:[#allocation3 + $0x1f] sm:$0xff]
      %v3547 = vld [vmem:[#allocation3 + $0x27] sm:$0xff]
      %v3548 = vld [vmem:[#allocation3 + $0x2f] sm:$0xff]
      %v3549 = vld [vmem:[#allocation3 + $0x37] sm:$0xff]
      %v3550 = vld [vmem:[#allocation3 + $0x3f] sm:$0xff]
      %v3551 = vld [vmem:[#allocation3 + $0x47] sm:$0xff]
      %v3552 = vld [vmem:[#allocation3 + $0x4f] sm:$0xff]
      %v3553 = vld [vmem:[#allocation3 + $0x57] sm:$0xff]
      %v3554 = vld [vmem:[#allocation3 + $0x5f] sm:$0xff]
      %v3555 = vld [vmem:[#allocation3 + $0x67] sm:$0xff]
      %v3556 = vld [vmem:[#allocation3 + $0x6f] sm:$0xff]
      %v3557 = vld [vmem:[#allocation3 + $0x77] sm:$0xff]
      %v3558 = vld [vmem:[#allocation3 + $0x7f] sm:$0xff]
      %v3559 = vld [vmem:[#allocation3 + $0x87] sm:$0xff]
      %v3560 = vld [vmem:[#allocation3 + $0x8f] sm:$0xff]
      %v3561 = vld [vmem:[#allocation3 + $0x97] sm:$0xff]
      %v3562 = vld [vmem:[#allocation3 + $0x9f] sm:$0xff]
      %v3563 = vld [vmem:[#allocation3 + $0xa7] sm:$0xff]
      %v3564 = vld [vmem:[#allocation3 + $0xaf] sm:$0xff]
      %v3565 = vld [vmem:[#allocation3 + $0xb7] sm:$0xff]
      %v3566 = vld [vmem:[#allocation3 + $0xbf] sm:$0xff]
      %v3567 = vld [vmem:[#allocation3 + $0xc7] sm:$0xff]
      %v3568 = vld [vmem:[#allocation3 + $0xcf] sm:$0xff]
      %v3569 = vld [vmem:[#allocation3 + $0xd7] sm:$0xff]
      %v3570 = vld [vmem:[#allocation3 + $0xdf] sm:$0xff]
      %v3571 = vld [vmem:[#allocation3 + $0xe7] sm:$0xff]
      %v3572 = vld [vmem:[#allocation3 + $0xef] sm:$0xff]
      %v3573 = vld [vmem:[#allocation3 + $0xf7] sm:$0xff]
      %v3574 = vld [vmem:[#allocation3 + $0xff] sm:$0xff]
      %v3575 = vld [vmem:[#allocation3 + $0x107] sm:$0xff]
      %v3576 = vld [vmem:[#allocation3 + $0x10f] sm:$0xff]
      %v3577 = vld [vmem:[#allocation3 + $0x117] sm:$0xff]
      %v3578 = vsel %vm851, %v3546, 0.0
      %v3579 = vsel %vm852, %v3547, 0.0
      %v3580 = vsel %vm853, %v3548, 0.0
      %v3581 = vsel %vm854, %v3549, 0.0
      %v3582 = vsel %vm855, %v3550, 0.0
      %v3583 = vsel %vm856, %v3551, 0.0
      %v3584 = vsel %vm857, %v3552, 0.0
      %v3585 = vsel %vm858, %v3553, 0.0
      %v3586 = vsel %vm859, %v3554, 0.0
      %v3587 = vsel %vm860, %v3555, 0.0
      %v3588 = vsel %vm861, %v3556, 0.0
      %v3589 = vsel %vm862, %v3557, 0.0
      %v3590 = vsel %vm863, %v3558, 0.0
      %v3591 = vsel %vm864, %v3559, 0.0
      %v3592 = vsel %vm865, %v3560, 0.0
      %v3593 = vsel %vm866, %v3561, 0.0
      %v3594 = vsel %vm867, %v3562, 0.0
      %v3595 = vsel %vm868, %v3563, 0.0
      %v3596 = vsel %vm869, %v3564, 0.0
      %v3597 = vsel %vm870, %v3565, 0.0
      %v3598 = vsel %vm871, %v3566, 0.0
      %v3599 = vsel %vm872, %v3567, 0.0
      %v3600 = vsel %vm873, %v3568, 0.0
      %v3601 = vsel %vm874, %v3569, 0.0
      %v3602 = vsel %vm875, %v3570, 0.0
      %v3603 = vsel %vm876, %v3571, 0.0
      %v3604 = vsel %vm877, %v3572, 0.0
      %v3605 = vsel %vm878, %v3573, 0.0
      %v3606 = vsel %vm879, %v3574, 0.0
      %v3607 = vsel %vm880, %v3575, 0.0
      %v3608 = vsel %vm881, %v3576, 0.0
      %v3609 = vsel %vm882, %v3577, 0.0
      %3642 = vrot.lane.b32.xlu0 %v3578, 24
      %v3643 = vpop.permute.xlu0 %3642
      %3644 = vrot.lane.b32.xlu0 %v3579, 24
      %v3645 = vpop.permute.xlu0 %3644
      %3646 = vrot.lane.b32.xlu0 %v3580, 24
      %v3647 = vpop.permute.xlu0 %3646
      %3648 = vrot.lane.b32.xlu0 %v3581, 24
      %v3649 = vpop.permute.xlu0 %3648
      %3650 = vrot.lane.b32.xlu0 %v3582, 24
      %v3651 = vpop.permute.xlu0 %3650
      %3652 = vrot.lane.b32.xlu0 %v3583, 24
      %v3653 = vpop.permute.xlu0 %3652
      %3654 = vrot.lane.b32.xlu0 %v3584, 24
      %v3655 = vpop.permute.xlu0 %3654
      %3656 = vrot.lane.b32.xlu0 %v3585, 24
      %v3657 = vpop.permute.xlu0 %3656
      %3658 = vrot.lane.b32.xlu0 %v3586, 24
      %v3659 = vpop.permute.xlu0 %3658
      %3660 = vrot.lane.b32.xlu0 %v3587, 24
      %v3661 = vpop.permute.xlu0 %3660
      %3662 = vrot.lane.b32.xlu0 %v3588, 24
      %v3663 = vpop.permute.xlu0 %3662
      %3664 = vrot.lane.b32.xlu0 %v3589, 24
      %v3665 = vpop.permute.xlu0 %3664
      %3666 = vrot.lane.b32.xlu0 %v3590, 24
      %v3667 = vpop.permute.xlu0 %3666
      %3668 = vrot.lane.b32.xlu0 %v3591, 24
      %v3669 = vpop.permute.xlu0 %3668
      %3670 = vrot.lane.b32.xlu0 %v3592, 24
      %v3671 = vpop.permute.xlu0 %3670
      %3672 = vrot.lane.b32.xlu0 %v3593, 24
      %v3673 = vpop.permute.xlu0 %3672
      %3674 = vrot.lane.b32.xlu0 %v3594, 24
      %v3675 = vpop.permute.xlu0 %3674
      %3676 = vrot.lane.b32.xlu0 %v3595, 24
      %v3677 = vpop.permute.xlu0 %3676
      %3678 = vrot.lane.b32.xlu0 %v3596, 24
      %v3679 = vpop.permute.xlu0 %3678
      %3680 = vrot.lane.b32.xlu0 %v3597, 24
      %v3681 = vpop.permute.xlu0 %3680
      %3682 = vrot.lane.b32.xlu0 %v3598, 24
      %v3683 = vpop.permute.xlu0 %3682
      %3684 = vrot.lane.b32.xlu0 %v3599, 24
      %v3685 = vpop.permute.xlu0 %3684
      %3686 = vrot.lane.b32.xlu0 %v3600, 24
      %v3687 = vpop.permute.xlu0 %3686
      %3688 = vrot.lane.b32.xlu0 %v3601, 24
      %v3689 = vpop.permute.xlu0 %3688
      %3690 = vrot.lane.b32.xlu0 %v3602, 24
      %v3691 = vpop.permute.xlu0 %3690
      %3692 = vrot.lane.b32.xlu0 %v3603, 24
      %v3693 = vpop.permute.xlu0 %3692
      %3694 = vrot.lane.b32.xlu0 %v3604, 24
      %v3695 = vpop.permute.xlu0 %3694
      %3696 = vrot.lane.b32.xlu0 %v3605, 24
      %v3697 = vpop.permute.xlu0 %3696
      %3698 = vrot.lane.b32.xlu0 %v3606, 24
      %v3699 = vpop.permute.xlu0 %3698
      %3700 = vrot.lane.b32.xlu0 %v3607, 24
      %v3701 = vpop.permute.xlu0 %3700
      %3702 = vrot.lane.b32.xlu0 %v3608, 24
      %v3703 = vpop.permute.xlu0 %3702
      %3704 = vrot.lane.b32.xlu0 %v3609, 24
      %v3705 = vpop.permute.xlu0 %3704
      %3738 = vst.msk [vmem:[#allocation5] sm:$0xff] %vm1621, %v3643
      %3739 = vst.msk [vmem:[#allocation5 + $0x8] sm:$0xff] %vm1621, %v3645
      %3740 = vst.msk [vmem:[#allocation5 + $0x10] sm:$0xff] %vm1621, %v3647
      %3741 = vst.msk [vmem:[#allocation5 + $0x18] sm:$0xff] %vm1621, %v3649
      %3742 = vst.msk [vmem:[#allocation5 + $0x20] sm:$0xff] %vm1621, %v3651
      %3743 = vst.msk [vmem:[#allocation5 + $0x28] sm:$0xff] %vm1621, %v3653
      %3744 = vst.msk [vmem:[#allocation5 + $0x30] sm:$0xff] %vm1621, %v3655
      %3745 = vst.msk [vmem:[#allocation5 + $0x38] sm:$0xff] %vm1621, %v3657
      %3746 = vst.msk [vmem:[#allocation5 + $0x40] sm:$0xff] %vm1621, %v3659
      %3747 = vst.msk [vmem:[#allocation5 + $0x48] sm:$0xff] %vm1621, %v3661
      %3748 = vst.msk [vmem:[#allocation5 + $0x50] sm:$0xff] %vm1621, %v3663
      %3749 = vst.msk [vmem:[#allocation5 + $0x58] sm:$0xff] %vm1621, %v3665
      %3750 = vst.msk [vmem:[#allocation5 + $0x60] sm:$0xff] %vm1621, %v3667
      %3751 = vst.msk [vmem:[#allocation5 + $0x68] sm:$0xff] %vm1621, %v3669
      %3752 = vst.msk [vmem:[#allocation5 + $0x70] sm:$0xff] %vm1621, %v3671
      %3753 = vst.msk [vmem:[#allocation5 + $0x78] sm:$0xff] %vm1621, %v3673
      %3754 = vst.msk [vmem:[#allocation5 + $0x80] sm:$0xff] %vm1621, %v3675
      %3755 = vst.msk [vmem:[#allocation5 + $0x88] sm:$0xff] %vm1621, %v3677
      %3756 = vst.msk [vmem:[#allocation5 + $0x90] sm:$0xff] %vm1621, %v3679
      %3757 = vst.msk [vmem:[#allocation5 + $0x98] sm:$0xff] %vm1621, %v3681
      %3758 = vst.msk [vmem:[#allocation5 + $0xa0] sm:$0xff] %vm1621, %v3683
      %3759 = vst.msk [vmem:[#allocation5 + $0xa8] sm:$0xff] %vm1621, %v3685
      %3760 = vst.msk [vmem:[#allocation5 + $0xb0] sm:$0xff] %vm1621, %v3687
      %3761 = vst.msk [vmem:[#allocation5 + $0xb8] sm:$0xff] %vm1621, %v3689
      %3762 = vst.msk [vmem:[#allocation5 + $0xc0] sm:$0xff] %vm1621, %v3691
      %3763 = vst.msk [vmem:[#allocation5 + $0xc8] sm:$0xff] %vm1621, %v3693
      %3764 = vst.msk [vmem:[#allocation5 + $0xd0] sm:$0xff] %vm1621, %v3695
      %3765 = vst.msk [vmem:[#allocation5 + $0xd8] sm:$0xff] %vm1621, %v3697
      %3766 = vst.msk [vmem:[#allocation5 + $0xe0] sm:$0xff] %vm1621, %v3699
      %3767 = vst.msk [vmem:[#allocation5 + $0xe8] sm:$0xff] %vm1621, %v3701
      %3768 = vst.msk [vmem:[#allocation5 + $0xf0] sm:$0xff] %vm1621, %v3703
      %3769 = vst.msk [vmem:[#allocation5 + $0xf8] sm:$0xff] %vm1621, %v3705
      %v3770 = vld [vmem:[#allocation3 + $0x20] sm:$0xff]
      %v3771 = vld [vmem:[#allocation3 + $0x28] sm:$0xff]
      %v3772 = vld [vmem:[#allocation3 + $0x30] sm:$0xff]
      %v3773 = vld [vmem:[#allocation3 + $0x38] sm:$0xff]
      %v3774 = vld [vmem:[#allocation3 + $0x40] sm:$0xff]
      %v3775 = vld [vmem:[#allocation3 + $0x48] sm:$0xff]
      %v3776 = vld [vmem:[#allocation3 + $0x50] sm:$0xff]
      %v3777 = vld [vmem:[#allocation3 + $0x58] sm:$0xff]
      %v3778 = vld [vmem:[#allocation3 + $0x60] sm:$0xff]
      %v3779 = vld [vmem:[#allocation3 + $0x68] sm:$0xff]
      %v3780 = vld [vmem:[#allocation3 + $0x70] sm:$0xff]
      %v3781 = vld [vmem:[#allocation3 + $0x78] sm:$0xff]
      %v3782 = vld [vmem:[#allocation3 + $0x80] sm:$0xff]
      %v3783 = vld [vmem:[#allocation3 + $0x88] sm:$0xff]
      %v3784 = vld [vmem:[#allocation3 + $0x90] sm:$0xff]
      %v3785 = vld [vmem:[#allocation3 + $0x98] sm:$0xff]
      %v3786 = vld [vmem:[#allocation3 + $0xa0] sm:$0xff]
      %v3787 = vld [vmem:[#allocation3 + $0xa8] sm:$0xff]
      %v3788 = vld [vmem:[#allocation3 + $0xb0] sm:$0xff]
      %v3789 = vld [vmem:[#allocation3 + $0xb8] sm:$0xff]
      %v3790 = vld [vmem:[#allocation3 + $0xc0] sm:$0xff]
      %v3791 = vld [vmem:[#allocation3 + $0xc8] sm:$0xff]
      %v3792 = vld [vmem:[#allocation3 + $0xd0] sm:$0xff]
      %v3793 = vld [vmem:[#allocation3 + $0xd8] sm:$0xff]
      %v3794 = vld [vmem:[#allocation3 + $0xe0] sm:$0xff]
      %v3795 = vld [vmem:[#allocation3 + $0xe8] sm:$0xff]
      %v3796 = vld [vmem:[#allocation3 + $0xf0] sm:$0xff]
      %v3797 = vld [vmem:[#allocation3 + $0xf8] sm:$0xff]
      %v3798 = vld [vmem:[#allocation3 + $0x100] sm:$0xff]
      %v3799 = vld [vmem:[#allocation3 + $0x108] sm:$0xff]
      %v3800 = vld [vmem:[#allocation3 + $0x110] sm:$0xff]
      %v3801 = vld [vmem:[#allocation3 + $0x118] sm:$0xff]
      %3834 = vrot.lane.b32.xlu0 %v3770, 32
      %v3835 = vpop.permute.xlu0 %3834
      %3836 = vrot.lane.b32.xlu0 %v3771, 32
      %v3837 = vpop.permute.xlu0 %3836
      %3838 = vrot.lane.b32.xlu0 %v3772, 32
      %v3839 = vpop.permute.xlu0 %3838
      %3840 = vrot.lane.b32.xlu0 %v3773, 32
      %v3841 = vpop.permute.xlu0 %3840
      %3842 = vrot.lane.b32.xlu0 %v3774, 32
      %v3843 = vpop.permute.xlu0 %3842
      %3844 = vrot.lane.b32.xlu0 %v3775, 32
      %v3845 = vpop.permute.xlu0 %3844
      %3846 = vrot.lane.b32.xlu0 %v3776, 32
      %v3847 = vpop.permute.xlu0 %3846
      %3848 = vrot.lane.b32.xlu0 %v3777, 32
      %v3849 = vpop.permute.xlu0 %3848
      %3850 = vrot.lane.b32.xlu0 %v3778, 32
      %v3851 = vpop.permute.xlu0 %3850
      %3852 = vrot.lane.b32.xlu0 %v3779, 32
      %v3853 = vpop.permute.xlu0 %3852
      %3854 = vrot.lane.b32.xlu0 %v3780, 32
      %v3855 = vpop.permute.xlu0 %3854
      %3856 = vrot.lane.b32.xlu0 %v3781, 32
      %v3857 = vpop.permute.xlu0 %3856
      %3858 = vrot.lane.b32.xlu0 %v3782, 32
      %v3859 = vpop.permute.xlu0 %3858
      %3860 = vrot.lane.b32.xlu0 %v3783, 32
      %v3861 = vpop.permute.xlu0 %3860
      %3862 = vrot.lane.b32.xlu0 %v3784, 32
      %v3863 = vpop.permute.xlu0 %3862
      %3864 = vrot.lane.b32.xlu0 %v3785, 32
      %v3865 = vpop.permute.xlu0 %3864
      %3866 = vrot.lane.b32.xlu0 %v3786, 32
      %v3867 = vpop.permute.xlu0 %3866
      %3868 = vrot.lane.b32.xlu0 %v3787, 32
      %v3869 = vpop.permute.xlu0 %3868
      %3870 = vrot.lane.b32.xlu0 %v3788, 32
      %v3871 = vpop.permute.xlu0 %3870
      %3872 = vrot.lane.b32.xlu0 %v3789, 32
      %v3873 = vpop.permute.xlu0 %3872
      %3874 = vrot.lane.b32.xlu0 %v3790, 32
      %v3875 = vpop.permute.xlu0 %3874
      %3876 = vrot.lane.b32.xlu0 %v3791, 32
      %v3877 = vpop.permute.xlu0 %3876
      %3878 = vrot.lane.b32.xlu0 %v3792, 32
      %v3879 = vpop.permute.xlu0 %3878
      %3880 = vrot.lane.b32.xlu0 %v3793, 32
      %v3881 = vpop.permute.xlu0 %3880
      %3882 = vrot.lane.b32.xlu0 %v3794, 32
      %v3883 = vpop.permute.xlu0 %3882
      %3884 = vrot.lane.b32.xlu0 %v3795, 32
      %v3885 = vpop.permute.xlu0 %3884
      %3886 = vrot.lane.b32.xlu0 %v3796, 32
      %v3887 = vpop.permute.xlu0 %3886
      %3888 = vrot.lane.b32.xlu0 %v3797, 32
      %v3889 = vpop.permute.xlu0 %3888
      %3890 = vrot.lane.b32.xlu0 %v3798, 32
      %v3891 = vpop.permute.xlu0 %3890
      %3892 = vrot.lane.b32.xlu0 %v3799, 32
      %v3893 = vpop.permute.xlu0 %3892
      %3894 = vrot.lane.b32.xlu0 %v3800, 32
      %v3895 = vpop.permute.xlu0 %3894
      %3896 = vrot.lane.b32.xlu0 %v3801, 32
      %v3897 = vpop.permute.xlu0 %3896
      %3930 = vst.msk [vmem:[#allocation5] sm:$0xff] %vm1814, %v3835
      %3931 = vst.msk [vmem:[#allocation5 + $0x8] sm:$0xff] %vm1814, %v3837
      %3932 = vst.msk [vmem:[#allocation5 + $0x10] sm:$0xff] %vm1814, %v3839
      %3933 = vst.msk [vmem:[#allocation5 + $0x18] sm:$0xff] %vm1814, %v3841
      %3934 = vst.msk [vmem:[#allocation5 + $0x20] sm:$0xff] %vm1814, %v3843
      %3935 = vst.msk [vmem:[#allocation5 + $0x28] sm:$0xff] %vm1814, %v3845
      %3936 = vst.msk [vmem:[#allocation5 + $0x30] sm:$0xff] %vm1814, %v3847
      %3937 = vst.msk [vmem:[#allocation5 + $0x38] sm:$0xff] %vm1814, %v3849
      %3938 = vst.msk [vmem:[#allocation5 + $0x40] sm:$0xff] %vm1814, %v3851
      %3939 = vst.msk [vmem:[#allocation5 + $0x48] sm:$0xff] %vm1814, %v3853
      %3940 = vst.msk [vmem:[#allocation5 + $0x50] sm:$0xff] %vm1814, %v3855
      %3941 = vst.msk [vmem:[#allocation5 + $0x58] sm:$0xff] %vm1814, %v3857
      %3942 = vst.msk [vmem:[#allocation5 + $0x60] sm:$0xff] %vm1814, %v3859
      %3943 = vst.msk [vmem:[#allocation5 + $0x68] sm:$0xff] %vm1814, %v3861
      %3944 = vst.msk [vmem:[#allocation5 + $0x70] sm:$0xff] %vm1814, %v3863
      %3945 = vst.msk [vmem:[#allocation5 + $0x78] sm:$0xff] %vm1814, %v3865
      %3946 = vst.msk [vmem:[#allocation5 + $0x80] sm:$0xff] %vm1814, %v3867
      %3947 = vst.msk [vmem:[#allocation5 + $0x88] sm:$0xff] %vm1814, %v3869
      %3948 = vst.msk [vmem:[#allocation5 + $0x90] sm:$0xff] %vm1814, %v3871
      %3949 = vst.msk [vmem:[#allocation5 + $0x98] sm:$0xff] %vm1814, %v3873
      %3950 = vst.msk [vmem:[#allocation5 + $0xa0] sm:$0xff] %vm1814, %v3875
      %3951 = vst.msk [vmem:[#allocation5 + $0xa8] sm:$0xff] %vm1814, %v3877
      %3952 = vst.msk [vmem:[#allocation5 + $0xb0] sm:$0xff] %vm1814, %v3879
      %3953 = vst.msk [vmem:[#allocation5 + $0xb8] sm:$0xff] %vm1814, %v3881
      %3954 = vst.msk [vmem:[#allocation5 + $0xc0] sm:$0xff] %vm1814, %v3883
      %3955 = vst.msk [vmem:[#allocation5 + $0xc8] sm:$0xff] %vm1814, %v3885
      %3956 = vst.msk [vmem:[#allocation5 + $0xd0] sm:$0xff] %vm1814, %v3887
      %3957 = vst.msk [vmem:[#allocation5 + $0xd8] sm:$0xff] %vm1814, %v3889
      %3958 = vst.msk [vmem:[#allocation5 + $0xe0] sm:$0xff] %vm1814, %v3891
      %3959 = vst.msk [vmem:[#allocation5 + $0xe8] sm:$0xff] %vm1814, %v3893
      %3960 = vst.msk [vmem:[#allocation5 + $0xf0] sm:$0xff] %vm1814, %v3895
      %3961 = vst.msk [vmem:[#allocation5 + $0xf8] sm:$0xff] %vm1814, %v3897
      %v3962 = vld [vmem:[#allocation3 + $0x21] sm:$0xff]
      %v3963 = vld [vmem:[#allocation3 + $0x29] sm:$0xff]
      %v3964 = vld [vmem:[#allocation3 + $0x31] sm:$0xff]
      %v3965 = vld [vmem:[#allocation3 + $0x39] sm:$0xff]
      %v3966 = vld [vmem:[#allocation3 + $0x41] sm:$0xff]
      %v3967 = vld [vmem:[#allocation3 + $0x49] sm:$0xff]
      %v3968 = vld [vmem:[#allocation3 + $0x51] sm:$0xff]
      %v3969 = vld [vmem:[#allocation3 + $0x59] sm:$0xff]
      %v3970 = vld [vmem:[#allocation3 + $0x61] sm:$0xff]
      %v3971 = vld [vmem:[#allocation3 + $0x69] sm:$0xff]
      %v3972 = vld [vmem:[#allocation3 + $0x71] sm:$0xff]
      %v3973 = vld [vmem:[#allocation3 + $0x79] sm:$0xff]
      %v3974 = vld [vmem:[#allocation3 + $0x81] sm:$0xff]
      %v3975 = vld [vmem:[#allocation3 + $0x89] sm:$0xff]
      %v3976 = vld [vmem:[#allocation3 + $0x91] sm:$0xff]
      %v3977 = vld [vmem:[#allocation3 + $0x99] sm:$0xff]
      %v3978 = vld [vmem:[#allocation3 + $0xa1] sm:$0xff]
      %v3979 = vld [vmem:[#allocation3 + $0xa9] sm:$0xff]
      %v3980 = vld [vmem:[#allocation3 + $0xb1] sm:$0xff]
      %v3981 = vld [vmem:[#allocation3 + $0xb9] sm:$0xff]
      %v3982 = vld [vmem:[#allocation3 + $0xc1] sm:$0xff]
      %v3983 = vld [vmem:[#allocation3 + $0xc9] sm:$0xff]
      %v3984 = vld [vmem:[#allocation3 + $0xd1] sm:$0xff]
      %v3985 = vld [vmem:[#allocation3 + $0xd9] sm:$0xff]
      %v3986 = vld [vmem:[#allocation3 + $0xe1] sm:$0xff]
      %v3987 = vld [vmem:[#allocation3 + $0xe9] sm:$0xff]
      %v3988 = vld [vmem:[#allocation3 + $0xf1] sm:$0xff]
      %v3989 = vld [vmem:[#allocation3 + $0xf9] sm:$0xff]
      %v3990 = vld [vmem:[#allocation3 + $0x101] sm:$0xff]
      %v3991 = vld [vmem:[#allocation3 + $0x109] sm:$0xff]
      %v3992 = vld [vmem:[#allocation3 + $0x111] sm:$0xff]
      %v3993 = vld [vmem:[#allocation3 + $0x119] sm:$0xff]
      %v3994 = vsel %vm1204, %v3962, 0.0
      %v3995 = vsel %vm1205, %v3963, 0.0
      %v3996 = vsel %vm1206, %v3964, 0.0
      %v3997 = vsel %vm1207, %v3965, 0.0
      %v3998 = vsel %vm1208, %v3966, 0.0
      %v3999 = vsel %vm1209, %v3967, 0.0
      %v4000 = vsel %vm1210, %v3968, 0.0
      %v4001 = vsel %vm1211, %v3969, 0.0
      %v4002 = vsel %vm1212, %v3970, 0.0
      %v4003 = vsel %vm1213, %v3971, 0.0
      %v4004 = vsel %vm1214, %v3972, 0.0
      %v4005 = vsel %vm1215, %v3973, 0.0
      %v4006 = vsel %vm1216, %v3974, 0.0
      %v4007 = vsel %vm1217, %v3975, 0.0
      %v4008 = vsel %vm1218, %v3976, 0.0
      %v4009 = vsel %vm1219, %v3977, 0.0
      %v4010 = vsel %vm1220, %v3978, 0.0
      %v4011 = vsel %vm1221, %v3979, 0.0
      %v4012 = vsel %vm1222, %v3980, 0.0
      %v4013 = vsel %vm1223, %v3981, 0.0
      %v4014 = vsel %vm1224, %v3982, 0.0
      %v4015 = vsel %vm1225, %v3983, 0.0
      %v4016 = vsel %vm1226, %v3984, 0.0
      %v4017 = vsel %vm1227, %v3985, 0.0
      %v4018 = vsel %vm1228, %v3986, 0.0
      %v4019 = vsel %vm1229, %v3987, 0.0
      %v4020 = vsel %vm1230, %v3988, 0.0
      %v4021 = vsel %vm1231, %v3989, 0.0
      %v4022 = vsel %vm1232, %v3990, 0.0
      %v4023 = vsel %vm1233, %v3991, 0.0
      %v4024 = vsel %vm1234, %v3992, 0.0
      %v4025 = vsel %vm1235, %v3993, 0.0
      %4058 = vrot.lane.b32.xlu0 %v3994, 40
      %v4059 = vpop.permute.xlu0 %4058
      %4060 = vrot.lane.b32.xlu0 %v3995, 40
      %v4061 = vpop.permute.xlu0 %4060
      %4062 = vrot.lane.b32.xlu0 %v3996, 40
      %v4063 = vpop.permute.xlu0 %4062
      %4064 = vrot.lane.b32.xlu0 %v3997, 40
      %v4065 = vpop.permute.xlu0 %4064
      %4066 = vrot.lane.b32.xlu0 %v3998, 40
      %v4067 = vpop.permute.xlu0 %4066
      %4068 = vrot.lane.b32.xlu0 %v3999, 40
      %v4069 = vpop.permute.xlu0 %4068
      %4070 = vrot.lane.b32.xlu0 %v4000, 40
      %v4071 = vpop.permute.xlu0 %4070
      %4072 = vrot.lane.b32.xlu0 %v4001, 40
      %v4073 = vpop.permute.xlu0 %4072
      %4074 = vrot.lane.b32.xlu0 %v4002, 40
      %v4075 = vpop.permute.xlu0 %4074
      %4076 = vrot.lane.b32.xlu0 %v4003, 40
      %v4077 = vpop.permute.xlu0 %4076
      %4078 = vrot.lane.b32.xlu0 %v4004, 40
      %v4079 = vpop.permute.xlu0 %4078
      %4080 = vrot.lane.b32.xlu0 %v4005, 40
      %v4081 = vpop.permute.xlu0 %4080
      %4082 = vrot.lane.b32.xlu0 %v4006, 40
      %v4083 = vpop.permute.xlu0 %4082
      %4084 = vrot.lane.b32.xlu0 %v4007, 40
      %v4085 = vpop.permute.xlu0 %4084
      %4086 = vrot.lane.b32.xlu0 %v4008, 40
      %v4087 = vpop.permute.xlu0 %4086
      %4088 = vrot.lane.b32.xlu0 %v4009, 40
      %v4089 = vpop.permute.xlu0 %4088
      %4090 = vrot.lane.b32.xlu0 %v4010, 40
      %v4091 = vpop.permute.xlu0 %4090
      %4092 = vrot.lane.b32.xlu0 %v4011, 40
      %v4093 = vpop.permute.xlu0 %4092
      %4094 = vrot.lane.b32.xlu0 %v4012, 40
      %v4095 = vpop.permute.xlu0 %4094
      %4096 = vrot.lane.b32.xlu0 %v4013, 40
      %v4097 = vpop.permute.xlu0 %4096
      %4098 = vrot.lane.b32.xlu0 %v4014, 40
      %v4099 = vpop.permute.xlu0 %4098
      %4100 = vrot.lane.b32.xlu0 %v4015, 40
      %v4101 = vpop.permute.xlu0 %4100
      %4102 = vrot.lane.b32.xlu0 %v4016, 40
      %v4103 = vpop.permute.xlu0 %4102
      %4104 = vrot.lane.b32.xlu0 %v4017, 40
      %v4105 = vpop.permute.xlu0 %4104
      %4106 = vrot.lane.b32.xlu0 %v4018, 40
      %v4107 = vpop.permute.xlu0 %4106
      %4108 = vrot.lane.b32.xlu0 %v4019, 40
      %v4109 = vpop.permute.xlu0 %4108
      %4110 = vrot.lane.b32.xlu0 %v4020, 40
      %v4111 = vpop.permute.xlu0 %4110
      %4112 = vrot.lane.b32.xlu0 %v4021, 40
      %v4113 = vpop.permute.xlu0 %4112
      %4114 = vrot.lane.b32.xlu0 %v4022, 40
      %v4115 = vpop.permute.xlu0 %4114
      %4116 = vrot.lane.b32.xlu0 %v4023, 40
      %v4117 = vpop.permute.xlu0 %4116
      %4118 = vrot.lane.b32.xlu0 %v4024, 40
      %v4119 = vpop.permute.xlu0 %4118
      %4120 = vrot.lane.b32.xlu0 %v4025, 40
      %v4121 = vpop.permute.xlu0 %4120
      %4154 = vst.msk [vmem:[#allocation5] sm:$0xff] %vm2039, %v4059
      %4155 = vst.msk [vmem:[#allocation5 + $0x8] sm:$0xff] %vm2039, %v4061
      %4156 = vst.msk [vmem:[#allocation5 + $0x10] sm:$0xff] %vm2039, %v4063
      %4157 = vst.msk [vmem:[#allocation5 + $0x18] sm:$0xff] %vm2039, %v4065
      %4158 = vst.msk [vmem:[#allocation5 + $0x20] sm:$0xff] %vm2039, %v4067
      %4159 = vst.msk [vmem:[#allocation5 + $0x28] sm:$0xff] %vm2039, %v4069
      %4160 = vst.msk [vmem:[#allocation5 + $0x30] sm:$0xff] %vm2039, %v4071
      %4161 = vst.msk [vmem:[#allocation5 + $0x38] sm:$0xff] %vm2039, %v4073
      %4162 = vst.msk [vmem:[#allocation5 + $0x40] sm:$0xff] %vm2039, %v4075
      %4163 = vst.msk [vmem:[#allocation5 + $0x48] sm:$0xff] %vm2039, %v4077
      %4164 = vst.msk [vmem:[#allocation5 + $0x50] sm:$0xff] %vm2039, %v4079
      %4165 = vst.msk [vmem:[#allocation5 + $0x58] sm:$0xff] %vm2039, %v4081
      %4166 = vst.msk [vmem:[#allocation5 + $0x60] sm:$0xff] %vm2039, %v4083
      %4167 = vst.msk [vmem:[#allocation5 + $0x68] sm:$0xff] %vm2039, %v4085
      %4168 = vst.msk [vmem:[#allocation5 + $0x70] sm:$0xff] %vm2039, %v4087
      %4169 = vst.msk [vmem:[#allocation5 + $0x78] sm:$0xff] %vm2039, %v4089
      %4170 = vst.msk [vmem:[#allocation5 + $0x80] sm:$0xff] %vm2039, %v4091
      %4171 = vst.msk [vmem:[#allocation5 + $0x88] sm:$0xff] %vm2039, %v4093
      %4172 = vst.msk [vmem:[#allocation5 + $0x90] sm:$0xff] %vm2039, %v4095
      %4173 = vst.msk [vmem:[#allocation5 + $0x98] sm:$0xff] %vm2039, %v4097
      %4174 = vst.msk [vmem:[#allocation5 + $0xa0] sm:$0xff] %vm2039, %v4099
      %4175 = vst.msk [vmem:[#allocation5 + $0xa8] sm:$0xff] %vm2039, %v4101
      %4176 = vst.msk [vmem:[#allocation5 + $0xb0] sm:$0xff] %vm2039, %v4103
      %4177 = vst.msk [vmem:[#allocation5 + $0xb8] sm:$0xff] %vm2039, %v4105
      %4178 = vst.msk [vmem:[#allocation5 + $0xc0] sm:$0xff] %vm2039, %v4107
      %4179 = vst.msk [vmem:[#allocation5 + $0xc8] sm:$0xff] %vm2039, %v4109
      %4180 = vst.msk [vmem:[#allocation5 + $0xd0] sm:$0xff] %vm2039, %v4111
      %4181 = vst.msk [vmem:[#allocation5 + $0xd8] sm:$0xff] %vm2039, %v4113
      %4182 = vst.msk [vmem:[#allocation5 + $0xe0] sm:$0xff] %vm2039, %v4115
      %4183 = vst.msk [vmem:[#allocation5 + $0xe8] sm:$0xff] %vm2039, %v4117
      %4184 = vst.msk [vmem:[#allocation5 + $0xf0] sm:$0xff] %vm2039, %v4119
      %4185 = vst.msk [vmem:[#allocation5 + $0xf8] sm:$0xff] %vm2039, %v4121
      %v4186 = vld [vmem:[#allocation3 + $0x2f] sm:$0xff]
      %v4187 = vld [vmem:[#allocation3 + $0x37] sm:$0xff]
      %v4188 = vld [vmem:[#allocation3 + $0x3f] sm:$0xff]
      %v4189 = vld [vmem:[#allocation3 + $0x47] sm:$0xff]
      %v4190 = vld [vmem:[#allocation3 + $0x4f] sm:$0xff]
      %v4191 = vld [vmem:[#allocation3 + $0x57] sm:$0xff]
      %v4192 = vld [vmem:[#allocation3 + $0x5f] sm:$0xff]
      %v4193 = vld [vmem:[#allocation3 + $0x67] sm:$0xff]
      %v4194 = vld [vmem:[#allocation3 + $0x6f] sm:$0xff]
      %v4195 = vld [vmem:[#allocation3 + $0x77] sm:$0xff]
      %v4196 = vld [vmem:[#allocation3 + $0x7f] sm:$0xff]
      %v4197 = vld [vmem:[#allocation3 + $0x87] sm:$0xff]
      %v4198 = vld [vmem:[#allocation3 + $0x8f] sm:$0xff]
      %v4199 = vld [vmem:[#allocation3 + $0x97] sm:$0xff]
      %v4200 = vld [vmem:[#allocation3 + $0x9f] sm:$0xff]
      %v4201 = vld [vmem:[#allocation3 + $0xa7] sm:$0xff]
      %v4202 = vld [vmem:[#allocation3 + $0xaf] sm:$0xff]
      %v4203 = vld [vmem:[#allocation3 + $0xb7] sm:$0xff]
      %v4204 = vld [vmem:[#allocation3 + $0xbf] sm:$0xff]
      %v4205 = vld [vmem:[#allocation3 + $0xc7] sm:$0xff]
      %v4206 = vld [vmem:[#allocation3 + $0xcf] sm:$0xff]
      %v4207 = vld [vmem:[#allocation3 + $0xd7] sm:$0xff]
      %v4208 = vld [vmem:[#allocation3 + $0xdf] sm:$0xff]
      %v4209 = vld [vmem:[#allocation3 + $0xe7] sm:$0xff]
      %v4210 = vld [vmem:[#allocation3 + $0xef] sm:$0xff]
      %v4211 = vld [vmem:[#allocation3 + $0xf7] sm:$0xff]
      %v4212 = vld [vmem:[#allocation3 + $0xff] sm:$0xff]
      %v4213 = vld [vmem:[#allocation3 + $0x107] sm:$0xff]
      %v4214 = vld [vmem:[#allocation3 + $0x10f] sm:$0xff]
      %v4215 = vld [vmem:[#allocation3 + $0x117] sm:$0xff]
      %v4216 = vld [vmem:[#allocation3 + $0x11f] sm:$0xff]
      %v4217 = vld [vmem:[#allocation3 + $0x127] sm:$0xff]
      %v4218 = vsel %vm851, %v4186, 0.0
      %v4219 = vsel %vm852, %v4187, 0.0
      %v4220 = vsel %vm853, %v4188, 0.0
      %v4221 = vsel %vm854, %v4189, 0.0
      %v4222 = vsel %vm855, %v4190, 0.0
      %v4223 = vsel %vm856, %v4191, 0.0
      %v4224 = vsel %vm857, %v4192, 0.0
      %v4225 = vsel %vm858, %v4193, 0.0
      %v4226 = vsel %vm859, %v4194, 0.0
      %v4227 = vsel %vm860, %v4195, 0.0
      %v4228 = vsel %vm861, %v4196, 0.0
      %v4229 = vsel %vm862, %v4197, 0.0
      %v4230 = vsel %vm863, %v4198, 0.0
      %v4231 = vsel %vm864, %v4199, 0.0
      %v4232 = vsel %vm865, %v4200, 0.0
      %v4233 = vsel %vm866, %v4201, 0.0
      %v4234 = vsel %vm867, %v4202, 0.0
      %v4235 = vsel %vm868, %v4203, 0.0
      %v4236 = vsel %vm869, %v4204, 0.0
      %v4237 = vsel %vm870, %v4205, 0.0
      %v4238 = vsel %vm871, %v4206, 0.0
      %v4239 = vsel %vm872, %v4207, 0.0
      %v4240 = vsel %vm873, %v4208, 0.0
      %v4241 = vsel %vm874, %v4209, 0.0
      %v4242 = vsel %vm875, %v4210, 0.0
      %v4243 = vsel %vm876, %v4211, 0.0
      %v4244 = vsel %vm877, %v4212, 0.0
      %v4245 = vsel %vm878, %v4213, 0.0
      %v4246 = vsel %vm879, %v4214, 0.0
      %v4247 = vsel %vm880, %v4215, 0.0
      %v4248 = vsel %vm881, %v4216, 0.0
      %v4249 = vsel %vm882, %v4217, 0.0
      %4282 = vrot.lane.b32.xlu0 %v4218, 48
      %v4283 = vpop.permute.xlu0 %4282
      %4284 = vrot.lane.b32.xlu0 %v4219, 48
      %v4285 = vpop.permute.xlu0 %4284
      %4286 = vrot.lane.b32.xlu0 %v4220, 48
      %v4287 = vpop.permute.xlu0 %4286
      %4288 = vrot.lane.b32.xlu0 %v4221, 48
      %v4289 = vpop.permute.xlu0 %4288
      %4290 = vrot.lane.b32.xlu0 %v4222, 48
      %v4291 = vpop.permute.xlu0 %4290
      %4292 = vrot.lane.b32.xlu0 %v4223, 48
      %v4293 = vpop.permute.xlu0 %4292
      %4294 = vrot.lane.b32.xlu0 %v4224, 48
      %v4295 = vpop.permute.xlu0 %4294
      %4296 = vrot.lane.b32.xlu0 %v4225, 48
      %v4297 = vpop.permute.xlu0 %4296
      %4298 = vrot.lane.b32.xlu0 %v4226, 48
      %v4299 = vpop.permute.xlu0 %4298
      %4300 = vrot.lane.b32.xlu0 %v4227, 48
      %v4301 = vpop.permute.xlu0 %4300
      %4302 = vrot.lane.b32.xlu0 %v4228, 48
      %v4303 = vpop.permute.xlu0 %4302
      %4304 = vrot.lane.b32.xlu0 %v4229, 48
      %v4305 = vpop.permute.xlu0 %4304
      %4306 = vrot.lane.b32.xlu0 %v4230, 48
      %v4307 = vpop.permute.xlu0 %4306
      %4308 = vrot.lane.b32.xlu0 %v4231, 48
      %v4309 = vpop.permute.xlu0 %4308
      %4310 = vrot.lane.b32.xlu0 %v4232, 48
      %v4311 = vpop.permute.xlu0 %4310
      %4312 = vrot.lane.b32.xlu0 %v4233, 48
      %v4313 = vpop.permute.xlu0 %4312
      %4314 = vrot.lane.b32.xlu0 %v4234, 48
      %v4315 = vpop.permute.xlu0 %4314
      %4316 = vrot.lane.b32.xlu0 %v4235, 48
      %v4317 = vpop.permute.xlu0 %4316
      %4318 = vrot.lane.b32.xlu0 %v4236, 48
      %v4319 = vpop.permute.xlu0 %4318
      %4320 = vrot.lane.b32.xlu0 %v4237, 48
      %v4321 = vpop.permute.xlu0 %4320
      %4322 = vrot.lane.b32.xlu0 %v4238, 48
      %v4323 = vpop.permute.xlu0 %4322
      %4324 = vrot.lane.b32.xlu0 %v4239, 48
      %v4325 = vpop.permute.xlu0 %4324
      %4326 = vrot.lane.b32.xlu0 %v4240, 48
      %v4327 = vpop.permute.xlu0 %4326
      %4328 = vrot.lane.b32.xlu0 %v4241, 48
      %v4329 = vpop.permute.xlu0 %4328
      %4330 = vrot.lane.b32.xlu0 %v4242, 48
      %v4331 = vpop.permute.xlu0 %4330
      %4332 = vrot.lane.b32.xlu0 %v4243, 48
      %v4333 = vpop.permute.xlu0 %4332
      %4334 = vrot.lane.b32.xlu0 %v4244, 48
      %v4335 = vpop.permute.xlu0 %4334
      %4336 = vrot.lane.b32.xlu0 %v4245, 48
      %v4337 = vpop.permute.xlu0 %4336
      %4338 = vrot.lane.b32.xlu0 %v4246, 48
      %v4339 = vpop.permute.xlu0 %4338
      %4340 = vrot.lane.b32.xlu0 %v4247, 48
      %v4341 = vpop.permute.xlu0 %4340
      %4342 = vrot.lane.b32.xlu0 %v4248, 48
      %v4343 = vpop.permute.xlu0 %4342
      %4344 = vrot.lane.b32.xlu0 %v4249, 48
      %v4345 = vpop.permute.xlu0 %4344
      %4378 = vst.msk [vmem:[#allocation5] sm:$0xff] %vm2264, %v4283
      %4379 = vst.msk [vmem:[#allocation5 + $0x8] sm:$0xff] %vm2264, %v4285
      %4380 = vst.msk [vmem:[#allocation5 + $0x10] sm:$0xff] %vm2264, %v4287
      %4381 = vst.msk [vmem:[#allocation5 + $0x18] sm:$0xff] %vm2264, %v4289
      %4382 = vst.msk [vmem:[#allocation5 + $0x20] sm:$0xff] %vm2264, %v4291
      %4383 = vst.msk [vmem:[#allocation5 + $0x28] sm:$0xff] %vm2264, %v4293
      %4384 = vst.msk [vmem:[#allocation5 + $0x30] sm:$0xff] %vm2264, %v4295
      %4385 = vst.msk [vmem:[#allocation5 + $0x38] sm:$0xff] %vm2264, %v4297
      %4386 = vst.msk [vmem:[#allocation5 + $0x40] sm:$0xff] %vm2264, %v4299
      %4387 = vst.msk [vmem:[#allocation5 + $0x48] sm:$0xff] %vm2264, %v4301
      %4388 = vst.msk [vmem:[#allocation5 + $0x50] sm:$0xff] %vm2264, %v4303
      %4389 = vst.msk [vmem:[#allocation5 + $0x58] sm:$0xff] %vm2264, %v4305
      %4390 = vst.msk [vmem:[#allocation5 + $0x60] sm:$0xff] %vm2264, %v4307
      %4391 = vst.msk [vmem:[#allocation5 + $0x68] sm:$0xff] %vm2264, %v4309
      %4392 = vst.msk [vmem:[#allocation5 + $0x70] sm:$0xff] %vm2264, %v4311
      %4393 = vst.msk [vmem:[#allocation5 + $0x78] sm:$0xff] %vm2264, %v4313
      %4394 = vst.msk [vmem:[#allocation5 + $0x80] sm:$0xff] %vm2264, %v4315
      %4395 = vst.msk [vmem:[#allocation5 + $0x88] sm:$0xff] %vm2264, %v4317
      %4396 = vst.msk [vmem:[#allocation5 + $0x90] sm:$0xff] %vm2264, %v4319
      %4397 = vst.msk [vmem:[#allocation5 + $0x98] sm:$0xff] %vm2264, %v4321
      %4398 = vst.msk [vmem:[#allocation5 + $0xa0] sm:$0xff] %vm2264, %v4323
      %4399 = vst.msk [vmem:[#allocation5 + $0xa8] sm:$0xff] %vm2264, %v4325
      %4400 = vst.msk [vmem:[#allocation5 + $0xb0] sm:$0xff] %vm2264, %v4327
      %4401 = vst.msk [vmem:[#allocation5 + $0xb8] sm:$0xff] %vm2264, %v4329
      %4402 = vst.msk [vmem:[#allocation5 + $0xc0] sm:$0xff] %vm2264, %v4331
      %4403 = vst.msk [vmem:[#allocation5 + $0xc8] sm:$0xff] %vm2264, %v4333
      %4404 = vst.msk [vmem:[#allocation5 + $0xd0] sm:$0xff] %vm2264, %v4335
      %4405 = vst.msk [vmem:[#allocation5 + $0xd8] sm:$0xff] %vm2264, %v4337
      %4406 = vst.msk [vmem:[#allocation5 + $0xe0] sm:$0xff] %vm2264, %v4339
      %4407 = vst.msk [vmem:[#allocation5 + $0xe8] sm:$0xff] %vm2264, %v4341
      %4408 = vst.msk [vmem:[#allocation5 + $0xf0] sm:$0xff] %vm2264, %v4343
      %4409 = vst.msk [vmem:[#allocation5 + $0xf8] sm:$0xff] %vm2264, %v4345
      %v4410 = vld [vmem:[#allocation3 + $0x30] sm:$0xff]
      %v4411 = vld [vmem:[#allocation3 + $0x38] sm:$0xff]
      %v4412 = vld [vmem:[#allocation3 + $0x40] sm:$0xff]
      %v4413 = vld [vmem:[#allocation3 + $0x48] sm:$0xff]
      %v4414 = vld [vmem:[#allocation3 + $0x50] sm:$0xff]
      %v4415 = vld [vmem:[#allocation3 + $0x58] sm:$0xff]
      %v4416 = vld [vmem:[#allocation3 + $0x60] sm:$0xff]
      %v4417 = vld [vmem:[#allocation3 + $0x68] sm:$0xff]
      %v4418 = vld [vmem:[#allocation3 + $0x70] sm:$0xff]
      %v4419 = vld [vmem:[#allocation3 + $0x78] sm:$0xff]
      %v4420 = vld [vmem:[#allocation3 + $0x80] sm:$0xff]
      %v4421 = vld [vmem:[#allocation3 + $0x88] sm:$0xff]
      %v4422 = vld [vmem:[#allocation3 + $0x90] sm:$0xff]
      %v4423 = vld [vmem:[#allocation3 + $0x98] sm:$0xff]
      %v4424 = vld [vmem:[#allocation3 + $0xa0] sm:$0xff]
      %v4425 = vld [vmem:[#allocation3 + $0xa8] sm:$0xff]
      %v4426 = vld [vmem:[#allocation3 + $0xb0] sm:$0xff]
      %v4427 = vld [vmem:[#allocation3 + $0xb8] sm:$0xff]
      %v4428 = vld [vmem:[#allocation3 + $0xc0] sm:$0xff]
      %v4429 = vld [vmem:[#allocation3 + $0xc8] sm:$0xff]
      %v4430 = vld [vmem:[#allocation3 + $0xd0] sm:$0xff]
      %v4431 = vld [vmem:[#allocation3 + $0xd8] sm:$0xff]
      %v4432 = vld [vmem:[#allocation3 + $0xe0] sm:$0xff]
      %v4433 = vld [vmem:[#allocation3 + $0xe8] sm:$0xff]
      %v4434 = vld [vmem:[#allocation3 + $0xf0] sm:$0xff]
      %v4435 = vld [vmem:[#allocation3 + $0xf8] sm:$0xff]
      %v4436 = vld [vmem:[#allocation3 + $0x100] sm:$0xff]
      %v4437 = vld [vmem:[#allocation3 + $0x108] sm:$0xff]
      %v4438 = vld [vmem:[#allocation3 + $0x110] sm:$0xff]
      %v4439 = vld [vmem:[#allocation3 + $0x118] sm:$0xff]
      %v4440 = vld [vmem:[#allocation3 + $0x120] sm:$0xff]
      %v4441 = vld [vmem:[#allocation3 + $0x128] sm:$0xff]
      %4474 = vrot.lane.b32.xlu0 %v4410, 56
      %v4475 = vpop.permute.xlu0 %4474
      %4476 = vrot.lane.b32.xlu0 %v4411, 56
      %v4477 = vpop.permute.xlu0 %4476
      %4478 = vrot.lane.b32.xlu0 %v4412, 56
      %v4479 = vpop.permute.xlu0 %4478
      %4480 = vrot.lane.b32.xlu0 %v4413, 56
      %v4481 = vpop.permute.xlu0 %4480
      %4482 = vrot.lane.b32.xlu0 %v4414, 56
      %v4483 = vpop.permute.xlu0 %4482
      %4484 = vrot.lane.b32.xlu0 %v4415, 56
      %v4485 = vpop.permute.xlu0 %4484
      %4486 = vrot.lane.b32.xlu0 %v4416, 56
      %v4487 = vpop.permute.xlu0 %4486
      %4488 = vrot.lane.b32.xlu0 %v4417, 56
      %v4489 = vpop.permute.xlu0 %4488
      %4490 = vrot.lane.b32.xlu0 %v4418, 56
      %v4491 = vpop.permute.xlu0 %4490
      %4492 = vrot.lane.b32.xlu0 %v4419, 56
      %v4493 = vpop.permute.xlu0 %4492
      %4494 = vrot.lane.b32.xlu0 %v4420, 56
      %v4495 = vpop.permute.xlu0 %4494
      %4496 = vrot.lane.b32.xlu0 %v4421, 56
      %v4497 = vpop.permute.xlu0 %4496
      %4498 = vrot.lane.b32.xlu0 %v4422, 56
      %v4499 = vpop.permute.xlu0 %4498
      %4500 = vrot.lane.b32.xlu0 %v4423, 56
      %v4501 = vpop.permute.xlu0 %4500
      %4502 = vrot.lane.b32.xlu0 %v4424, 56
      %v4503 = vpop.permute.xlu0 %4502
      %4504 = vrot.lane.b32.xlu0 %v4425, 56
      %v4505 = vpop.permute.xlu0 %4504
      %4506 = vrot.lane.b32.xlu0 %v4426, 56
      %v4507 = vpop.permute.xlu0 %4506
      %4508 = vrot.lane.b32.xlu0 %v4427, 56
      %v4509 = vpop.permute.xlu0 %4508
      %4510 = vrot.lane.b32.xlu0 %v4428, 56
      %v4511 = vpop.permute.xlu0 %4510
      %4512 = vrot.lane.b32.xlu0 %v4429, 56
      %v4513 = vpop.permute.xlu0 %4512
      %4514 = vrot.lane.b32.xlu0 %v4430, 56
      %v4515 = vpop.permute.xlu0 %4514
      %4516 = vrot.lane.b32.xlu0 %v4431, 56
      %v4517 = vpop.permute.xlu0 %4516
      %4518 = vrot.lane.b32.xlu0 %v4432, 56
      %v4519 = vpop.permute.xlu0 %4518
      %4520 = vrot.lane.b32.xlu0 %v4433, 56
      %v4521 = vpop.permute.xlu0 %4520
      %4522 = vrot.lane.b32.xlu0 %v4434, 56
      %v4523 = vpop.permute.xlu0 %4522
      %4524 = vrot.lane.b32.xlu0 %v4435, 56
      %v4525 = vpop.permute.xlu0 %4524
      %4526 = vrot.lane.b32.xlu0 %v4436, 56
      %v4527 = vpop.permute.xlu0 %4526
      %4528 = vrot.lane.b32.xlu0 %v4437, 56
      %v4529 = vpop.permute.xlu0 %4528
      %4530 = vrot.lane.b32.xlu0 %v4438, 56
      %v4531 = vpop.permute.xlu0 %4530
      %4532 = vrot.lane.b32.xlu0 %v4439, 56
      %v4533 = vpop.permute.xlu0 %4532
      %4534 = vrot.lane.b32.xlu0 %v4440, 56
      %v4535 = vpop.permute.xlu0 %4534
      %4536 = vrot.lane.b32.xlu0 %v4441, 56
      %v4537 = vpop.permute.xlu0 %4536
      %4570 = vst.msk [vmem:[#allocation5] sm:$0xff] %vm2457, %v4475
      %4571 = vst.msk [vmem:[#allocation5 + $0x8] sm:$0xff] %vm2457, %v4477
      %4572 = vst.msk [vmem:[#allocation5 + $0x10] sm:$0xff] %vm2457, %v4479
      %4573 = vst.msk [vmem:[#allocation5 + $0x18] sm:$0xff] %vm2457, %v4481
      %4574 = vst.msk [vmem:[#allocation5 + $0x20] sm:$0xff] %vm2457, %v4483
      %4575 = vst.msk [vmem:[#allocation5 + $0x28] sm:$0xff] %vm2457, %v4485
      %4576 = vst.msk [vmem:[#allocation5 + $0x30] sm:$0xff] %vm2457, %v4487
      %4577 = vst.msk [vmem:[#allocation5 + $0x38] sm:$0xff] %vm2457, %v4489
      %4578 = vst.msk [vmem:[#allocation5 + $0x40] sm:$0xff] %vm2457, %v4491
      %4579 = vst.msk [vmem:[#allocation5 + $0x48] sm:$0xff] %vm2457, %v4493
      %4580 = vst.msk [vmem:[#allocation5 + $0x50] sm:$0xff] %vm2457, %v4495
      %4581 = vst.msk [vmem:[#allocation5 + $0x58] sm:$0xff] %vm2457, %v4497
      %4582 = vst.msk [vmem:[#allocation5 + $0x60] sm:$0xff] %vm2457, %v4499
      %4583 = vst.msk [vmem:[#allocation5 + $0x68] sm:$0xff] %vm2457, %v4501
      %4584 = vst.msk [vmem:[#allocation5 + $0x70] sm:$0xff] %vm2457, %v4503
      %4585 = vst.msk [vmem:[#allocation5 + $0x78] sm:$0xff] %vm2457, %v4505
      %4586 = vst.msk [vmem:[#allocation5 + $0x80] sm:$0xff] %vm2457, %v4507
      %4587 = vst.msk [vmem:[#allocation5 + $0x88] sm:$0xff] %vm2457, %v4509
      %4588 = vst.msk [vmem:[#allocation5 + $0x90] sm:$0xff] %vm2457, %v4511
      %4589 = vst.msk [vmem:[#allocation5 + $0x98] sm:$0xff] %vm2457, %v4513
      %4590 = vst.msk [vmem:[#allocation5 + $0xa0] sm:$0xff] %vm2457, %v4515
      %4591 = vst.msk [vmem:[#allocation5 + $0xa8] sm:$0xff] %vm2457, %v4517
      %4592 = vst.msk [vmem:[#allocation5 + $0xb0] sm:$0xff] %vm2457, %v4519
      %4593 = vst.msk [vmem:[#allocation5 + $0xb8] sm:$0xff] %vm2457, %v4521
      %4594 = vst.msk [vmem:[#allocation5 + $0xc0] sm:$0xff] %vm2457, %v4523
      %4595 = vst.msk [vmem:[#allocation5 + $0xc8] sm:$0xff] %vm2457, %v4525
      %4596 = vst.msk [vmem:[#allocation5 + $0xd0] sm:$0xff] %vm2457, %v4527
      %4597 = vst.msk [vmem:[#allocation5 + $0xd8] sm:$0xff] %vm2457, %v4529
      %4598 = vst.msk [vmem:[#allocation5 + $0xe0] sm:$0xff] %vm2457, %v4531
      %4599 = vst.msk [vmem:[#allocation5 + $0xe8] sm:$0xff] %vm2457, %v4533
      %4600 = vst.msk [vmem:[#allocation5 + $0xf0] sm:$0xff] %vm2457, %v4535
      %4601 = vst.msk [vmem:[#allocation5 + $0xf8] sm:$0xff] %vm2457, %v4537
      %v4602 = vld [vmem:[#allocation3 + $0x31] sm:$0xff]
      %v4603 = vld [vmem:[#allocation3 + $0x39] sm:$0xff]
      %v4604 = vld [vmem:[#allocation3 + $0x41] sm:$0xff]
      %v4605 = vld [vmem:[#allocation3 + $0x49] sm:$0xff]
      %v4606 = vld [vmem:[#allocation3 + $0x51] sm:$0xff]
      %v4607 = vld [vmem:[#allocation3 + $0x59] sm:$0xff]
      %v4608 = vld [vmem:[#allocation3 + $0x61] sm:$0xff]
      %v4609 = vld [vmem:[#allocation3 + $0x69] sm:$0xff]
      %v4610 = vld [vmem:[#allocation3 + $0x71] sm:$0xff]
      %v4611 = vld [vmem:[#allocation3 + $0x79] sm:$0xff]
      %v4612 = vld [vmem:[#allocation3 + $0x81] sm:$0xff]
      %v4613 = vld [vmem:[#allocation3 + $0x89] sm:$0xff]
      %v4614 = vld [vmem:[#allocation3 + $0x91] sm:$0xff]
      %v4615 = vld [vmem:[#allocation3 + $0x99] sm:$0xff]
      %v4616 = vld [vmem:[#allocation3 + $0xa1] sm:$0xff]
      %v4617 = vld [vmem:[#allocation3 + $0xa9] sm:$0xff]
      %v4618 = vld [vmem:[#allocation3 + $0xb1] sm:$0xff]
      %v4619 = vld [vmem:[#allocation3 + $0xb9] sm:$0xff]
      %v4620 = vld [vmem:[#allocation3 + $0xc1] sm:$0xff]
      %v4621 = vld [vmem:[#allocation3 + $0xc9] sm:$0xff]
      %v4622 = vld [vmem:[#allocation3 + $0xd1] sm:$0xff]
      %v4623 = vld [vmem:[#allocation3 + $0xd9] sm:$0xff]
      %v4624 = vld [vmem:[#allocation3 + $0xe1] sm:$0xff]
      %v4625 = vld [vmem:[#allocation3 + $0xe9] sm:$0xff]
      %v4626 = vld [vmem:[#allocation3 + $0xf1] sm:$0xff]
      %v4627 = vld [vmem:[#allocation3 + $0xf9] sm:$0xff]
      %v4628 = vld [vmem:[#allocation3 + $0x101] sm:$0xff]
      %v4629 = vld [vmem:[#allocation3 + $0x109] sm:$0xff]
      %v4630 = vld [vmem:[#allocation3 + $0x111] sm:$0xff]
      %v4631 = vld [vmem:[#allocation3 + $0x119] sm:$0xff]
      %v4632 = vld [vmem:[#allocation3 + $0x121] sm:$0xff]
      %v4633 = vld [vmem:[#allocation3 + $0x129] sm:$0xff]
      %v4634 = vsel %vm1204, %v4602, 0.0
      %v4635 = vsel %vm1205, %v4603, 0.0
      %v4636 = vsel %vm1206, %v4604, 0.0
      %v4637 = vsel %vm1207, %v4605, 0.0
      %v4638 = vsel %vm1208, %v4606, 0.0
      %v4639 = vsel %vm1209, %v4607, 0.0
      %v4640 = vsel %vm1210, %v4608, 0.0
      %v4641 = vsel %vm1211, %v4609, 0.0
      %v4642 = vsel %vm1212, %v4610, 0.0
      %v4643 = vsel %vm1213, %v4611, 0.0
      %v4644 = vsel %vm1214, %v4612, 0.0
      %v4645 = vsel %vm1215, %v4613, 0.0
      %v4646 = vsel %vm1216, %v4614, 0.0
      %v4647 = vsel %vm1217, %v4615, 0.0
      %v4648 = vsel %vm1218, %v4616, 0.0
      %v4649 = vsel %vm1219, %v4617, 0.0
      %v4650 = vsel %vm1220, %v4618, 0.0
      %v4651 = vsel %vm1221, %v4619, 0.0
      %v4652 = vsel %vm1222, %v4620, 0.0
      %v4653 = vsel %vm1223, %v4621, 0.0
      %v4654 = vsel %vm1224, %v4622, 0.0
      %v4655 = vsel %vm1225, %v4623, 0.0
      %v4656 = vsel %vm1226, %v4624, 0.0
      %v4657 = vsel %vm1227, %v4625, 0.0
      %v4658 = vsel %vm1228, %v4626, 0.0
      %v4659 = vsel %vm1229, %v4627, 0.0
      %v4660 = vsel %vm1230, %v4628, 0.0
      %v4661 = vsel %vm1231, %v4629, 0.0
      %v4662 = vsel %vm1232, %v4630, 0.0
      %v4663 = vsel %vm1233, %v4631, 0.0
      %v4664 = vsel %vm1234, %v4632, 0.0
      %v4665 = vsel %vm1235, %v4633, 0.0
      %4698 = vrot.lane.b32.xlu0 %v4634, 64
      %v4699 = vpop.permute.xlu0 %4698
      %4700 = vrot.lane.b32.xlu0 %v4635, 64
      %v4701 = vpop.permute.xlu0 %4700
      %4702 = vrot.lane.b32.xlu0 %v4636, 64
      %v4703 = vpop.permute.xlu0 %4702
      %4704 = vrot.lane.b32.xlu0 %v4637, 64
      %v4705 = vpop.permute.xlu0 %4704
      %4706 = vrot.lane.b32.xlu0 %v4638, 64
      %v4707 = vpop.permute.xlu0 %4706
      %4708 = vrot.lane.b32.xlu0 %v4639, 64
      %v4709 = vpop.permute.xlu0 %4708
      %4710 = vrot.lane.b32.xlu0 %v4640, 64
      %v4711 = vpop.permute.xlu0 %4710
      %4712 = vrot.lane.b32.xlu0 %v4641, 64
      %v4713 = vpop.permute.xlu0 %4712
      %4714 = vrot.lane.b32.xlu0 %v4642, 64
      %v4715 = vpop.permute.xlu0 %4714
      %4716 = vrot.lane.b32.xlu0 %v4643, 64
      %v4717 = vpop.permute.xlu0 %4716
      %4718 = vrot.lane.b32.xlu0 %v4644, 64
      %v4719 = vpop.permute.xlu0 %4718
      %4720 = vrot.lane.b32.xlu0 %v4645, 64
      %v4721 = vpop.permute.xlu0 %4720
      %4722 = vrot.lane.b32.xlu0 %v4646, 64
      %v4723 = vpop.permute.xlu0 %4722
      %4724 = vrot.lane.b32.xlu0 %v4647, 64
      %v4725 = vpop.permute.xlu0 %4724
      %4726 = vrot.lane.b32.xlu0 %v4648, 64
      %v4727 = vpop.permute.xlu0 %4726
      %4728 = vrot.lane.b32.xlu0 %v4649, 64
      %v4729 = vpop.permute.xlu0 %4728
      %4730 = vrot.lane.b32.xlu0 %v4650, 64
      %v4731 = vpop.permute.xlu0 %4730
      %4732 = vrot.lane.b32.xlu0 %v4651, 64
      %v4733 = vpop.permute.xlu0 %4732
      %4734 = vrot.lane.b32.xlu0 %v4652, 64
      %v4735 = vpop.permute.xlu0 %4734
      %4736 = vrot.lane.b32.xlu0 %v4653, 64
      %v4737 = vpop.permute.xlu0 %4736
      %4738 = vrot.lane.b32.xlu0 %v4654, 64
      %v4739 = vpop.permute.xlu0 %4738
      %4740 = vrot.lane.b32.xlu0 %v4655, 64
      %v4741 = vpop.permute.xlu0 %4740
      %4742 = vrot.lane.b32.xlu0 %v4656, 64
      %v4743 = vpop.permute.xlu0 %4742
      %4744 = vrot.lane.b32.xlu0 %v4657, 64
      %v4745 = vpop.permute.xlu0 %4744
      %4746 = vrot.lane.b32.xlu0 %v4658, 64
      %v4747 = vpop.permute.xlu0 %4746
      %4748 = vrot.lane.b32.xlu0 %v4659, 64
      %v4749 = vpop.permute.xlu0 %4748
      %4750 = vrot.lane.b32.xlu0 %v4660, 64
      %v4751 = vpop.permute.xlu0 %4750
      %4752 = vrot.lane.b32.xlu0 %v4661, 64
      %v4753 = vpop.permute.xlu0 %4752
      %4754 = vrot.lane.b32.xlu0 %v4662, 64
      %v4755 = vpop.permute.xlu0 %4754
      %4756 = vrot.lane.b32.xlu0 %v4663, 64
      %v4757 = vpop.permute.xlu0 %4756
      %4758 = vrot.lane.b32.xlu0 %v4664, 64
      %v4759 = vpop.permute.xlu0 %4758
      %4760 = vrot.lane.b32.xlu0 %v4665, 64
      %v4761 = vpop.permute.xlu0 %4760
      %4794 = vst.msk [vmem:[#allocation5] sm:$0xff] %vm2682, %v4699
      %4795 = vst.msk [vmem:[#allocation5 + $0x8] sm:$0xff] %vm2682, %v4701
      %4796 = vst.msk [vmem:[#allocation5 + $0x10] sm:$0xff] %vm2682, %v4703
      %4797 = vst.msk [vmem:[#allocation5 + $0x18] sm:$0xff] %vm2682, %v4705
      %4798 = vst.msk [vmem:[#allocation5 + $0x20] sm:$0xff] %vm2682, %v4707
      %4799 = vst.msk [vmem:[#allocation5 + $0x28] sm:$0xff] %vm2682, %v4709
      %4800 = vst.msk [vmem:[#allocation5 + $0x30] sm:$0xff] %vm2682, %v4711
      %4801 = vst.msk [vmem:[#allocation5 + $0x38] sm:$0xff] %vm2682, %v4713
      %4802 = vst.msk [vmem:[#allocation5 + $0x40] sm:$0xff] %vm2682, %v4715
      %4803 = vst.msk [vmem:[#allocation5 + $0x48] sm:$0xff] %vm2682, %v4717
      %4804 = vst.msk [vmem:[#allocation5 + $0x50] sm:$0xff] %vm2682, %v4719
      %4805 = vst.msk [vmem:[#allocation5 + $0x58] sm:$0xff] %vm2682, %v4721
      %4806 = vst.msk [vmem:[#allocation5 + $0x60] sm:$0xff] %vm2682, %v4723
      %4807 = vst.msk [vmem:[#allocation5 + $0x68] sm:$0xff] %vm2682, %v4725
      %4808 = vst.msk [vmem:[#allocation5 + $0x70] sm:$0xff] %vm2682, %v4727
      %4809 = vst.msk [vmem:[#allocation5 + $0x78] sm:$0xff] %vm2682, %v4729
      %4810 = vst.msk [vmem:[#allocation5 + $0x80] sm:$0xff] %vm2682, %v4731
      %4811 = vst.msk [vmem:[#allocation5 + $0x88] sm:$0xff] %vm2682, %v4733
      %4812 = vst.msk [vmem:[#allocation5 + $0x90] sm:$0xff] %vm2682, %v4735
      %4813 = vst.msk [vmem:[#allocation5 + $0x98] sm:$0xff] %vm2682, %v4737
      %4814 = vst.msk [vmem:[#allocation5 + $0xa0] sm:$0xff] %vm2682, %v4739
      %4815 = vst.msk [vmem:[#allocation5 + $0xa8] sm:$0xff] %vm2682, %v4741
      %4816 = vst.msk [vmem:[#allocation5 + $0xb0] sm:$0xff] %vm2682, %v4743
      %4817 = vst.msk [vmem:[#allocation5 + $0xb8] sm:$0xff] %vm2682, %v4745
      %4818 = vst.msk [vmem:[#allocation5 + $0xc0] sm:$0xff] %vm2682, %v4747
      %4819 = vst.msk [vmem:[#allocation5 + $0xc8] sm:$0xff] %vm2682, %v4749
      %4820 = vst.msk [vmem:[#allocation5 + $0xd0] sm:$0xff] %vm2682, %v4751
      %4821 = vst.msk [vmem:[#allocation5 + $0xd8] sm:$0xff] %vm2682, %v4753
      %4822 = vst.msk [vmem:[#allocation5 + $0xe0] sm:$0xff] %vm2682, %v4755
      %4823 = vst.msk [vmem:[#allocation5 + $0xe8] sm:$0xff] %vm2682, %v4757
      %4824 = vst.msk [vmem:[#allocation5 + $0xf0] sm:$0xff] %vm2682, %v4759
      %4825 = vst.msk [vmem:[#allocation5 + $0xf8] sm:$0xff] %vm2682, %v4761
      %v4826 = vld [vmem:[#allocation5] sm:$0xff]
      %v4827 = vld [vmem:[#allocation5 + $0x8] sm:$0xff]
      %v4828 = vld [vmem:[#allocation5 + $0x10] sm:$0xff]
      %v4829 = vld [vmem:[#allocation5 + $0x18] sm:$0xff]
      %v4830 = vld [vmem:[#allocation5 + $0x20] sm:$0xff]
      %v4831 = vld [vmem:[#allocation5 + $0x28] sm:$0xff]
      %v4832 = vld [vmem:[#allocation5 + $0x30] sm:$0xff]
      %v4833 = vld [vmem:[#allocation5 + $0x38] sm:$0xff]
      %v4834 = vld [vmem:[#allocation5 + $0x40] sm:$0xff]
      %v4835 = vld [vmem:[#allocation5 + $0x48] sm:$0xff]
      %v4836 = vld [vmem:[#allocation5 + $0x50] sm:$0xff]
      %v4837 = vld [vmem:[#allocation5 + $0x58] sm:$0xff]
      %v4838 = vld [vmem:[#allocation5 + $0x60] sm:$0xff]
      %v4839 = vld [vmem:[#allocation5 + $0x68] sm:$0xff]
      %v4840 = vld [vmem:[#allocation5 + $0x70] sm:$0xff]
      %v4841 = vld [vmem:[#allocation5 + $0x78] sm:$0xff]
      %v4842 = vld [vmem:[#allocation5 + $0x80] sm:$0xff]
      %v4843 = vld [vmem:[#allocation5 + $0x88] sm:$0xff]
      %v4844 = vld [vmem:[#allocation5 + $0x90] sm:$0xff]
      %v4845 = vld [vmem:[#allocation5 + $0x98] sm:$0xff]
      %v4846 = vld [vmem:[#allocation5 + $0xa0] sm:$0xff]
      %v4847 = vld [vmem:[#allocation5 + $0xa8] sm:$0xff]
      %v4848 = vld [vmem:[#allocation5 + $0xb0] sm:$0xff]
      %v4849 = vld [vmem:[#allocation5 + $0xb8] sm:$0xff]
      %v4850 = vld [vmem:[#allocation5 + $0xc0] sm:$0xff]
      %v4851 = vld [vmem:[#allocation5 + $0xc8] sm:$0xff]
      %v4852 = vld [vmem:[#allocation5 + $0xd0] sm:$0xff]
      %v4853 = vld [vmem:[#allocation5 + $0xd8] sm:$0xff]
      %v4854 = vld [vmem:[#allocation5 + $0xe0] sm:$0xff]
      %v4855 = vld [vmem:[#allocation5 + $0xe8] sm:$0xff]
      %v4856 = vld [vmem:[#allocation5 + $0xf0] sm:$0xff]
      %v4857 = vld [vmem:[#allocation5 + $0xf8] sm:$0xff]
      %v4858 = vld [vmem:[%s3] sm:$0xff]
      %v4859 = vld [vmem:[%s3 + $0x8] sm:$0xff]
      %v4860 = vld [vmem:[%s3 + $0x10] sm:$0xff]
      %v4861 = vld [vmem:[%s3 + $0x18] sm:$0xff]
      %v4862 = vld [vmem:[%s3 + $0x20] sm:$0xff]
      %v4863 = vld [vmem:[%s3 + $0x28] sm:$0xff]
      %v4864 = vld [vmem:[%s3 + $0x30] sm:$0xff]
      %v4865 = vld [vmem:[%s3 + $0x38] sm:$0xff]
      %v4866 = vld [vmem:[%s3 + $0x40] sm:$0xff]
      %v4867 = vld [vmem:[%s4] sm:$0x1]
      %v4869 = vperm.slane %v4867, 0
      %v4872 = vsel %vm2760, %v4826, 0
      %v4875 = vsel %vm2760, %v4827, 0
      %v4878 = vsel %vm2760, %v4828, 0
      %v4881 = vsel %vm2760, %v4829, 0
      %v4884 = vsel %vm2760, %v4830, 0
      %v4887 = vsel %vm2760, %v4831, 0
      %v4890 = vsel %vm2760, %v4832, 0
      %v4893 = vsel %vm2760, %v4833, 0
      %v4896 = vsel %vm2760, %v4834, 0
      %v4899 = vsel %vm2760, %v4835, 0
      %v4902 = vsel %vm2760, %v4836, 0
      %v4905 = vsel %vm2760, %v4837, 0
      %v4908 = vsel %vm2760, %v4838, 0
      %v4911 = vsel %vm2760, %v4839, 0
      %v4914 = vsel %vm2760, %v4840, 0
      %v4917 = vsel %vm2760, %v4841, 0
      %v4920 = vsel %vm2760, %v4842, 0
      %v4923 = vsel %vm2760, %v4843, 0
      %v4926 = vsel %vm2760, %v4844, 0
      %v4929 = vsel %vm2760, %v4845, 0
      %v4932 = vsel %vm2760, %v4846, 0
      %v4935 = vsel %vm2760, %v4847, 0
      %v4938 = vsel %vm2760, %v4848, 0
      %v4941 = vsel %vm2760, %v4849, 0
      %v4944 = vsel %vm2760, %v4850, 0
      %v4947 = vsel %vm2760, %v4851, 0
      %v4950 = vsel %vm2760, %v4852, 0
      %v4953 = vsel %vm2760, %v4853, 0
      %v4956 = vsel %vm2760, %v4854, 0
      %v4959 = vsel %vm2760, %v4855, 0
      %v4962 = vsel %vm2760, %v4856, 0
      %v4965 = vsel %vm2760, %v4857, 0
      %4967 = vmatpush.msra.mxu0 0.0
      %4968 = vmatpush.msra.mxu0 0.0
      %4969 = vmatpush.msra.mxu0 0.0
      %4970 = vmatpush.msra.mxu0 0.0
      %4971 = vmatpush.msra.mxu0 0.0
      %4972 = vmatpush.msra.mxu0 0.0
      %4973 = vmatpush.msra.mxu0 0.0
      %4974 = vmatpush.msra.mxu0 %v4866
      %4975 = vmatpush.msra.mxu0 %v4865
      %4976 = vmatpush.msra.mxu0 %v4864
      %4977 = vmatpush.msra.mxu0 %v4863
      %4978 = vmatpush.msra.mxu0 %v4862
      %4979 = vmatpush.msra.mxu0 %v4861
      %4980 = vmatpush.msra.mxu0 %v4860
      %4981 = vmatpush.msra.mxu0 %v4859
      %4982 = vmatpush.msra.mxu0 %v4858
      %4983 = vmatmul.f32.gmra.mxu0 %v4872
      %v4984 = vpop.f32.mrf.mxu0
      %v4985 = vadd.f32 %v4869, %v4984
      %4986 = vmatmul.f32.gmra.mxu0 %v4875
      %v4987 = vpop.f32.mrf.mxu0
      %v4988 = vadd.f32 %v4869, %v4987
      %4989 = vmatmul.f32.gmra.mxu0 %v4878
      %v4990 = vpop.f32.mrf.mxu0
      %v4991 = vadd.f32 %v4869, %v4990
      %4992 = vmatmul.f32.gmra.mxu0 %v4881
      %v4993 = vpop.f32.mrf.mxu0
      %v4994 = vadd.f32 %v4869, %v4993
      %4995 = vmatmul.f32.gmra.mxu0 %v4884
      %v4996 = vpop.f32.mrf.mxu0
      %v4997 = vadd.f32 %v4869, %v4996
      %4998 = vmatmul.f32.gmra.mxu0 %v4887
      %v4999 = vpop.f32.mrf.mxu0
      %v5000 = vadd.f32 %v4869, %v4999
      %5001 = vmatmul.f32.gmra.mxu0 %v4890
      %v5002 = vpop.f32.mrf.mxu0
      %v5003 = vadd.f32 %v4869, %v5002
      %5004 = vmatmul.f32.gmra.mxu0 %v4893
      %v5005 = vpop.f32.mrf.mxu0
      %v5006 = vadd.f32 %v4869, %v5005
      %5007 = vmatmul.f32.gmra.mxu0 %v4896
      %v5008 = vpop.f32.mrf.mxu0
      %v5009 = vadd.f32 %v4869, %v5008
      %5010 = vmatmul.f32.gmra.mxu0 %v4899
      %v5011 = vpop.f32.mrf.mxu0
      %v5012 = vadd.f32 %v4869, %v5011
      %5013 = vmatmul.f32.gmra.mxu0 %v4902
      %v5014 = vpop.f32.mrf.mxu0
      %v5015 = vadd.f32 %v4869, %v5014
      %5016 = vmatmul.f32.gmra.mxu0 %v4905
      %v5017 = vpop.f32.mrf.mxu0
      %v5018 = vadd.f32 %v4869, %v5017
      %5019 = vmatmul.f32.gmra.mxu0 %v4908
      %v5020 = vpop.f32.mrf.mxu0
      %v5021 = vadd.f32 %v4869, %v5020
      %5022 = vmatmul.f32.gmra.mxu0 %v4911
      %v5023 = vpop.f32.mrf.mxu0
      %v5024 = vadd.f32 %v4869, %v5023
      %5025 = vmatmul.f32.gmra.mxu0 %v4914
      %v5026 = vpop.f32.mrf.mxu0
      %v5027 = vadd.f32 %v4869, %v5026
      %5028 = vmatmul.f32.gmra.mxu0 %v4917
      %v5029 = vpop.f32.mrf.mxu0
      %v5030 = vadd.f32 %v4869, %v5029
      %5031 = vmatmul.f32.gmra.mxu0 %v4920
      %v5032 = vpop.f32.mrf.mxu0
      %v5033 = vadd.f32 %v4869, %v5032
      %5034 = vmatmul.f32.gmra.mxu0 %v4923
      %v5035 = vpop.f32.mrf.mxu0
      %v5036 = vadd.f32 %v4869, %v5035
      %5037 = vmatmul.f32.gmra.mxu0 %v4926
      %v5038 = vpop.f32.mrf.mxu0
      %v5039 = vadd.f32 %v4869, %v5038
      %5040 = vmatmul.f32.gmra.mxu0 %v4929
      %v5041 = vpop.f32.mrf.mxu0
      %v5042 = vadd.f32 %v4869, %v5041
      %5043 = vmatmul.f32.gmra.mxu0 %v4932
      %v5044 = vpop.f32.mrf.mxu0
      %v5045 = vadd.f32 %v4869, %v5044
      %5046 = vmatmul.f32.gmra.mxu0 %v4935
      %v5047 = vpop.f32.mrf.mxu0
      %v5048 = vadd.f32 %v4869, %v5047
      %5049 = vmatmul.f32.gmra.mxu0 %v4938
      %v5050 = vpop.f32.mrf.mxu0
      %v5051 = vadd.f32 %v4869, %v5050
      %5052 = vmatmul.f32.gmra.mxu0 %v4941
      %v5053 = vpop.f32.mrf.mxu0
      %v5054 = vadd.f32 %v4869, %v5053
      %5055 = vmatmul.f32.gmra.mxu0 %v4944
      %v5056 = vpop.f32.mrf.mxu0
      %v5057 = vadd.f32 %v4869, %v5056
      %5058 = vmatmul.f32.gmra.mxu0 %v4947
      %v5059 = vpop.f32.mrf.mxu0
      %v5060 = vadd.f32 %v4869, %v5059
      %5061 = vmatmul.f32.gmra.mxu0 %v4950
      %v5062 = vpop.f32.mrf.mxu0
      %v5063 = vadd.f32 %v4869, %v5062
      %5064 = vmatmul.f32.gmra.mxu0 %v4953
      %v5065 = vpop.f32.mrf.mxu0
      %v5066 = vadd.f32 %v4869, %v5065
      %5067 = vmatmul.f32.gmra.mxu0 %v4956
      %v5068 = vpop.f32.mrf.mxu0
      %v5069 = vadd.f32 %v4869, %v5068
      %5070 = vmatmul.f32.gmra.mxu0 %v4959
      %v5071 = vpop.f32.mrf.mxu0
      %v5072 = vadd.f32 %v4869, %v5071
      %5073 = vmatmul.f32.gmra.mxu0 %v4962
      %v5074 = vpop.f32.mrf.mxu0
      %v5075 = vadd.f32 %v4869, %v5074
      %5076 = vmatmul.f32.gmra.mxu0 %v4965
      %v5077 = vpop.f32.mrf.mxu0
      %v5078 = vadd.f32 %v4869, %v5077
      %5079 = vdwg.mxu0
      %v5080 = vld [vmem:[%s219] sm:$0xff]
      %v5081 = vld [vmem:[%s219 + $0x8] sm:$0xff]
      %v5082 = vld [vmem:[%s219 + $0x10] sm:$0xff]
      %v5083 = vld [vmem:[%s219 + $0x18] sm:$0xff]
      %v5084 = vld [vmem:[%s219 + $0x20] sm:$0xff]
      %v5085 = vld [vmem:[%s219 + $0x28] sm:$0xff]
      %v5086 = vld [vmem:[%s219 + $0x30] sm:$0xff]
      %v5087 = vld [vmem:[%s219 + $0x38] sm:$0xff]
      %v5088 = vld [vmem:[%s219 + $0x40] sm:$0xff]
      %v5089 = vld [vmem:[%s219 + $0x48] sm:$0xff]
      %v5090 = vld [vmem:[%s219 + $0x50] sm:$0xff]
      %v5091 = vld [vmem:[%s219 + $0x58] sm:$0xff]
      %v5092 = vld [vmem:[%s219 + $0x60] sm:$0xff]
      %v5093 = vld [vmem:[%s219 + $0x68] sm:$0xff]
      %v5094 = vld [vmem:[%s219 + $0x70] sm:$0xff]
      %v5095 = vld [vmem:[%s219 + $0x78] sm:$0xff]
      %v5096 = vld [vmem:[%s219 + $0x80] sm:$0xff]
      %v5097 = vld [vmem:[%s219 + $0x88] sm:$0xff]
      %v5098 = vld [vmem:[%s219 + $0x90] sm:$0xff]
      %v5099 = vld [vmem:[%s219 + $0x98] sm:$0xff]
      %v5100 = vld [vmem:[%s219 + $0xa0] sm:$0xff]
      %v5101 = vld [vmem:[%s219 + $0xa8] sm:$0xff]
      %v5102 = vld [vmem:[%s219 + $0xb0] sm:$0xff]
      %v5103 = vld [vmem:[%s219 + $0xb8] sm:$0xff]
      %v5104 = vld [vmem:[%s219 + $0xc0] sm:$0xff]
      %v5105 = vld [vmem:[%s219 + $0xc8] sm:$0xff]
      %v5106 = vld [vmem:[%s219 + $0xd0] sm:$0xff]
      %v5107 = vld [vmem:[%s219 + $0xd8] sm:$0xff]
      %v5108 = vld [vmem:[%s219 + $0xe0] sm:$0xff]
      %v5109 = vld [vmem:[%s219 + $0xe8] sm:$0xff]
      %v5110 = vld [vmem:[%s219 + $0xf0] sm:$0xff]
      %v5111 = vld [vmem:[%s219 + $0xf8] sm:$0xff]
      %v5112 = vadd.f32 %v4985, %v5080
      %v5113 = vadd.f32 %v4988, %v5081
      %v5114 = vadd.f32 %v4991, %v5082
      %v5115 = vadd.f32 %v4994, %v5083
      %v5116 = vadd.f32 %v4997, %v5084
      %v5117 = vadd.f32 %v5000, %v5085
      %v5118 = vadd.f32 %v5003, %v5086
      %v5119 = vadd.f32 %v5006, %v5087
      %v5120 = vadd.f32 %v5009, %v5088
      %v5121 = vadd.f32 %v5012, %v5089
      %v5122 = vadd.f32 %v5015, %v5090
      %v5123 = vadd.f32 %v5018, %v5091
      %v5124 = vadd.f32 %v5021, %v5092
      %v5125 = vadd.f32 %v5024, %v5093
      %v5126 = vadd.f32 %v5027, %v5094
      %v5127 = vadd.f32 %v5030, %v5095
      %v5128 = vadd.f32 %v5033, %v5096
      %v5129 = vadd.f32 %v5036, %v5097
      %v5130 = vadd.f32 %v5039, %v5098
      %v5131 = vadd.f32 %v5042, %v5099
      %v5132 = vadd.f32 %v5045, %v5100
      %v5133 = vadd.f32 %v5048, %v5101
      %v5134 = vadd.f32 %v5051, %v5102
      %v5135 = vadd.f32 %v5054, %v5103
      %v5136 = vadd.f32 %v5057, %v5104
      %v5137 = vadd.f32 %v5060, %v5105
      %v5138 = vadd.f32 %v5063, %v5106
      %v5139 = vadd.f32 %v5066, %v5107
      %v5140 = vadd.f32 %v5069, %v5108
      %v5141 = vadd.f32 %v5072, %v5109
      %v5142 = vadd.f32 %v5075, %v5110
      %v5143 = vadd.f32 %v5078, %v5111
      %v5144 = vmax.f32 %v5112, 0.0
      %v5145 = vmax.f32 %v5113, 0.0
      %v5146 = vmax.f32 %v5114, 0.0
      %v5147 = vmax.f32 %v5115, 0.0
      %v5148 = vmax.f32 %v5116, 0.0
      %v5149 = vmax.f32 %v5117, 0.0
      %v5150 = vmax.f32 %v5118, 0.0
      %v5151 = vmax.f32 %v5119, 0.0
      %v5152 = vmax.f32 %v5120, 0.0
      %v5153 = vmax.f32 %v5121, 0.0
      %v5154 = vmax.f32 %v5122, 0.0
      %v5155 = vmax.f32 %v5123, 0.0
      %v5156 = vmax.f32 %v5124, 0.0
      %v5157 = vmax.f32 %v5125, 0.0
      %v5158 = vmax.f32 %v5126, 0.0
      %v5159 = vmax.f32 %v5127, 0.0
      %v5160 = vmax.f32 %v5128, 0.0
      %v5161 = vmax.f32 %v5129, 0.0
      %v5162 = vmax.f32 %v5130, 0.0
      %v5163 = vmax.f32 %v5131, 0.0
      %v5164 = vmax.f32 %v5132, 0.0
      %v5165 = vmax.f32 %v5133, 0.0
      %v5166 = vmax.f32 %v5134, 0.0
      %v5167 = vmax.f32 %v5135, 0.0
      %v5168 = vmax.f32 %v5136, 0.0
      %v5169 = vmax.f32 %v5137, 0.0
      %v5170 = vmax.f32 %v5138, 0.0
      %v5171 = vmax.f32 %v5139, 0.0
      %v5172 = vmax.f32 %v5140, 0.0
      %v5173 = vmax.f32 %v5141, 0.0
      %v5174 = vmax.f32 %v5142, 0.0
      %v5175 = vmax.f32 %v5143, 0.0
      %5176 = vst.msk [vmem:[%s224] sm:$0xff] %vm225, %v5144
      %5177 = vst.msk [vmem:[%s224 + $0x8] sm:$0xff] %vm225, %v5145
      %5178 = vst.msk [vmem:[%s224 + $0x10] sm:$0xff] %vm225, %v5146
      %5179 = vst.msk [vmem:[%s224 + $0x18] sm:$0xff] %vm225, %v5147
      %5180 = vst.msk [vmem:[%s224 + $0x20] sm:$0xff] %vm225, %v5148
      %5181 = vst.msk [vmem:[%s224 + $0x28] sm:$0xff] %vm225, %v5149
      %5182 = vst.msk [vmem:[%s224 + $0x30] sm:$0xff] %vm225, %v5150
      %5183 = vst.msk [vmem:[%s224 + $0x38] sm:$0xff] %vm225, %v5151
      %5184 = vst.msk [vmem:[%s224 + $0x40] sm:$0xff] %vm225, %v5152
      %5185 = vst.msk [vmem:[%s224 + $0x48] sm:$0xff] %vm225, %v5153
      %5186 = vst.msk [vmem:[%s224 + $0x50] sm:$0xff] %vm225, %v5154
      %5187 = vst.msk [vmem:[%s224 + $0x58] sm:$0xff] %vm225, %v5155
      %5188 = vst.msk [vmem:[%s224 + $0x60] sm:$0xff] %vm225, %v5156
      %5189 = vst.msk [vmem:[%s224 + $0x68] sm:$0xff] %vm225, %v5157
      %5190 = vst.msk [vmem:[%s224 + $0x70] sm:$0xff] %vm225, %v5158
      %5191 = vst.msk [vmem:[%s224 + $0x78] sm:$0xff] %vm225, %v5159
      %5192 = vst.msk [vmem:[%s224 + $0x80] sm:$0xff] %vm225, %v5160
      %5193 = vst.msk [vmem:[%s224 + $0x88] sm:$0xff] %vm225, %v5161
      %5194 = vst.msk [vmem:[%s224 + $0x90] sm:$0xff] %vm225, %v5162
      %5195 = vst.msk [vmem:[%s224 + $0x98] sm:$0xff] %vm225, %v5163
      %5196 = vst.msk [vmem:[%s224 + $0xa0] sm:$0xff] %vm225, %v5164
      %5197 = vst.msk [vmem:[%s224 + $0xa8] sm:$0xff] %vm225, %v5165
      %5198 = vst.msk [vmem:[%s224 + $0xb0] sm:$0xff] %vm225, %v5166
      %5199 = vst.msk [vmem:[%s224 + $0xb8] sm:$0xff] %vm225, %v5167
      %5200 = vst.msk [vmem:[%s224 + $0xc0] sm:$0xff] %vm225, %v5168
      %5201 = vst.msk [vmem:[%s224 + $0xc8] sm:$0xff] %vm225, %v5169
      %5202 = vst.msk [vmem:[%s224 + $0xd0] sm:$0xff] %vm225, %v5170
      %5203 = vst.msk [vmem:[%s224 + $0xd8] sm:$0xff] %vm225, %v5171
      %5204 = vst.msk [vmem:[%s224 + $0xe0] sm:$0xff] %vm225, %v5172
      %5205 = vst.msk [vmem:[%s224 + $0xe8] sm:$0xff] %vm225, %v5173
      %5206 = vst.msk [vmem:[%s224 + $0xf0] sm:$0xff] %vm225, %v5174
      %5207 = vst.msk [vmem:[%s224 + $0xf8] sm:$0xff] %vm225, %v5175
      %p5208 = scmp.lt.s32.totalorder %s16, 1
      %s5209 = scalar_select %p5208, %s16, 1
      %s5210 = smul.addr %s5209, 32
      %s5211 = smul.addr %s5210, 8
      %s5212 = scalar_lea.vmem %s5, %s5211
      // Predicated region
      $region41: #{tpu_custom_call.1} parent=39 // pred_check
        %p5213 = pneg %p144
      $region42: #{tpu_custom_call.1} parent=39 // pred_check_branch
        %5215 = sbr.rel (%p5213) target = $region44
      $region43: #{tpu_custom_call.1} parent=39 // pred_region
        _
      $region44: #{tpu_custom_call.1} parent=39 // pred_fallthru
        _
    $region40: #{tpu_custom_call.1} parent=5 // pred_fallthru
      _
    %p5216 = scmp.le.s32.totalorder 2, %s11
    // Predicated region
    $region45: #{tpu_custom_call.1} parent=5 // pred_check
      %p5217 = pneg %p5216
    $region46: #{tpu_custom_call.1} parent=5 // pred_check_branch
      %5219 = sbr.rel (%p5217) target = $region48
    $region47: #{tpu_custom_call.1} parent=5 // pred_region
      %s5220 = ssub.s32 %s11, 2
      // Predicated region
      $region49: #{tpu_custom_call.1} parent=47 // pred_check
        %p5221 = pneg %p150
      $region50: #{tpu_custom_call.1} parent=47 // pred_check_branch
        %5223 = sbr.rel (%p5221) target = $region52
      $region51: #{tpu_custom_call.1} parent=47 // pred_region
        %p5224 = scmp.lt.s32.totalorder %s17, 1
        %s5225 = scalar_select %p5224, %s17, 1
        %s5226 = smul.addr %s5225, 32
        %s5227 = smul.addr %s5226, 8
        %s5228 = scalar_lea.vmem %s5, %s5227
      $region52: #{tpu_custom_call.1} parent=47 // pred_fallthru
        _
    $region48: #{tpu_custom_call.1} parent=5 // pred_fallthru
      _
  $region6: #{tpu_custom_call.1} parent=0 // loop_footer
    %s15 = sadd.s32 1, %s11
  $region7: #{tpu_custom_call.1} parent=0 // loop_footer_branch
    %10 = sbr.rel target = $region3
  $region8: #{tpu_custom_call.1} parent=0 // loop_exit
    _

</llo_original>
